<compile_context>
chip_gen: v7x
topology: tpu7x:2x2x1
jax: 0.10.0
libtpu: 0.0.40
codegen_flags: <defaults>
</compile_context>

<pallas_src>
import jax
import jax.numpy as jnp
from jax.experimental import pallas as pl
from jax.experimental.pallas import tpu as pltpu


# ----------------------------------------------------------------------------
# Kernels
# ----------------------------------------------------------------------------
def lstm_fused_kernel(x_ref, wih_ref, whh_ref, b_ref, hs_ref, gx_ref):
    """Fused input-projection + serial LSTM recurrence for one batch tile.

    x_ref   : (tile_b, T, E) bf16   embedded inputs (batch_first)
    wih_ref : (E, 4H)        bf16   input->gates weight (transposed)
    whh_ref : (H, 4H)        bf16   hidden->gates weight (transposed)
    b_ref   : (1, 4H)        f32    b_ih + b_hh
    hs_ref  : (tile_b, T*H)  bf16   all hidden states (lane-dense slab)
    gx_ref  : (tile_b, T, 4H) f32   VMEM scratch for the hoisted projection
    """
    tb, T, E = x_ref.shape
    H = whh_ref.shape[0]
    G = 4 * H

    # --- Hoisted input projection: ONE big MXU matmul for this batch tile,
    # written straight into VMEM scratch (no HBM round trip).
    x_flat = x_ref[...].reshape(tb * T, E)                       # contiguous
    gx = jnp.dot(x_flat, wih_ref[...],
                 preferred_element_type=jnp.float32) + b_ref[...]
    gx_ref[...] = gx.reshape(tb, T, G)                           # contiguous

    whh = whh_ref[...]                                           # (H, 4H) bf16

    def sigmoid(v):
        # EUP-only sigmoid (tanh), avoids exp + full-precision divide on the
        # serial critical path.
        return 0.5 * jnp.tanh(0.5 * v) + 0.5

    h = jnp.zeros((tb, H), jnp.float32)
    c = jnp.zeros((tb, H), jnp.float32)

    # T is small & static -> fully unrolled; only (h, c) live across steps,
    # everything else is a per-step VMEM load/store.
    # TODO(synk): for long sequences switch to lax.fori_loop over t (with H a
    # multiple of 128 so the dynamic lane offsets stay aligned).
    for t in range(T):
        gates = gx_ref[:, t, :] + jnp.dot(h.astype(jnp.bfloat16), whh,
                                          preferred_element_type=jnp.float32)
        # PyTorch LSTM gate order: i, f, g, o
        i = sigmoid(gates[:, 0:H])
        f = sigmoid(gates[:, H:2 * H])
        g = jnp.tanh(gates[:, 2 * H:3 * H])
        o = sigmoid(gates[:, 3 * H:4 * H])
        c = f * c + i * g
        h = o * jnp.tanh(c)
        # Per-step store into the lane-dense output slab (unmasked when H%128==0).
        hs_ref[:, t * H:(t + 1) * H] = h.astype(hs_ref.dtype)


def matmul_bias_kernel(x_ref, w_ref, b_ref, out_ref):
    """out = x @ w + b  (bf16 operands, f32 accumulate).  Final FC layer."""
    out_ref[...] = (jnp.dot(x_ref[...], w_ref[...],
                            preferred_element_type=jnp.float32)
                    + b_ref[...])


# ----------------------------------------------------------------------------
# Tiling helpers
# ----------------------------------------------------------------------------
def _round_up(x, m):
    return ((x + m - 1) // m) * m


def _pick_tile(n, target, unit):
    """Largest tile <= target that is a multiple of `unit` and divides n;
    falls back to the full dimension (always a legal block shape).  Only used
    for small dims (batch / rows) where a full-dim fallback is cheap."""
    if n <= target:
        return n
    t = (target // unit) * unit
    while t >= unit:
        if n % t == 0:
            return t
        t -= unit
    return n


# ----------------------------------------------------------------------------
# Wrapper (embedding gather, concat, parameter plumbing — all batch_first,
# all reshapes contiguous / free; no transposes)
# ----------------------------------------------------------------------------
def decoder_rnn_forward(features, captions, params):
    """features: (B, E) float32, captions: (B, L) int32 -> logits (B, L, V)."""
    # captions = captions[:, :-1]; embed; prepend features as first timestep.
    # Note: jnp.take clamps out-of-range indices (PyTorch nn.Embedding raises).
    emb = jnp.take(params["embedding"], captions[:, :-1], axis=0)   # (B, L-1, E)
    inputs = jnp.concatenate([features[:, None, :], emb], axis=1)   # (B, T, E)
    B, T, E = inputs.shape
    H = params["w_hh"].shape[1]
    V = params["w_fc"].shape[0]
    G = 4 * H
    N = B * T

    x = inputs.astype(jnp.bfloat16)                                  # (B, T, E)
    wih_t = params["w_ih"].T.astype(jnp.bfloat16)                    # (E, 4H)
    whh_t = params["w_hh"].T.astype(jnp.bfloat16)                    # (H, 4H)
    b_gates = (params["b_ih"] + params["b_hh"])[None, :].astype(jnp.float32)
    w_fc_t = params["w_fc"].T.astype(jnp.bfloat16)                   # (H, V)
    b_fc = params["b_fc"][None, :].astype(jnp.float32)               # (1, V)

    # --- 1) Fused projection + serial recurrence, batch-tiled -------------
    tile_b = _pick_tile(B, 16, 8)     # bounds VMEM; >=2 tiles shards on v7x
    hs = pl.pallas_call(
        lstm_fused_kernel,
        out_shape=jax.ShapeDtypeStruct((B, T * H), jnp.bfloat16),
        grid=(B // tile_b,),
        in_specs=[
            pl.BlockSpec((tile_b, T, E), lambda i: (i, 0, 0)),
            pl.BlockSpec((E, G), lambda i: (0, 0)),
            pl.BlockSpec((H, G), lambda i: (0, 0)),
            pl.BlockSpec((1, G), lambda i: (0, 0)),
        ],
        out_specs=pl.BlockSpec((tile_b, T * H), lambda i: (i, 0)),
        scratch_shapes=[pltpu.VMEM((tile_b, T, G), jnp.float32)],
        compiler_params=pltpu.CompilerParams(
            dimension_semantics=("parallel",)),
    )(x, wih_t, whh_t, b_gates)                                      # (B, T*H)
    h_seq = hs.reshape(N, H)                                         # free reshape

    # --- 2) FC: vocab axis OUTERMOST so W_fc streams from HBM exactly once.
    tile_m = _pick_tile(N, 256, 16)                  # bf16 packs (16,128)
    tile_v = 512 if V >= 512 else _round_up(V, 128)  # fits v7x scoped VMEM too
    v_pad = _round_up(V, tile_v)                     # never a full-V block
    if v_pad != V:
        w_fc_t = jnp.pad(w_fc_t, ((0, 0), (0, v_pad - V)))
        b_fc = jnp.pad(b_fc, ((0, 0), (0, v_pad - V)))

    logits_flat = pl.pallas_call(
        matmul_bias_kernel,
        out_shape=jax.ShapeDtypeStruct((N, v_pad), jnp.float32),
        grid=(v_pad // tile_v, N // tile_m),         # (vocab outer, rows inner)
        in_specs=[
            pl.BlockSpec((tile_m, H), lambda j, i: (i, 0)),
            pl.BlockSpec((H, tile_v), lambda j, i: (0, j)),   # constant over i
            pl.BlockSpec((1, tile_v), lambda j, i: (0, j)),
        ],
        out_specs=pl.BlockSpec((tile_m, tile_v), lambda j, i: (i, j)),
        compiler_params=pltpu.CompilerParams(
            dimension_semantics=("parallel", "parallel")),
    )(h_seq, w_fc_t, b_fc)                                            # (N, v_pad)

    if v_pad != V:
        logits_flat = logits_flat[:, :V]
    return logits_flat.reshape(B, T, V)                               # free reshape


# ----------------------------------------------------------------------------
# Pure-JAX reference (f32 end-to-end) for a correctness sanity check
# ----------------------------------------------------------------------------
def decoder_rnn_reference(features, captions, params):
    emb = jnp.take(params["embedding"], captions[:, :-1], axis=0)
    inputs = jnp.concatenate([features[:, None, :], emb], axis=1)
    B, T, E = inputs.shape
    H = params["w_hh"].shape[1]
    h = jnp.zeros((B, H), jnp.float32)
    c = jnp.zeros((B, H), jnp.float32)
    outs = []
    for t in range(T):
        x = inputs[:, t]
        gates = (x @ params["w_ih"].T + h @ params["w_hh"].T
                 + params["b_ih"] + params["b_hh"])
        i, f, g, o = jnp.split(gates, 4, axis=-1)
        i = jax.nn.sigmoid(i)
        f = jax.nn.sigmoid(f)
        g = jnp.tanh(g)
        o = jax.nn.sigmoid(o)
        c = f * c + i * g
        h = o * jnp.tanh(c)
        outs.append(h)
    out = jnp.stack(outs, axis=1)                            # (B, T, H)
    return out @ params["w_fc"].T + params["b_fc"]           # (B, T, V)


# ----------------------------------------------------------------------------
# Deterministic parameter init (same shapes as the PyTorch __init__)
# ----------------------------------------------------------------------------
def init_params(key, embed_size, hidden_size, vocab_size):
    k = jax.random.split(key, 7)
    s = 1.0 / jnp.sqrt(hidden_size)
    return {
        "embedding": jax.random.normal(k[0], (vocab_size, embed_size),
                                       jnp.float32),
        "w_ih": jax.random.uniform(k[1], (4 * hidden_size, embed_size),
                                   jnp.float32, -s, s),
        "w_hh": jax.random.uniform(k[2], (4 * hidden_size, hidden_size),
                                   jnp.float32, -s, s),
        "b_ih": jax.random.uniform(k[3], (4 * hidden_size,),
                                   jnp.float32, -s, s),
        "b_hh": jax.random.uniform(k[4], (4 * hidden_size,),
                                   jnp.float32, -s, s),
        "w_fc": jax.random.uniform(k[5], (vocab_size, hidden_size),
                                   jnp.float32, -s, s),
        "b_fc": jax.random.uniform(k[6], (vocab_size,),
                                   jnp.float32, -s, s),
    }


if __name__ == "__main__":
    # Small but lane-aligned shapes: H multiple of 128 (free gate slices),
    # T multiple of 8 (clean in-kernel reshape), V multiple of 128.
    embed_size, hidden_size, vocab_size = 64, 128, 256
    B, L = 4, 8                      # captions length L -> T = 1 + (L-1) = 8

    key = jax.random.PRNGKey(0)
    kp, kf, kc = jax.random.split(key, 3)
    params = init_params(kp, embed_size, hidden_size, vocab_size)

    features = jax.random.normal(kf, (B, embed_size), jnp.float32)
    captions = jax.random.randint(kc, (B, L), 0, vocab_size, jnp.int32)

    fwd = jax.jit(decoder_rnn_forward)
    logits = fwd(features, captions, params)
    logits = jax.block_until_ready(logits)

    ref = decoder_rnn_reference(features, captions, params)
    assert logits.shape == (B, L, vocab_size)
    # bf16 MXU operands vs f32 reference -> loosened tolerance.
    err = float(jnp.max(jnp.abs(logits - ref)))
    assert jnp.allclose(logits, ref, atol=1e-1, rtol=1e-1), err

    print("KERNEL_OK")
</pallas_src>

<mosaic_0001>
module attributes {stable_mosaic.version = 11 : i64} {
  func.func @lstm_fused_kernel(%arg0: i32, %arg1: memref<4x8x64xbf16, #tpu.memory_space<vmem>>, %arg2: memref<64x512xbf16, #tpu.memory_space<vmem>>, %arg3: memref<128x512xbf16, #tpu.memory_space<vmem>>, %arg4: memref<1x512xf32, #tpu.memory_space<vmem>>, %arg5: memref<4x1024xbf16, #tpu.memory_space<vmem>>, %arg6: memref<4x8x512xf32, #tpu.memory_space<vmem>>) attributes {dimension_semantics = [#tpu.dimension_semantics<parallel>], iteration_bounds = array<i64: 1>, scalar_prefetch = 0 : i64, scratch_operands = 1 : i64, tpu.core_type = #tpu.core_type<tc>, window_params = [{transform_indices = @transform_0, window_bounds = array<i64: 4, 8, 64>}, {pipeline_mode = #tpu.pipeline_mode<synchronous>, transform_indices = @transform_1, window_bounds = array<i64: 64, 512>}, {pipeline_mode = #tpu.pipeline_mode<synchronous>, transform_indices = @transform_2, window_bounds = array<i64: 128, 512>}, {pipeline_mode = #tpu.pipeline_mode<synchronous>, transform_indices = @transform_3, window_bounds = array<i64: 1, 512>}, {transform_indices = @transform_4, window_bounds = array<i64: 4, 1024>}]} {
    %c0 = arith.constant 0 : index
    %c0_0 = arith.constant 0 : index
    %c0_1 = arith.constant 0 : index
    %0 = vector.load %arg1[%c0, %c0_0, %c0_1] : memref<4x8x64xbf16, #tpu.memory_space<vmem>>, vector<4x8x64xbf16>
    %1 = vector.shape_cast %0 : vector<4x8x64xbf16> to vector<32x64xbf16>
    %c0_2 = arith.constant 0 : index
    %c0_3 = arith.constant 0 : index
    %2 = vector.load %arg2[%c0_2, %c0_3] : memref<64x512xbf16, #tpu.memory_space<vmem>>, vector<64x512xbf16>
    %cst = arith.constant dense<0.000000e+00> : vector<32x512xf32>
    %3 = tpu.matmul %1, %2, %cst {dimension_numbers = #tpu.dot_dimension_numbers<[1], [0], [0], [1], [0, 0, 1, 1], [], []>} : vector<32x64xbf16>, vector<64x512xbf16>, vector<32x512xf32> -> vector<32x512xf32>
    %c0_4 = arith.constant 0 : index
    %c0_5 = arith.constant 0 : index
    %4 = vector.load %arg4[%c0_4, %c0_5] : memref<1x512xf32, #tpu.memory_space<vmem>>, vector<1x512xf32>
    %5 = vector.broadcast %4 : vector<1x512xf32> to vector<32x512xf32>
    %6 = arith.addf %3, %5 : vector<32x512xf32>
    %7 = vector.shape_cast %6 : vector<32x512xf32> to vector<4x8x512xf32>
    %c0_6 = arith.constant 0 : index
    %c0_7 = arith.constant 0 : index
    %c0_8 = arith.constant 0 : index
    %8 = vector.load %arg6[%c0_6, %c0_7, %c0_8] : memref<4x8x512xf32, #tpu.memory_space<vmem>>, vector<4x8x512xf32>
    tpu.vector_store %arg6[%c0_6, %c0_7, %c0_8], %7 {strides = array<i32>} : memref<4x8x512xf32, #tpu.memory_space<vmem>>, vector<4x8x512xf32>,
    %c0_9 = arith.constant 0 : index
    %c0_10 = arith.constant 0 : index
    %9 = vector.load %arg3[%c0_9, %c0_10] : memref<128x512xbf16, #tpu.memory_space<vmem>>, vector<128x512xbf16>
    %cst_11 = arith.constant 0.000000e+00 : f32
    %10 = vector.broadcast %cst_11 : f32 to vector<4x128xf32>
    %cst_12 = arith.constant 0.000000e+00 : f32
    %11 = vector.broadcast %cst_12 : f32 to vector<4x128xf32>
    %c0_13 = arith.constant 0 : index
    %c0_14 = arith.constant 0 : index
    %c0_15 = arith.constant 0 : index
    %12 = vector.load %arg6[%c0_13, %c0_14, %c0_15] : memref<4x8x512xf32, #tpu.memory_space<vmem>>, vector<4x1x512xf32>
    %13 = vector.shape_cast %12 : vector<4x1x512xf32> to vector<4x512xf32>
    %14 = arith.truncf %10 : vector<4x128xf32> to vector<4x128xbf16>
    %cst_16 = arith.constant dense<0.000000e+00> : vector<4x512xf32>
    %15 = tpu.matmul %14, %9, %cst_16 {dimension_numbers = #tpu.dot_dimension_numbers<[1], [0], [0], [1], [0, 0, 1, 1], [], []>} : vector<4x128xbf16>, vector<128x512xbf16>, vector<4x512xf32> -> vector<4x512xf32>
    %16 = arith.addf %13, %15 : vector<4x512xf32>
    %17 = vector.extract_strided_slice %16 {offsets = [0, 0], sizes = [4, 128], strides = [1, 1]} : vector<4x512xf32> to vector<4x128xf32>
    %cst_17 = arith.constant 5.000000e-01 : f32
    %18 = vector.broadcast %cst_17 : f32 to vector<4x128xf32>
    %19 = arith.mulf %18, %17 : vector<4x128xf32>
    %20 = math.tanh %19 : vector<4x128xf32>
    %cst_18 = arith.constant 5.000000e-01 : f32
    %21 = vector.broadcast %cst_18 : f32 to vector<4x128xf32>
    %22 = arith.mulf %21, %20 : vector<4x128xf32>
    %cst_19 = arith.constant 5.000000e-01 : f32
    %23 = vector.broadcast %cst_19 : f32 to vector<4x128xf32>
    %24 = arith.addf %22, %23 : vector<4x128xf32>
    %25 = vector.extract_strided_slice %16 {offsets = [0, 128], sizes = [4, 128], strides = [1, 1]} : vector<4x512xf32> to vector<4x128xf32>
    %cst_20 = arith.constant 5.000000e-01 : f32
    %26 = vector.broadcast %cst_20 : f32 to vector<4x128xf32>
    %27 = arith.mulf %26, %25 : vector<4x128xf32>
    %28 = math.tanh %27 : vector<4x128xf32>
    %cst_21 = arith.constant 5.000000e-01 : f32
    %29 = vector.broadcast %cst_21 : f32 to vector<4x128xf32>
    %30 = arith.mulf %29, %28 : vector<4x128xf32>
    %cst_22 = arith.constant 5.000000e-01 : f32
    %31 = vector.broadcast %cst_22 : f32 to vector<4x128xf32>
    %32 = arith.addf %30, %31 : vector<4x128xf32>
    %33 = vector.extract_strided_slice %16 {offsets = [0, 256], sizes = [4, 128], strides = [1, 1]} : vector<4x512xf32> to vector<4x128xf32>
    %34 = math.tanh %33 : vector<4x128xf32>
    %35 = vector.extract_strided_slice %16 {offsets = [0, 384], sizes = [4, 128], strides = [1, 1]} : vector<4x512xf32> to vector<4x128xf32>
    %cst_23 = arith.constant 5.000000e-01 : f32
    %36 = vector.broadcast %cst_23 : f32 to vector<4x128xf32>
    %37 = arith.mulf %36, %35 : vector<4x128xf32>
    %38 = math.tanh %37 : vector<4x128xf32>
    %cst_24 = arith.constant 5.000000e-01 : f32
    %39 = vector.broadcast %cst_24 : f32 to vector<4x128xf32>
    %40 = arith.mulf %39, %38 : vector<4x128xf32>
    %cst_25 = arith.constant 5.000000e-01 : f32
    %41 = vector.broadcast %cst_25 : f32 to vector<4x128xf32>
    %42 = arith.addf %40, %41 : vector<4x128xf32>
    %43 = arith.mulf %32, %11 : vector<4x128xf32>
    %44 = arith.mulf %24, %34 : vector<4x128xf32>
    %45 = arith.addf %43, %44 : vector<4x128xf32>
    %46 = math.tanh %45 : vector<4x128xf32>
    %47 = arith.mulf %42, %46 : vector<4x128xf32>
    %48 = arith.truncf %47 : vector<4x128xf32> to vector<4x128xbf16>
    %c0_26 = arith.constant 0 : index
    %c0_27 = arith.constant 0 : index
    %49 = vector.load %arg5[%c0_26, %c0_27] : memref<4x1024xbf16, #tpu.memory_space<vmem>>, vector<4x128xbf16>
    tpu.vector_store %arg5[%c0_26, %c0_27], %48 {strides = array<i32>} : memref<4x1024xbf16, #tpu.memory_space<vmem>>, vector<4x128xbf16>,
    %c0_28 = arith.constant 0 : index
    %c1 = arith.constant 1 : index
    %c0_29 = arith.constant 0 : index
    %50 = vector.load %arg6[%c0_28, %c1, %c0_29] : memref<4x8x512xf32, #tpu.memory_space<vmem>>, vector<4x1x512xf32>
    %51 = vector.shape_cast %50 : vector<4x1x512xf32> to vector<4x512xf32>
    %52 = arith.truncf %47 : vector<4x128xf32> to vector<4x128xbf16>
    %cst_30 = arith.constant dense<0.000000e+00> : vector<4x512xf32>
    %53 = tpu.matmul %52, %9, %cst_30 {dimension_numbers = #tpu.dot_dimension_numbers<[1], [0], [0], [1], [0, 0, 1, 1], [], []>} : vector<4x128xbf16>, vector<128x512xbf16>, vector<4x512xf32> -> vector<4x512xf32>
    %54 = arith.addf %51, %53 : vector<4x512xf32>
    %55 = vector.extract_strided_slice %54 {offsets = [0, 0], sizes = [4, 128], strides = [1, 1]} : vector<4x512xf32> to vector<4x128xf32>
    %cst_31 = arith.constant 5.000000e-01 : f32
    %56 = vector.broadcast %cst_31 : f32 to vector<4x128xf32>
    %57 = arith.mulf %56, %55 : vector<4x128xf32>
    %58 = math.tanh %57 : vector<4x128xf32>
    %cst_32 = arith.constant 5.000000e-01 : f32
    %59 = vector.broadcast %cst_32 : f32 to vector<4x128xf32>
    %60 = arith.mulf %59, %58 : vector<4x128xf32>
    %cst_33 = arith.constant 5.000000e-01 : f32
    %61 = vector.broadcast %cst_33 : f32 to vector<4x128xf32>
    %62 = arith.addf %60, %61 : vector<4x128xf32>
    %63 = vector.extract_strided_slice %54 {offsets = [0, 128], sizes = [4, 128], strides = [1, 1]} : vector<4x512xf32> to vector<4x128xf32>
    %cst_34 = arith.constant 5.000000e-01 : f32
    %64 = vector.broadcast %cst_34 : f32 to vector<4x128xf32>
    %65 = arith.mulf %64, %63 : vector<4x128xf32>
    %66 = math.tanh %65 : vector<4x128xf32>
    %cst_35 = arith.constant 5.000000e-01 : f32
    %67 = vector.broadcast %cst_35 : f32 to vector<4x128xf32>
    %68 = arith.mulf %67, %66 : vector<4x128xf32>
    %cst_36 = arith.constant 5.000000e-01 : f32
    %69 = vector.broadcast %cst_36 : f32 to vector<4x128xf32>
    %70 = arith.addf %68, %69 : vector<4x128xf32>
    %71 = vector.extract_strided_slice %54 {offsets = [0, 256], sizes = [4, 128], strides = [1, 1]} : vector<4x512xf32> to vector<4x128xf32>
    %72 = math.tanh %71 : vector<4x128xf32>
    %73 = vector.extract_strided_slice %54 {offsets = [0, 384], sizes = [4, 128], strides = [1, 1]} : vector<4x512xf32> to vector<4x128xf32>
    %cst_37 = arith.constant 5.000000e-01 : f32
    %74 = vector.broadcast %cst_37 : f32 to vector<4x128xf32>
    %75 = arith.mulf %74, %73 : vector<4x128xf32>
    %76 = math.tanh %75 : vector<4x128xf32>
    %cst_38 = arith.constant 5.000000e-01 : f32
    %77 = vector.broadcast %cst_38 : f32 to vector<4x128xf32>
    %78 = arith.mulf %77, %76 : vector<4x128xf32>
    %cst_39 = arith.constant 5.000000e-01 : f32
    %79 = vector.broadcast %cst_39 : f32 to vector<4x128xf32>
    %80 = arith.addf %78, %79 : vector<4x128xf32>
    %81 = arith.mulf %70, %45 : vector<4x128xf32>
    %82 = arith.mulf %62, %72 : vector<4x128xf32>
    %83 = arith.addf %81, %82 : vector<4x128xf32>
    %84 = math.tanh %83 : vector<4x128xf32>
    %85 = arith.mulf %80, %84 : vector<4x128xf32>
    %86 = arith.truncf %85 : vector<4x128xf32> to vector<4x128xbf16>
    %c0_40 = arith.constant 0 : index
    %c128 = arith.constant 128 : index
    %87 = vector.load %arg5[%c0_40, %c128] : memref<4x1024xbf16, #tpu.memory_space<vmem>>, vector<4x128xbf16>
    tpu.vector_store %arg5[%c0_40, %c128], %86 {strides = array<i32>} : memref<4x1024xbf16, #tpu.memory_space<vmem>>, vector<4x128xbf16>,
    %c0_41 = arith.constant 0 : index
    %c2 = arith.constant 2 : index
    %c0_42 = arith.constant 0 : index
    %88 = vector.load %arg6[%c0_41, %c2, %c0_42] : memref<4x8x512xf32, #tpu.memory_space<vmem>>, vector<4x1x512xf32>
    %89 = vector.shape_cast %88 : vector<4x1x512xf32> to vector<4x512xf32>
    %90 = arith.truncf %85 : vector<4x128xf32> to vector<4x128xbf16>
    %cst_43 = arith.constant dense<0.000000e+00> : vector<4x512xf32>
    %91 = tpu.matmul %90, %9, %cst_43 {dimension_numbers = #tpu.dot_dimension_numbers<[1], [0], [0], [1], [0, 0, 1, 1], [], []>} : vector<4x128xbf16>, vector<128x512xbf16>, vector<4x512xf32> -> vector<4x512xf32>
    %92 = arith.addf %89, %91 : vector<4x512xf32>
    %93 = vector.extract_strided_slice %92 {offsets = [0, 0], sizes = [4, 128], strides = [1, 1]} : vector<4x512xf32> to vector<4x128xf32>
    %cst_44 = arith.constant 5.000000e-01 : f32
    %94 = vector.broadcast %cst_44 : f32 to vector<4x128xf32>
    %95 = arith.mulf %94, %93 : vector<4x128xf32>
    %96 = math.tanh %95 : vector<4x128xf32>
    %cst_45 = arith.constant 5.000000e-01 : f32
    %97 = vector.broadcast %cst_45 : f32 to vector<4x128xf32>
    %98 = arith.mulf %97, %96 : vector<4x128xf32>
    %cst_46 = arith.constant 5.000000e-01 : f32
    %99 = vector.broadcast %cst_46 : f32 to vector<4x128xf32>
    %100 = arith.addf %98, %99 : vector<4x128xf32>
    %101 = vector.extract_strided_slice %92 {offsets = [0, 128], sizes = [4, 128], strides = [1, 1]} : vector<4x512xf32> to vector<4x128xf32>
    %cst_47 = arith.constant 5.000000e-01 : f32
    %102 = vector.broadcast %cst_47 : f32 to vector<4x128xf32>
    %103 = arith.mulf %102, %101 : vector<4x128xf32>
    %104 = math.tanh %103 : vector<4x128xf32>
    %cst_48 = arith.constant 5.000000e-01 : f32
    %105 = vector.broadcast %cst_48 : f32 to vector<4x128xf32>
    %106 = arith.mulf %105, %104 : vector<4x128xf32>
    %cst_49 = arith.constant 5.000000e-01 : f32
    %107 = vector.broadcast %cst_49 : f32 to vector<4x128xf32>
    %108 = arith.addf %106, %107 : vector<4x128xf32>
    %109 = vector.extract_strided_slice %92 {offsets = [0, 256], sizes = [4, 128], strides = [1, 1]} : vector<4x512xf32> to vector<4x128xf32>
    %110 = math.tanh %109 : vector<4x128xf32>
    %111 = vector.extract_strided_slice %92 {offsets = [0, 384], sizes = [4, 128], strides = [1, 1]} : vector<4x512xf32> to vector<4x128xf32>
    %cst_50 = arith.constant 5.000000e-01 : f32
    %112 = vector.broadcast %cst_50 : f32 to vector<4x128xf32>
    %113 = arith.mulf %112, %111 : vector<4x128xf32>
    %114 = math.tanh %113 : vector<4x128xf32>
    %cst_51 = arith.constant 5.000000e-01 : f32
    %115 = vector.broadcast %cst_51 : f32 to vector<4x128xf32>
    %116 = arith.mulf %115, %114 : vector<4x128xf32>
    %cst_52 = arith.constant 5.000000e-01 : f32
    %117 = vector.broadcast %cst_52 : f32 to vector<4x128xf32>
    %118 = arith.addf %116, %117 : vector<4x128xf32>
    %119 = arith.mulf %108, %83 : vector<4x128xf32>
    %120 = arith.mulf %100, %110 : vector<4x128xf32>
    %121 = arith.addf %119, %120 : vector<4x128xf32>
    %122 = math.tanh %121 : vector<4x128xf32>
    %123 = arith.mulf %118, %122 : vector<4x128xf32>
    %124 = arith.truncf %123 : vector<4x128xf32> to vector<4x128xbf16>
    %c0_53 = arith.constant 0 : index
    %c256 = arith.constant 256 : index
    %125 = vector.load %arg5[%c0_53, %c256] : memref<4x1024xbf16, #tpu.memory_space<vmem>>, vector<4x128xbf16>
    tpu.vector_store %arg5[%c0_53, %c256], %124 {strides = array<i32>} : memref<4x1024xbf16, #tpu.memory_space<vmem>>, vector<4x128xbf16>,
    %c0_54 = arith.constant 0 : index
    %c3 = arith.constant 3 : index
    %c0_55 = arith.constant 0 : index
    %126 = vector.load %arg6[%c0_54, %c3, %c0_55] : memref<4x8x512xf32, #tpu.memory_space<vmem>>, vector<4x1x512xf32>
    %127 = vector.shape_cast %126 : vector<4x1x512xf32> to vector<4x512xf32>
    %128 = arith.truncf %123 : vector<4x128xf32> to vector<4x128xbf16>
    %cst_56 = arith.constant dense<0.000000e+00> : vector<4x512xf32>
    %129 = tpu.matmul %128, %9, %cst_56 {dimension_numbers = #tpu.dot_dimension_numbers<[1], [0], [0], [1], [0, 0, 1, 1], [], []>} : vector<4x128xbf16>, vector<128x512xbf16>, vector<4x512xf32> -> vector<4x512xf32>
    %130 = arith.addf %127, %129 : vector<4x512xf32>
    %131 = vector.extract_strided_slice %130 {offsets = [0, 0], sizes = [4, 128], strides = [1, 1]} : vector<4x512xf32> to vector<4x128xf32>
    %cst_57 = arith.constant 5.000000e-01 : f32
    %132 = vector.broadcast %cst_57 : f32 to vector<4x128xf32>
    %133 = arith.mulf %132, %131 : vector<4x128xf32>
    %134 = math.tanh %133 : vector<4x128xf32>
    %cst_58 = arith.constant 5.000000e-01 : f32
    %135 = vector.broadcast %cst_58 : f32 to vector<4x128xf32>
    %136 = arith.mulf %135, %134 : vector<4x128xf32>
    %cst_59 = arith.constant 5.000000e-01 : f32
    %137 = vector.broadcast %cst_59 : f32 to vector<4x128xf32>
    %138 = arith.addf %136, %137 : vector<4x128xf32>
    %139 = vector.extract_strided_slice %130 {offsets = [0, 128], sizes = [4, 128], strides = [1, 1]} : vector<4x512xf32> to vector<4x128xf32>
    %cst_60 = arith.constant 5.000000e-01 : f32
    %140 = vector.broadcast %cst_60 : f32 to vector<4x128xf32>
    %141 = arith.mulf %140, %139 : vector<4x128xf32>
    %142 = math.tanh %141 : vector<4x128xf32>
    %cst_61 = arith.constant 5.000000e-01 : f32
    %143 = vector.broadcast %cst_61 : f32 to vector<4x128xf32>
    %144 = arith.mulf %143, %142 : vector<4x128xf32>
    %cst_62 = arith.constant 5.000000e-01 : f32
    %145 = vector.broadcast %cst_62 : f32 to vector<4x128xf32>
    %146 = arith.addf %144, %145 : vector<4x128xf32>
    %147 = vector.extract_strided_slice %130 {offsets = [0, 256], sizes = [4, 128], strides = [1, 1]} : vector<4x512xf32> to vector<4x128xf32>
    %148 = math.tanh %147 : vector<4x128xf32>
    %149 = vector.extract_strided_slice %130 {offsets = [0, 384], sizes = [4, 128], strides = [1, 1]} : vector<4x512xf32> to vector<4x128xf32>
    %cst_63 = arith.constant 5.000000e-01 : f32
    %150 = vector.broadcast %cst_63 : f32 to vector<4x128xf32>
    %151 = arith.mulf %150, %149 : vector<4x128xf32>
    %152 = math.tanh %151 : vector<4x128xf32>
    %cst_64 = arith.constant 5.000000e-01 : f32
    %153 = vector.broadcast %cst_64 : f32 to vector<4x128xf32>
    %154 = arith.mulf %153, %152 : vector<4x128xf32>
    %cst_65 = arith.constant 5.000000e-01 : f32
    %155 = vector.broadcast %cst_65 : f32 to vector<4x128xf32>
    %156 = arith.addf %154, %155 : vector<4x128xf32>
    %157 = arith.mulf %146, %121 : vector<4x128xf32>
    %158 = arith.mulf %138, %148 : vector<4x128xf32>
    %159 = arith.addf %157, %158 : vector<4x128xf32>
    %160 = math.tanh %159 : vector<4x128xf32>
    %161 = arith.mulf %156, %160 : vector<4x128xf32>
    %162 = arith.truncf %161 : vector<4x128xf32> to vector<4x128xbf16>
    %c0_66 = arith.constant 0 : index
    %c384 = arith.constant 384 : index
    %163 = vector.load %arg5[%c0_66, %c384] : memref<4x1024xbf16, #tpu.memory_space<vmem>>, vector<4x128xbf16>
    tpu.vector_store %arg5[%c0_66, %c384], %162 {strides = array<i32>} : memref<4x1024xbf16, #tpu.memory_space<vmem>>, vector<4x128xbf16>,
    %c0_67 = arith.constant 0 : index
    %c4 = arith.constant 4 : index
    %c0_68 = arith.constant 0 : index
    %164 = vector.load %arg6[%c0_67, %c4, %c0_68] : memref<4x8x512xf32, #tpu.memory_space<vmem>>, vector<4x1x512xf32>
    %165 = vector.shape_cast %164 : vector<4x1x512xf32> to vector<4x512xf32>
    %166 = arith.truncf %161 : vector<4x128xf32> to vector<4x128xbf16>
    %cst_69 = arith.constant dense<0.000000e+00> : vector<4x512xf32>
    %167 = tpu.matmul %166, %9, %cst_69 {dimension_numbers = #tpu.dot_dimension_numbers<[1], [0], [0], [1], [0, 0, 1, 1], [], []>} : vector<4x128xbf16>, vector<128x512xbf16>, vector<4x512xf32> -> vector<4x512xf32>
    %168 = arith.addf %165, %167 : vector<4x512xf32>
    %169 = vector.extract_strided_slice %168 {offsets = [0, 0], sizes = [4, 128], strides = [1, 1]} : vector<4x512xf32> to vector<4x128xf32>
    %cst_70 = arith.constant 5.000000e-01 : f32
    %170 = vector.broadcast %cst_70 : f32 to vector<4x128xf32>
    %171 = arith.mulf %170, %169 : vector<4x128xf32>
    %172 = math.tanh %171 : vector<4x128xf32>
    %cst_71 = arith.constant 5.000000e-01 : f32
    %173 = vector.broadcast %cst_71 : f32 to vector<4x128xf32>
    %174 = arith.mulf %173, %172 : vector<4x128xf32>
    %cst_72 = arith.constant 5.000000e-01 : f32
    %175 = vector.broadcast %cst_72 : f32 to vector<4x128xf32>
    %176 = arith.addf %174, %175 : vector<4x128xf32>
    %177 = vector.extract_strided_slice %168 {offsets = [0, 128], sizes = [4, 128], strides = [1, 1]} : vector<4x512xf32> to vector<4x128xf32>
    %cst_73 = arith.constant 5.000000e-01 : f32
    %178 = vector.broadcast %cst_73 : f32 to vector<4x128xf32>
    %179 = arith.mulf %178, %177 : vector<4x128xf32>
    %180 = math.tanh %179 : vector<4x128xf32>
    %cst_74 = arith.constant 5.000000e-01 : f32
    %181 = vector.broadcast %cst_74 : f32 to vector<4x128xf32>
    %182 = arith.mulf %181, %180 : vector<4x128xf32>
    %cst_75 = arith.constant 5.000000e-01 : f32
    %183 = vector.broadcast %cst_75 : f32 to vector<4x128xf32>
    %184 = arith.addf %182, %183 : vector<4x128xf32>
    %185 = vector.extract_strided_slice %168 {offsets = [0, 256], sizes = [4, 128], strides = [1, 1]} : vector<4x512xf32> to vector<4x128xf32>
    %186 = math.tanh %185 : vector<4x128xf32>
    %187 = vector.extract_strided_slice %168 {offsets = [0, 384], sizes = [4, 128], strides = [1, 1]} : vector<4x512xf32> to vector<4x128xf32>
    %cst_76 = arith.constant 5.000000e-01 : f32
    %188 = vector.broadcast %cst_76 : f32 to vector<4x128xf32>
    %189 = arith.mulf %188, %187 : vector<4x128xf32>
    %190 = math.tanh %189 : vector<4x128xf32>
    %cst_77 = arith.constant 5.000000e-01 : f32
    %191 = vector.broadcast %cst_77 : f32 to vector<4x128xf32>
    %192 = arith.mulf %191, %190 : vector<4x128xf32>
    %cst_78 = arith.constant 5.000000e-01 : f32
    %193 = vector.broadcast %cst_78 : f32 to vector<4x128xf32>
    %194 = arith.addf %192, %193 : vector<4x128xf32>
    %195 = arith.mulf %184, %159 : vector<4x128xf32>
    %196 = arith.mulf %176, %186 : vector<4x128xf32>
    %197 = arith.addf %195, %196 : vector<4x128xf32>
    %198 = math.tanh %197 : vector<4x128xf32>
    %199 = arith.mulf %194, %198 : vector<4x128xf32>
    %200 = arith.truncf %199 : vector<4x128xf32> to vector<4x128xbf16>
    %c0_79 = arith.constant 0 : index
    %c512 = arith.constant 512 : index
    %201 = vector.load %arg5[%c0_79, %c512] : memref<4x1024xbf16, #tpu.memory_space<vmem>>, vector<4x128xbf16>
    tpu.vector_store %arg5[%c0_79, %c512], %200 {strides = array<i32>} : memref<4x1024xbf16, #tpu.memory_space<vmem>>, vector<4x128xbf16>,
    %c0_80 = arith.constant 0 : index
    %c5 = arith.constant 5 : index
    %c0_81 = arith.constant 0 : index
    %202 = vector.load %arg6[%c0_80, %c5, %c0_81] : memref<4x8x512xf32, #tpu.memory_space<vmem>>, vector<4x1x512xf32>
    %203 = vector.shape_cast %202 : vector<4x1x512xf32> to vector<4x512xf32>
    %204 = arith.truncf %199 : vector<4x128xf32> to vector<4x128xbf16>
    %cst_82 = arith.constant dense<0.000000e+00> : vector<4x512xf32>
    %205 = tpu.matmul %204, %9, %cst_82 {dimension_numbers = #tpu.dot_dimension_numbers<[1], [0], [0], [1], [0, 0, 1, 1], [], []>} : vector<4x128xbf16>, vector<128x512xbf16>, vector<4x512xf32> -> vector<4x512xf32>
    %206 = arith.addf %203, %205 : vector<4x512xf32>
    %207 = vector.extract_strided_slice %206 {offsets = [0, 0], sizes = [4, 128], strides = [1, 1]} : vector<4x512xf32> to vector<4x128xf32>
    %cst_83 = arith.constant 5.000000e-01 : f32
    %208 = vector.broadcast %cst_83 : f32 to vector<4x128xf32>
    %209 = arith.mulf %208, %207 : vector<4x128xf32>
    %210 = math.tanh %209 : vector<4x128xf32>
    %cst_84 = arith.constant 5.000000e-01 : f32
    %211 = vector.broadcast %cst_84 : f32 to vector<4x128xf32>
    %212 = arith.mulf %211, %210 : vector<4x128xf32>
    %cst_85 = arith.constant 5.000000e-01 : f32
    %213 = vector.broadcast %cst_85 : f32 to vector<4x128xf32>
    %214 = arith.addf %212, %213 : vector<4x128xf32>
    %215 = vector.extract_strided_slice %206 {offsets = [0, 128], sizes = [4, 128], strides = [1, 1]} : vector<4x512xf32> to vector<4x128xf32>
    %cst_86 = arith.constant 5.000000e-01 : f32
    %216 = vector.broadcast %cst_86 : f32 to vector<4x128xf32>
    %217 = arith.mulf %216, %215 : vector<4x128xf32>
    %218 = math.tanh %217 : vector<4x128xf32>
    %cst_87 = arith.constant 5.000000e-01 : f32
    %219 = vector.broadcast %cst_87 : f32 to vector<4x128xf32>
    %220 = arith.mulf %219, %218 : vector<4x128xf32>
    %cst_88 = arith.constant 5.000000e-01 : f32
    %221 = vector.broadcast %cst_88 : f32 to vector<4x128xf32>
    %222 = arith.addf %220, %221 : vector<4x128xf32>
    %223 = vector.extract_strided_slice %206 {offsets = [0, 256], sizes = [4, 128], strides = [1, 1]} : vector<4x512xf32> to vector<4x128xf32>
    %224 = math.tanh %223 : vector<4x128xf32>
    %225 = vector.extract_strided_slice %206 {offsets = [0, 384], sizes = [4, 128], strides = [1, 1]} : vector<4x512xf32> to vector<4x128xf32>
    %cst_89 = arith.constant 5.000000e-01 : f32
    %226 = vector.broadcast %cst_89 : f32 to vector<4x128xf32>
    %227 = arith.mulf %226, %225 : vector<4x128xf32>
    %228 = math.tanh %227 : vector<4x128xf32>
    %cst_90 = arith.constant 5.000000e-01 : f32
    %229 = vector.broadcast %cst_90 : f32 to vector<4x128xf32>
    %230 = arith.mulf %229, %228 : vector<4x128xf32>
    %cst_91 = arith.constant 5.000000e-01 : f32
    %231 = vector.broadcast %cst_91 : f32 to vector<4x128xf32>
    %232 = arith.addf %230, %231 : vector<4x128xf32>
    %233 = arith.mulf %222, %197 : vector<4x128xf32>
    %234 = arith.mulf %214, %224 : vector<4x128xf32>
    %235 = arith.addf %233, %234 : vector<4x128xf32>
    %236 = math.tanh %235 : vector<4x128xf32>
    %237 = arith.mulf %232, %236 : vector<4x128xf32>
    %238 = arith.truncf %237 : vector<4x128xf32> to vector<4x128xbf16>
    %c0_92 = arith.constant 0 : index
    %c640 = arith.constant 640 : index
    %239 = vector.load %arg5[%c0_92, %c640] : memref<4x1024xbf16, #tpu.memory_space<vmem>>, vector<4x128xbf16>
    tpu.vector_store %arg5[%c0_92, %c640], %238 {strides = array<i32>} : memref<4x1024xbf16, #tpu.memory_space<vmem>>, vector<4x128xbf16>,
    %c0_93 = arith.constant 0 : index
    %c6 = arith.constant 6 : index
    %c0_94 = arith.constant 0 : index
    %240 = vector.load %arg6[%c0_93, %c6, %c0_94] : memref<4x8x512xf32, #tpu.memory_space<vmem>>, vector<4x1x512xf32>
    %241 = vector.shape_cast %240 : vector<4x1x512xf32> to vector<4x512xf32>
    %242 = arith.truncf %237 : vector<4x128xf32> to vector<4x128xbf16>
    %cst_95 = arith.constant dense<0.000000e+00> : vector<4x512xf32>
    %243 = tpu.matmul %242, %9, %cst_95 {dimension_numbers = #tpu.dot_dimension_numbers<[1], [0], [0], [1], [0, 0, 1, 1], [], []>} : vector<4x128xbf16>, vector<128x512xbf16>, vector<4x512xf32> -> vector<4x512xf32>
    %244 = arith.addf %241, %243 : vector<4x512xf32>
    %245 = vector.extract_strided_slice %244 {offsets = [0, 0], sizes = [4, 128], strides = [1, 1]} : vector<4x512xf32> to vector<4x128xf32>
    %cst_96 = arith.constant 5.000000e-01 : f32
    %246 = vector.broadcast %cst_96 : f32 to vector<4x128xf32>
    %247 = arith.mulf %246, %245 : vector<4x128xf32>
    %248 = math.tanh %247 : vector<4x128xf32>
    %cst_97 = arith.constant 5.000000e-01 : f32
    %249 = vector.broadcast %cst_97 : f32 to vector<4x128xf32>
    %250 = arith.mulf %249, %248 : vector<4x128xf32>
    %cst_98 = arith.constant 5.000000e-01 : f32
    %251 = vector.broadcast %cst_98 : f32 to vector<4x128xf32>
    %252 = arith.addf %250, %251 : vector<4x128xf32>
    %253 = vector.extract_strided_slice %244 {offsets = [0, 128], sizes = [4, 128], strides = [1, 1]} : vector<4x512xf32> to vector<4x128xf32>
    %cst_99 = arith.constant 5.000000e-01 : f32
    %254 = vector.broadcast %cst_99 : f32 to vector<4x128xf32>
    %255 = arith.mulf %254, %253 : vector<4x128xf32>
    %256 = math.tanh %255 : vector<4x128xf32>
    %cst_100 = arith.constant 5.000000e-01 : f32
    %257 = vector.broadcast %cst_100 : f32 to vector<4x128xf32>
    %258 = arith.mulf %257, %256 : vector<4x128xf32>
    %cst_101 = arith.constant 5.000000e-01 : f32
    %259 = vector.broadcast %cst_101 : f32 to vector<4x128xf32>
    %260 = arith.addf %258, %259 : vector<4x128xf32>
    %261 = vector.extract_strided_slice %244 {offsets = [0, 256], sizes = [4, 128], strides = [1, 1]} : vector<4x512xf32> to vector<4x128xf32>
    %262 = math.tanh %261 : vector<4x128xf32>
    %263 = vector.extract_strided_slice %244 {offsets = [0, 384], sizes = [4, 128], strides = [1, 1]} : vector<4x512xf32> to vector<4x128xf32>
    %cst_102 = arith.constant 5.000000e-01 : f32
    %264 = vector.broadcast %cst_102 : f32 to vector<4x128xf32>
    %265 = arith.mulf %264, %263 : vector<4x128xf32>
    %266 = math.tanh %265 : vector<4x128xf32>
    %cst_103 = arith.constant 5.000000e-01 : f32
    %267 = vector.broadcast %cst_103 : f32 to vector<4x128xf32>
    %268 = arith.mulf %267, %266 : vector<4x128xf32>
    %cst_104 = arith.constant 5.000000e-01 : f32
    %269 = vector.broadcast %cst_104 : f32 to vector<4x128xf32>
    %270 = arith.addf %268, %269 : vector<4x128xf32>
    %271 = arith.mulf %260, %235 : vector<4x128xf32>
    %272 = arith.mulf %252, %262 : vector<4x128xf32>
    %273 = arith.addf %271, %272 : vector<4x128xf32>
    %274 = math.tanh %273 : vector<4x128xf32>
    %275 = arith.mulf %270, %274 : vector<4x128xf32>
    %276 = arith.truncf %275 : vector<4x128xf32> to vector<4x128xbf16>
    %c0_105 = arith.constant 0 : index
    %c768 = arith.constant 768 : index
    %277 = vector.load %arg5[%c0_105, %c768] : memref<4x1024xbf16, #tpu.memory_space<vmem>>, vector<4x128xbf16>
    tpu.vector_store %arg5[%c0_105, %c768], %276 {strides = array<i32>} : memref<4x1024xbf16, #tpu.memory_space<vmem>>, vector<4x128xbf16>,
    %c0_106 = arith.constant 0 : index
    %c7 = arith.constant 7 : index
    %c0_107 = arith.constant 0 : index
    %278 = vector.load %arg6[%c0_106, %c7, %c0_107] : memref<4x8x512xf32, #tpu.memory_space<vmem>>, vector<4x1x512xf32>
    %279 = vector.shape_cast %278 : vector<4x1x512xf32> to vector<4x512xf32>
    %280 = arith.truncf %275 : vector<4x128xf32> to vector<4x128xbf16>
    %cst_108 = arith.constant dense<0.000000e+00> : vector<4x512xf32>
    %281 = tpu.matmul %280, %9, %cst_108 {dimension_numbers = #tpu.dot_dimension_numbers<[1], [0], [0], [1], [0, 0, 1, 1], [], []>} : vector<4x128xbf16>, vector<128x512xbf16>, vector<4x512xf32> -> vector<4x512xf32>
    %282 = arith.addf %279, %281 : vector<4x512xf32>
    %283 = vector.extract_strided_slice %282 {offsets = [0, 0], sizes = [4, 128], strides = [1, 1]} : vector<4x512xf32> to vector<4x128xf32>
    %cst_109 = arith.constant 5.000000e-01 : f32
    %284 = vector.broadcast %cst_109 : f32 to vector<4x128xf32>
    %285 = arith.mulf %284, %283 : vector<4x128xf32>
    %286 = math.tanh %285 : vector<4x128xf32>
    %cst_110 = arith.constant 5.000000e-01 : f32
    %287 = vector.broadcast %cst_110 : f32 to vector<4x128xf32>
    %288 = arith.mulf %287, %286 : vector<4x128xf32>
    %cst_111 = arith.constant 5.000000e-01 : f32
    %289 = vector.broadcast %cst_111 : f32 to vector<4x128xf32>
    %290 = arith.addf %288, %289 : vector<4x128xf32>
    %291 = vector.extract_strided_slice %282 {offsets = [0, 128], sizes = [4, 128], strides = [1, 1]} : vector<4x512xf32> to vector<4x128xf32>
    %cst_112 = arith.constant 5.000000e-01 : f32
    %292 = vector.broadcast %cst_112 : f32 to vector<4x128xf32>
    %293 = arith.mulf %292, %291 : vector<4x128xf32>
    %294 = math.tanh %293 : vector<4x128xf32>
    %cst_113 = arith.constant 5.000000e-01 : f32
    %295 = vector.broadcast %cst_113 : f32 to vector<4x128xf32>
    %296 = arith.mulf %295, %294 : vector<4x128xf32>
    %cst_114 = arith.constant 5.000000e-01 : f32
    %297 = vector.broadcast %cst_114 : f32 to vector<4x128xf32>
    %298 = arith.addf %296, %297 : vector<4x128xf32>
    %299 = vector.extract_strided_slice %282 {offsets = [0, 256], sizes = [4, 128], strides = [1, 1]} : vector<4x512xf32> to vector<4x128xf32>
    %300 = math.tanh %299 : vector<4x128xf32>
    %301 = vector.extract_strided_slice %282 {offsets = [0, 384], sizes = [4, 128], strides = [1, 1]} : vector<4x512xf32> to vector<4x128xf32>
    %cst_115 = arith.constant 5.000000e-01 : f32
    %302 = vector.broadcast %cst_115 : f32 to vector<4x128xf32>
    %303 = arith.mulf %302, %301 : vector<4x128xf32>
    %304 = math.tanh %303 : vector<4x128xf32>
    %cst_116 = arith.constant 5.000000e-01 : f32
    %305 = vector.broadcast %cst_116 : f32 to vector<4x128xf32>
    %306 = arith.mulf %305, %304 : vector<4x128xf32>
    %cst_117 = arith.constant 5.000000e-01 : f32
    %307 = vector.broadcast %cst_117 : f32 to vector<4x128xf32>
    %308 = arith.addf %306, %307 : vector<4x128xf32>
    %309 = arith.mulf %298, %273 : vector<4x128xf32>
    %310 = arith.mulf %290, %300 : vector<4x128xf32>
    %311 = arith.addf %309, %310 : vector<4x128xf32>
    %312 = math.tanh %311 : vector<4x128xf32>
    %313 = arith.mulf %308, %312 : vector<4x128xf32>
    %314 = arith.truncf %313 : vector<4x128xf32> to vector<4x128xbf16>
    %c0_118 = arith.constant 0 : index
    %c896 = arith.constant 896 : index
    %315 = vector.load %arg5[%c0_118, %c896] : memref<4x1024xbf16, #tpu.memory_space<vmem>>, vector<4x128xbf16>
    tpu.vector_store %arg5[%c0_118, %c896], %314 {strides = array<i32>} : memref<4x1024xbf16, #tpu.memory_space<vmem>>, vector<4x128xbf16>,
    return
  }
  func.func @transform_0(%arg0: i32) -> (i32, i32, i32) {
    %c0_i32 = arith.constant 0 : i32
    %c0_i32_0 = arith.constant 0 : i32
    %c0_i32_1 = arith.constant 0 : i32
    return %arg0, %c0_i32, %c0_i32_0 : i32, i32, i32
  }
  func.func @transform_1(%arg0: i32) -> (i32, i32) {
    %c0_i32 = arith.constant 0 : i32
    %c0_i32_0 = arith.constant 0 : i32
    %c0_i32_1 = arith.constant 0 : i32
    return %c0_i32, %c0_i32_0 : i32, i32
  }
  func.func @transform_2(%arg0: i32) -> (i32, i32) {
    %c0_i32 = arith.constant 0 : i32
    %c0_i32_0 = arith.constant 0 : i32
    %c0_i32_1 = arith.constant 0 : i32
    return %c0_i32, %c0_i32_0 : i32, i32
  }
  func.func @transform_3(%arg0: i32) -> (i32, i32) {
    %c0_i32 = arith.constant 0 : i32
    %c0_i32_0 = arith.constant 0 : i32
    %c0_i32_1 = arith.constant 0 : i32
    return %c0_i32, %c0_i32_0 : i32, i32
  }
  func.func @transform_4(%arg0: i32) -> (i32, i32) {
    %c0_i32 = arith.constant 0 : i32
    %c0_i32_0 = arith.constant 0 : i32
    return %arg0, %c0_i32 : i32, i32
  }
}

module attributes {stable_mosaic.version = 11 : i64} {
  func.func @matmul_bias_kernel(%arg0: i32, %arg1: i32, %arg2: memref<32x128xbf16, #tpu.memory_space<vmem>>, %arg3: memref<128x256xbf16, #tpu.memory_space<vmem>>, %arg4: memref<1x256xf32, #tpu.memory_space<vmem>>, %arg5: memref<32x256xf32, #tpu.memory_space<vmem>>) attributes {dimension_semantics = [#tpu.dimension_semantics<parallel>, #tpu.dimension_semantics<parallel>], iteration_bounds = array<i64: 1, 1>, scalar_prefetch = 0 : i64, scratch_operands = 0 : i64, tpu.core_type = #tpu.core_type<tc>, window_params = [{transform_indices = @transform_0, window_bounds = array<i64: 32, 128>}, {transform_indices = @transform_1, window_bounds = array<i64: 128, 256>}, {transform_indices = @transform_2, window_bounds = array<i64: 1, 256>}, {transform_indices = @transform_3, window_bounds = array<i64: 32, 256>}]} {
    %c0 = arith.constant 0 : index
    %c0_0 = arith.constant 0 : index
    %0 = vector.load %arg2[%c0, %c0_0] : memref<32x128xbf16, #tpu.memory_space<vmem>>, vector<32x128xbf16>
    %c0_1 = arith.constant 0 : index
    %c0_2 = arith.constant 0 : index
    %1 = vector.load %arg3[%c0_1, %c0_2] : memref<128x256xbf16, #tpu.memory_space<vmem>>, vector<128x256xbf16>
    %cst = arith.constant dense<0.000000e+00> : vector<32x256xf32>
    %2 = tpu.matmul %0, %1, %cst {dimension_numbers = #tpu.dot_dimension_numbers<[1], [0], [0], [1], [0, 0, 1, 1], [], []>} : vector<32x128xbf16>, vector<128x256xbf16>, vector<32x256xf32> -> vector<32x256xf32>
    %c0_3 = arith.constant 0 : index
    %c0_4 = arith.constant 0 : index
    %3 = vector.load %arg4[%c0_3, %c0_4] : memref<1x256xf32, #tpu.memory_space<vmem>>, vector<1x256xf32>
    %4 = vector.broadcast %3 : vector<1x256xf32> to vector<32x256xf32>
    %5 = arith.addf %2, %4 : vector<32x256xf32>
    %c0_5 = arith.constant 0 : index
    %c0_6 = arith.constant 0 : index
    %6 = vector.load %arg5[%c0_5, %c0_6] : memref<32x256xf32, #tpu.memory_space<vmem>>, vector<32x256xf32>
    tpu.vector_store %arg5[%c0_5, %c0_6], %5 {strides = array<i32>} : memref<32x256xf32, #tpu.memory_space<vmem>>, vector<32x256xf32>,
    return
  }
  func.func @transform_0(%arg0: i32, %arg1: i32) -> (i32, i32) {
    %c0_i32 = arith.constant 0 : i32
    %c0_i32_0 = arith.constant 0 : i32
    return %arg1, %c0_i32 : i32, i32
  }
  func.func @transform_1(%arg0: i32, %arg1: i32) -> (i32, i32) {
    %c0_i32 = arith.constant 0 : i32
    %c0_i32_0 = arith.constant 0 : i32
    return %c0_i32, %arg0 : i32, i32
  }
  func.func @transform_2(%arg0: i32, %arg1: i32) -> (i32, i32) {
    %c0_i32 = arith.constant 0 : i32
    %c0_i32_0 = arith.constant 0 : i32
    return %c0_i32, %arg0 : i32, i32
  }
  func.func @transform_3(%arg0: i32, %arg1: i32) -> (i32, i32) {
    %c0_i32 = arith.constant 0 : i32
    return %arg1, %arg0 : i32, i32
  }
}

</mosaic_0001>

<llo_original>
// kernel: decoder_rnn_forward.3
$region0: #{decoder_rnn_forward.3}
  #allocation0 [shape = 'u32[]', space=smem, size = 0x4, offset = 0x4, fixed_abs, tag = 'smem constant byte address 0x4 - core index']
  #allocation1 [shape = 'u32[144,128]{1,0:T(1,128)}', space=vmem, size = 0x12000, scoped, tag = 'internal scratch']
  %s0 = inlined_call_operand.vmem [shape: bf16[32,128], index: 0, kind: input, shape index: {}]
  %s1 = inlined_call_operand.vmem [shape: bf16[128,256], index: 1, kind: input, shape index: {}]
  %s2 = inlined_call_operand.vmem [shape: f32[1,256], index: 2, kind: input, shape index: {}]
  %s3 = inlined_call_operand.hbm [shape: f32[32,256], index: 3, kind: output, shape index: {}]
  %s4 = sld [smem:[#allocation0]]
  $region22: #{decoder_rnn_forward.3} parent=0
    _
  %s6 = ssub.s32 1, %s4
  %s7 = scalar_select 0, %s6, %s4
  $region1: #{decoder_rnn_forward.3} parent=0
    #allocation2 [shape = 'u8[32768]{0}', space=vmem, size = 0x8000, scoped, tag = 'output window, operand 0, single buffered']
    #allocation3 [shape = 's32[1]{0}', space=sflag, size = 0x4, scoped, tag = 'scoped memory for decoder_rnn_forward.3']
    %8 = vsyncpa [#allocation3], 0
    // Predicated region
    $region2: #{decoder_rnn_forward.3} parent=1 // pred_check
      _
    $region3: #{decoder_rnn_forward.3} parent=1 // pred_check_branch
      %10 = sbr.rel (0) target = $region5
    $region4: #{decoder_rnn_forward.3} parent=1 // pred_region
      _
    $region5: #{decoder_rnn_forward.3} parent=1 // pred_fallthru
      _
    // Predicated region
    $region6: #{decoder_rnn_forward.3} parent=1 // pred_check
      _
    $region7: #{decoder_rnn_forward.3} parent=1 // pred_check_branch
      %12 = sbr.rel (0) target = $region9
    $region8: #{decoder_rnn_forward.3} parent=1 // pred_region
      _
    $region9: #{decoder_rnn_forward.3} parent=1 // pred_fallthru
      _
    // Predicated region
    $region10: #{decoder_rnn_forward.3} parent=1 // pred_check
      _
    $region11: #{decoder_rnn_forward.3} parent=1 // pred_check_branch
      %14 = sbr.rel (0) target = $region13
    $region12: #{decoder_rnn_forward.3} parent=1 // pred_region
      _
    $region13: #{decoder_rnn_forward.3} parent=1 // pred_fallthru
      _
    %v16 = vld [vmem:[%s0] sm:$0xf]
    %v17 = vld [vmem:[%s0 + $0x4] sm:$0xf]
    %v18 = vld [vmem:[%s0 + $0x8] sm:$0xf]
    %v19 = vld [vmem:[%s0 + $0xc] sm:$0xf]
    %v20 = vld [vmem:[%s1] sm:$0xff]
    %v21 = vld [vmem:[%s1 + $0x8] sm:$0xff]
    %v22 = vld [vmem:[%s1 + $0x10] sm:$0xff]
    %v23 = vld [vmem:[%s1 + $0x18] sm:$0xff]
    %v24 = vld [vmem:[%s1 + $0x20] sm:$0xff]
    %v25 = vld [vmem:[%s1 + $0x28] sm:$0xff]
    %v26 = vld [vmem:[%s1 + $0x30] sm:$0xff]
    %v27 = vld [vmem:[%s1 + $0x38] sm:$0xff]
    %v28 = vld [vmem:[%s1 + $0x40] sm:$0xff]
    %v29 = vld [vmem:[%s1 + $0x48] sm:$0xff]
    %v30 = vld [vmem:[%s1 + $0x50] sm:$0xff]
    %v31 = vld [vmem:[%s1 + $0x58] sm:$0xff]
    %v32 = vld [vmem:[%s1 + $0x60] sm:$0xff]
    %v33 = vld [vmem:[%s1 + $0x68] sm:$0xff]
    %v34 = vld [vmem:[%s1 + $0x70] sm:$0xff]
    %v35 = vld [vmem:[%s1 + $0x78] sm:$0xff]
    %v36 = vld [vmem:[%s2] sm:$0x3]
    %v38 = vlaneseq
    %v39 = vshrl.u32 %v38, 7
    %v40 = vsub.s32 0, %v39
    %v41 = vrot.slane %v36, %v40
    %v42 = vlaneseq
    %v43 = vshrl.u32 %v42, 7
    %v44 = vsub.s32 1, %v43
    %v45 = vrot.slane %v36, %v44
    %v52 = vunpack.c.l.b16 %v16
    %v53 = vunpack.c.l.b16 %v17
    %v54 = vunpack.c.l.b16 %v18
    %v55 = vunpack.c.l.b16 %v19
    %v56 = vpack.c.b16 %v53, %v52
    %v57 = vpack.c.b16 %v55, %v54
    %v76 = vunpack.c.l.b16 %v20
    %v77 = vunpack.c.h.b16 %v20
    %v78 = vunpack.c.l.b16 %v21
    %v79 = vunpack.c.h.b16 %v21
    %v80 = vunpack.c.l.b16 %v22
    %v81 = vunpack.c.h.b16 %v22
    %v82 = vunpack.c.l.b16 %v23
    %v83 = vunpack.c.h.b16 %v23
    %v84 = vunpack.c.l.b16 %v24
    %v85 = vunpack.c.h.b16 %v24
    %v86 = vunpack.c.l.b16 %v25
    %v87 = vunpack.c.h.b16 %v25
    %v88 = vunpack.c.l.b16 %v26
    %v89 = vunpack.c.h.b16 %v26
    %v90 = vunpack.c.l.b16 %v27
    %v91 = vunpack.c.h.b16 %v27
    %v92 = vunpack.c.l.b16 %v28
    %v93 = vunpack.c.h.b16 %v28
    %v94 = vunpack.c.l.b16 %v29
    %v95 = vunpack.c.h.b16 %v29
    %v96 = vunpack.c.l.b16 %v30
    %v97 = vunpack.c.h.b16 %v30
    %v98 = vunpack.c.l.b16 %v31
    %v99 = vunpack.c.h.b16 %v31
    %v100 = vunpack.c.l.b16 %v32
    %v101 = vunpack.c.h.b16 %v32
    %v102 = vunpack.c.l.b16 %v33
    %v103 = vunpack.c.h.b16 %v33
    %v104 = vunpack.c.l.b16 %v34
    %v105 = vunpack.c.h.b16 %v34
    %v106 = vunpack.c.l.b16 %v35
    %v107 = vunpack.c.h.b16 %v35
    %v108 = vpack.c.b16 %v78, %v76
    %v109 = vpack.c.b16 %v79, %v77
    %v110 = vpack.c.b16 %v82, %v80
    %v111 = vpack.c.b16 %v83, %v81
    %v112 = vpack.c.b16 %v86, %v84
    %v113 = vpack.c.b16 %v87, %v85
    %v114 = vpack.c.b16 %v90, %v88
    %v115 = vpack.c.b16 %v91, %v89
    %v116 = vpack.c.b16 %v94, %v92
    %v117 = vpack.c.b16 %v95, %v93
    %v118 = vpack.c.b16 %v98, %v96
    %v119 = vpack.c.b16 %v99, %v97
    %v120 = vpack.c.b16 %v102, %v100
    %v121 = vpack.c.b16 %v103, %v101
    %v122 = vpack.c.b16 %v106, %v104
    %v123 = vpack.c.b16 %v107, %v105
    %140 = vmatprep.subr.bf16.mxu0 %v109
    %141 = vmatpush1.bf16.msra.mxu0 %v108
    %142 = vmatprep.subr.bf16.mxu0 %v111
    %143 = vmatpush1.bf16.msra.mxu0 %v110
    %144 = vmatprep.subr.bf16.mxu0 %v113
    %145 = vmatpush1.bf16.msra.mxu0 %v112
    %146 = vmatprep.subr.bf16.mxu0 %v115
    %147 = vmatpush1.bf16.msra.mxu0 %v114
    %148 = vmatprep.subr.bf16.mxu0 %v117
    %149 = vmatpush1.bf16.msra.mxu0 %v116
    %150 = vmatprep.subr.bf16.mxu0 %v119
    %151 = vmatpush1.bf16.msra.mxu0 %v118
    %152 = vmatprep.subr.bf16.mxu0 %v121
    %153 = vmatpush1.bf16.msra.mxu0 %v120
    %154 = vmatprep.subr.bf16.mxu0 %v123
    %155 = vmatpush1.bf16.msra.mxu0 %v122
    %156 = vmatprep.subr.bf16.mxu0 0
    %157 = vmatpush1.bf16.msra.mxu0 0
    %158 = vmatprep.subr.bf16.mxu0 0
    %159 = vmatpush1.bf16.msra.mxu0 0
    %160 = vmatprep.subr.bf16.mxu0 0
    %161 = vmatpush1.bf16.msra.mxu0 0
    %162 = vmatprep.subr.bf16.mxu0 0
    %163 = vmatpush1.bf16.msra.mxu0 0
    %164 = vmatprep.subr.bf16.mxu0 0
    %165 = vmatpush1.bf16.msra.mxu0 0
    %166 = vmatprep.subr.bf16.mxu0 0
    %167 = vmatpush1.bf16.msra.mxu0 0
    %168 = vmatprep.subr.bf16.mxu0 0
    %169 = vmatpush1.bf16.msra.mxu0 0
    %170 = vmatprep.subr.bf16.mxu0 0
    %171 = vmatpush1.bf16.msra.mxu0 0
    %172 = vmatprep.mubr.bf16.mxu0 0
    %173 = vmatmul.mubr.bf16.gmra.mrb[0].mxu0 %v56
    %v174 = vpop.f32.mrb[0].mxu0
    %v175 = vadd.f32 %v41, %v174
    %v176 = vpop.f32.mrb[0].mxu0
    %v177 = vadd.f32 %v45, %v176
    %v178 = vpop.f32.mrb[0].mxu0
    %v179 = vadd.f32 %v41, %v178
    %v180 = vpop.f32.mrb[0].mxu0
    %v181 = vadd.f32 %v45, %v180
    %182 = vmatprep.mubr.bf16.mxu0 0
    %183 = vmatmul.mubr.bf16.gmra.mrb[0].mxu0 %v57
    %v184 = vpop.f32.mrb[0].mxu0
    %v185 = vadd.f32 %v41, %v184
    %v186 = vpop.f32.mrb[0].mxu0
    %v187 = vadd.f32 %v45, %v186
    %v188 = vpop.f32.mrb[0].mxu0
    %v189 = vadd.f32 %v41, %v188
    %v190 = vpop.f32.mrb[0].mxu0
    %v191 = vadd.f32 %v45, %v190
    %192 = vdwg.mxu0
    %193 = vst [vmem:[#allocation2] sm:$0xff] %v175
    %194 = vst [vmem:[#allocation2 + $0x8] sm:$0xff] %v177
    %195 = vst [vmem:[#allocation2 + $0x10] sm:$0xff] %v179
    %196 = vst [vmem:[#allocation2 + $0x18] sm:$0xff] %v181
    %197 = vst [vmem:[#allocation2 + $0x20] sm:$0xff] %v185
    %198 = vst [vmem:[#allocation2 + $0x28] sm:$0xff] %v187
    %199 = vst [vmem:[#allocation2 + $0x30] sm:$0xff] %v189
    %200 = vst [vmem:[#allocation2 + $0x38] sm:$0xff] %v191
    // Predicated region
    $region14: #{decoder_rnn_forward.3} parent=1 // pred_check
      _
    $region15: #{decoder_rnn_forward.3} parent=1 // pred_check_branch
      %202 = sbr.rel (0) target = $region17
    $region16: #{decoder_rnn_forward.3} parent=1 // pred_region
      %s204 = ssub.s32 1024, 1024
      %205 = vsyncadd [#allocation3], %s204
      %s206 = sshll.u32 [#allocation2], 4
      %s207 = int_to_ptr.vmem [resolvable:$true] %s206
      %212 = dma.vmem_to_hbm [thread:$0]  %s207, 1024, %s3, [#allocation3], 256, 256, 16
    $region17: #{decoder_rnn_forward.3} parent=1 // pred_fallthru
      _
    // Predicated region
    $region18: #{decoder_rnn_forward.3} parent=1 // pred_check
      _
    $region19: #{decoder_rnn_forward.3} parent=1 // pred_check_branch
      %214 = sbr.rel (0) target = $region21
    $region20: #{decoder_rnn_forward.3} parent=1 // pred_region
      %215 = dma.done [#allocation3], 1024
    $region21: #{decoder_rnn_forward.3} parent=1 // pred_fallthru
      _
    %216 = vsyncpa [#allocation3], 1

// kernel: decoder_rnn_forward.2
$region0: #{decoder_rnn_forward.2}
  #allocation0 [shape = 'u32[]', space=smem, size = 0x4, offset = 0x4, fixed_abs, tag = 'smem constant byte address 0x4 - core index']
  #allocation1 [shape = 'u32[144,128]{1,0:T(1,128)}', space=vmem, size = 0x12000, scoped, tag = 'internal scratch']
  #allocation2 [shape = 'f32[4,8,512]{2,1,0:T(8,128)}', space=vmem, size = 0x10000, scoped, tag = 'scratch operand']
  %s0 = inlined_call_operand.vmem [shape: bf16[4,8,64], index: 0, kind: input, shape index: {}]
  %s1 = inlined_call_operand.vmem [shape: bf16[64,512], index: 1, kind: input, shape index: {}]
  %s2 = inlined_call_operand.vmem [shape: bf16[128,512], index: 2, kind: input, shape index: {}]
  %s3 = inlined_call_operand.vmem [shape: f32[1,512], index: 3, kind: input, shape index: {}]
  %s4 = inlined_call_operand.vmem [shape: bf16[4,1024], index: 4, kind: output, shape index: {}]
  %s5 = sld [smem:[#allocation0]]
  $region26: #{decoder_rnn_forward.2} parent=0
    _
  %s7 = ssub.s32 1, %s5
  %s8 = scalar_select 0, %s7, %s5
  // Predicated region
  $region2: #{decoder_rnn_forward.2} parent=0 // pred_check
    _
  $region3: #{decoder_rnn_forward.2} parent=0 // pred_check_branch
    %10 = sbr.rel (0) target = $region5
  $region4: #{decoder_rnn_forward.2} parent=0 // pred_region
    _
  $region5: #{decoder_rnn_forward.2} parent=0 // pred_fallthru
    _
  // Predicated region
  $region6: #{decoder_rnn_forward.2} parent=0 // pred_check
    _
  $region7: #{decoder_rnn_forward.2} parent=0 // pred_check_branch
    %12 = sbr.rel (0) target = $region9
  $region8: #{decoder_rnn_forward.2} parent=0 // pred_region
    _
  $region9: #{decoder_rnn_forward.2} parent=0 // pred_fallthru
    _
  // Predicated region
  $region10: #{decoder_rnn_forward.2} parent=0 // pred_check
    _
  $region11: #{decoder_rnn_forward.2} parent=0 // pred_check_branch
    %14 = sbr.rel (0) target = $region13
  $region12: #{decoder_rnn_forward.2} parent=0 // pred_region
    _
  $region13: #{decoder_rnn_forward.2} parent=0 // pred_fallthru
    _
  // Predicated region
  $region14: #{decoder_rnn_forward.2} parent=0 // pred_check
    _
  $region15: #{decoder_rnn_forward.2} parent=0 // pred_check_branch
    %16 = sbr.rel (0) target = $region17
  $region16: #{decoder_rnn_forward.2} parent=0 // pred_region
    _
  $region17: #{decoder_rnn_forward.2} parent=0 // pred_fallthru
    _
  %v18 = vld [vmem:[%s0] sm:$0xf]
  %v19 = vld [vmem:[%s0 + $0x4] sm:$0xf]
  %v20 = vld [vmem:[%s0 + $0x8] sm:$0xf]
  %v21 = vld [vmem:[%s0 + $0xc] sm:$0xf]
  %v22 = vld [vmem:[%s1] sm:$0xff]
  %v23 = vld [vmem:[%s1 + $0x8] sm:$0xff]
  %v24 = vld [vmem:[%s1 + $0x10] sm:$0xff]
  %v25 = vld [vmem:[%s1 + $0x18] sm:$0xff]
  %v26 = vld [vmem:[%s1 + $0x20] sm:$0xff]
  %v27 = vld [vmem:[%s1 + $0x28] sm:$0xff]
  %v28 = vld [vmem:[%s1 + $0x30] sm:$0xff]
  %v29 = vld [vmem:[%s1 + $0x38] sm:$0xff]
  %v30 = vld [vmem:[%s1 + $0x40] sm:$0xff]
  %v31 = vld [vmem:[%s1 + $0x48] sm:$0xff]
  %v32 = vld [vmem:[%s1 + $0x50] sm:$0xff]
  %v33 = vld [vmem:[%s1 + $0x58] sm:$0xff]
  %v34 = vld [vmem:[%s1 + $0x60] sm:$0xff]
  %v35 = vld [vmem:[%s1 + $0x68] sm:$0xff]
  %v36 = vld [vmem:[%s1 + $0x70] sm:$0xff]
  %v37 = vld [vmem:[%s1 + $0x78] sm:$0xff]
  %v38 = vld [vmem:[%s3] sm:$0xf]
  %v40 = vlaneseq
  %v41 = vshrl.u32 %v40, 7
  %v42 = vsub.s32 0, %v41
  %v43 = vrot.slane %v38, %v42
  %v44 = vlaneseq
  %v45 = vshrl.u32 %v44, 7
  %v46 = vsub.s32 1, %v45
  %v47 = vrot.slane %v38, %v46
  %v48 = vlaneseq
  %v49 = vshrl.u32 %v48, 7
  %v50 = vsub.s32 2, %v49
  %v51 = vrot.slane %v38, %v50
  %v52 = vlaneseq
  %v53 = vshrl.u32 %v52, 7
  %v54 = vsub.s32 3, %v53
  %v55 = vrot.slane %v38, %v54
  %v64 = vunpack.c.l.b16 %v18
  %v65 = vunpack.c.l.b16 %v19
  %v66 = vunpack.c.l.b16 %v20
  %v67 = vunpack.c.l.b16 %v21
  %v68 = vpack.c.b16 %v65, %v64
  %v69 = vpack.c.b16 %v67, %v66
  %v86 = vunpack.c.l.b16 %v22
  %v87 = vunpack.c.h.b16 %v22
  %v88 = vunpack.c.l.b16 %v23
  %v89 = vunpack.c.h.b16 %v23
  %v90 = vunpack.c.l.b16 %v24
  %v91 = vunpack.c.h.b16 %v24
  %v92 = vunpack.c.l.b16 %v25
  %v93 = vunpack.c.h.b16 %v25
  %v94 = vunpack.c.l.b16 %v26
  %v95 = vunpack.c.h.b16 %v26
  %v96 = vunpack.c.l.b16 %v27
  %v97 = vunpack.c.h.b16 %v27
  %v98 = vunpack.c.l.b16 %v28
  %v99 = vunpack.c.h.b16 %v28
  %v100 = vunpack.c.l.b16 %v29
  %v101 = vunpack.c.h.b16 %v29
  %v102 = vunpack.c.l.b16 %v30
  %v103 = vunpack.c.h.b16 %v30
  %v104 = vunpack.c.l.b16 %v31
  %v105 = vunpack.c.h.b16 %v31
  %v106 = vunpack.c.l.b16 %v32
  %v107 = vunpack.c.h.b16 %v32
  %v108 = vunpack.c.l.b16 %v33
  %v109 = vunpack.c.h.b16 %v33
  %v110 = vunpack.c.l.b16 %v34
  %v111 = vunpack.c.h.b16 %v34
  %v112 = vunpack.c.l.b16 %v35
  %v113 = vunpack.c.h.b16 %v35
  %v114 = vunpack.c.l.b16 %v36
  %v115 = vunpack.c.h.b16 %v36
  %v116 = vunpack.c.l.b16 %v37
  %v117 = vunpack.c.h.b16 %v37
  %v118 = vpack.c.b16 %v90, %v86
  %v119 = vpack.c.b16 %v91, %v87
  %v120 = vpack.c.b16 %v92, %v88
  %v121 = vpack.c.b16 %v93, %v89
  %v122 = vpack.c.b16 %v98, %v94
  %v123 = vpack.c.b16 %v99, %v95
  %v124 = vpack.c.b16 %v100, %v96
  %v125 = vpack.c.b16 %v101, %v97
  %v126 = vpack.c.b16 %v106, %v102
  %v127 = vpack.c.b16 %v107, %v103
  %v128 = vpack.c.b16 %v108, %v104
  %v129 = vpack.c.b16 %v109, %v105
  %v130 = vpack.c.b16 %v114, %v110
  %v131 = vpack.c.b16 %v115, %v111
  %v132 = vpack.c.b16 %v116, %v112
  %v133 = vpack.c.b16 %v117, %v113
  %vm150 = vcmask 523264
  %v152 = vsel %vm150, %v68, 0
  %v155 = vsel %vm150, %v69, 0
  %157 = vmatprep.subr.bf16.mxu0 %v119
  %158 = vmatpush1.bf16.msra.mxu0 %v118
  %159 = vmatprep.subr.bf16.mxu0 %v123
  %160 = vmatpush1.bf16.msra.mxu0 %v122
  %161 = vmatprep.subr.bf16.mxu0 %v127
  %162 = vmatpush1.bf16.msra.mxu0 %v126
  %163 = vmatprep.subr.bf16.mxu0 %v131
  %164 = vmatpush1.bf16.msra.mxu0 %v130
  %165 = vmatprep.subr.bf16.mxu0 0
  %166 = vmatpush1.bf16.msra.mxu0 0
  %167 = vmatprep.subr.bf16.mxu0 0
  %168 = vmatpush1.bf16.msra.mxu0 0
  %169 = vmatprep.subr.bf16.mxu0 0
  %170 = vmatpush1.bf16.msra.mxu0 0
  %171 = vmatprep.subr.bf16.mxu0 0
  %172 = vmatpush1.bf16.msra.mxu0 0
  %173 = vmatprep.subr.bf16.mxu0 0
  %174 = vmatpush1.bf16.msra.mxu0 0
  %175 = vmatprep.subr.bf16.mxu0 0
  %176 = vmatpush1.bf16.msra.mxu0 0
  %177 = vmatprep.subr.bf16.mxu0 0
  %178 = vmatpush1.bf16.msra.mxu0 0
  %179 = vmatprep.subr.bf16.mxu0 0
  %180 = vmatpush1.bf16.msra.mxu0 0
  %181 = vmatprep.subr.bf16.mxu0 0
  %182 = vmatpush1.bf16.msra.mxu0 0
  %183 = vmatprep.subr.bf16.mxu0 0
  %184 = vmatpush1.bf16.msra.mxu0 0
  %185 = vmatprep.subr.bf16.mxu0 0
  %186 = vmatpush1.bf16.msra.mxu0 0
  %187 = vmatprep.subr.bf16.mxu0 0
  %188 = vmatpush1.bf16.msra.mxu0 0
  %189 = vmatprep.mubr.bf16.mxu0 0
  %190 = vmatmul.mubr.bf16.gmra.mrb[0].mxu0 %v152
  %v191 = vpop.f32.mrb[0].mxu0
  %v192 = vadd.f32 %v43, %v191
  %v193 = vpop.f32.mrb[0].mxu0
  %v194 = vadd.f32 %v47, %v193
  %v195 = vpop.f32.mrb[0].mxu0
  %v196 = vadd.f32 %v43, %v195
  %v197 = vpop.f32.mrb[0].mxu0
  %v198 = vadd.f32 %v47, %v197
  %199 = vmatprep.mubr.bf16.mxu0 0
  %200 = vmatmul.mubr.bf16.gmra.mrb[0].mxu0 %v155
  %v201 = vpop.f32.mrb[0].mxu0
  %v202 = vadd.f32 %v43, %v201
  %v203 = vpop.f32.mrb[0].mxu0
  %v204 = vadd.f32 %v47, %v203
  %v205 = vpop.f32.mrb[0].mxu0
  %v206 = vadd.f32 %v43, %v205
  %v207 = vpop.f32.mrb[0].mxu0
  %v208 = vadd.f32 %v47, %v207
  %209 = vdwg.mxu0
  %210 = vmatprep.subr.bf16.mxu0 %v121
  %211 = vmatpush1.bf16.msra.mxu0 %v120
  %212 = vmatprep.subr.bf16.mxu0 %v125
  %213 = vmatpush1.bf16.msra.mxu0 %v124
  %214 = vmatprep.subr.bf16.mxu0 %v129
  %215 = vmatpush1.bf16.msra.mxu0 %v128
  %216 = vmatprep.subr.bf16.mxu0 %v133
  %217 = vmatpush1.bf16.msra.mxu0 %v132
  %218 = vmatprep.subr.bf16.mxu0 0
  %219 = vmatpush1.bf16.msra.mxu0 0
  %220 = vmatprep.subr.bf16.mxu0 0
  %221 = vmatpush1.bf16.msra.mxu0 0
  %222 = vmatprep.subr.bf16.mxu0 0
  %223 = vmatpush1.bf16.msra.mxu0 0
  %224 = vmatprep.subr.bf16.mxu0 0
  %225 = vmatpush1.bf16.msra.mxu0 0
  %226 = vmatprep.subr.bf16.mxu0 0
  %227 = vmatpush1.bf16.msra.mxu0 0
  %228 = vmatprep.subr.bf16.mxu0 0
  %229 = vmatpush1.bf16.msra.mxu0 0
  %230 = vmatprep.subr.bf16.mxu0 0
  %231 = vmatpush1.bf16.msra.mxu0 0
  %232 = vmatprep.subr.bf16.mxu0 0
  %233 = vmatpush1.bf16.msra.mxu0 0
  %234 = vmatprep.subr.bf16.mxu0 0
  %235 = vmatpush1.bf16.msra.mxu0 0
  %236 = vmatprep.subr.bf16.mxu0 0
  %237 = vmatpush1.bf16.msra.mxu0 0
  %238 = vmatprep.subr.bf16.mxu0 0
  %239 = vmatpush1.bf16.msra.mxu0 0
  %240 = vmatprep.subr.bf16.mxu0 0
  %241 = vmatpush1.bf16.msra.mxu0 0
  %242 = vmatprep.mubr.bf16.mxu0 0
  %243 = vmatmul.mubr.bf16.gmra.mrb[0].mxu0 %v152
  %v244 = vpop.f32.mrb[0].mxu0
  %v245 = vadd.f32 %v51, %v244
  %v246 = vpop.f32.mrb[0].mxu0
  %v247 = vadd.f32 %v55, %v246
  %v248 = vpop.f32.mrb[0].mxu0
  %v249 = vadd.f32 %v51, %v248
  %v250 = vpop.f32.mrb[0].mxu0
  %v251 = vadd.f32 %v55, %v250
  %252 = vmatprep.mubr.bf16.mxu0 0
  %253 = vmatmul.mubr.bf16.gmra.mrb[0].mxu0 %v155
  %v254 = vpop.f32.mrb[0].mxu0
  %v255 = vadd.f32 %v51, %v254
  %v256 = vpop.f32.mrb[0].mxu0
  %v257 = vadd.f32 %v55, %v256
  %v258 = vpop.f32.mrb[0].mxu0
  %v259 = vadd.f32 %v51, %v258
  %v260 = vpop.f32.mrb[0].mxu0
  %v261 = vadd.f32 %v55, %v260
  %262 = vdwg.mxu0
  %263 = vst [vmem:[#allocation2] sm:$0xff] %v192
  %264 = vst [vmem:[#allocation2 + $0x8] sm:$0xff] %v194
  %265 = vst [vmem:[#allocation2 + $0x10] sm:$0xff] %v245
  %266 = vst [vmem:[#allocation2 + $0x18] sm:$0xff] %v247
  %267 = vst [vmem:[#allocation2 + $0x20] sm:$0xff] %v196
  %268 = vst [vmem:[#allocation2 + $0x28] sm:$0xff] %v198
  %269 = vst [vmem:[#allocation2 + $0x30] sm:$0xff] %v249
  %270 = vst [vmem:[#allocation2 + $0x38] sm:$0xff] %v251
  %271 = vst [vmem:[#allocation2 + $0x40] sm:$0xff] %v202
  %272 = vst [vmem:[#allocation2 + $0x48] sm:$0xff] %v204
  %273 = vst [vmem:[#allocation2 + $0x50] sm:$0xff] %v255
  %274 = vst [vmem:[#allocation2 + $0x58] sm:$0xff] %v257
  %275 = vst [vmem:[#allocation2 + $0x60] sm:$0xff] %v206
  %276 = vst [vmem:[#allocation2 + $0x68] sm:$0xff] %v208
  %277 = vst [vmem:[#allocation2 + $0x70] sm:$0xff] %v259
  %278 = vst [vmem:[#allocation2 + $0x78] sm:$0xff] %v261
  %v279 = vld [vmem:[%s2] sm:$0xff]
  %v280 = vld [vmem:[%s2 + $0x8] sm:$0xff]
  %v281 = vld [vmem:[%s2 + $0x10] sm:$0xff]
  %v282 = vld [vmem:[%s2 + $0x18] sm:$0xff]
  %v283 = vld [vmem:[%s2 + $0x20] sm:$0xff]
  %v284 = vld [vmem:[%s2 + $0x28] sm:$0xff]
  %v285 = vld [vmem:[%s2 + $0x30] sm:$0xff]
  %v286 = vld [vmem:[%s2 + $0x38] sm:$0xff]
  %v287 = vld [vmem:[%s2 + $0x40] sm:$0xff]
  %v288 = vld [vmem:[%s2 + $0x48] sm:$0xff]
  %v289 = vld [vmem:[%s2 + $0x50] sm:$0xff]
  %v290 = vld [vmem:[%s2 + $0x58] sm:$0xff]
  %v291 = vld [vmem:[%s2 + $0x60] sm:$0xff]
  %v292 = vld [vmem:[%s2 + $0x68] sm:$0xff]
  %v293 = vld [vmem:[%s2 + $0x70] sm:$0xff]
  %v294 = vld [vmem:[%s2 + $0x78] sm:$0xff]
  %v295 = vld [vmem:[%s2 + $0x80] sm:$0xff]
  %v296 = vld [vmem:[%s2 + $0x88] sm:$0xff]
  %v297 = vld [vmem:[%s2 + $0x90] sm:$0xff]
  %v298 = vld [vmem:[%s2 + $0x98] sm:$0xff]
  %v299 = vld [vmem:[%s2 + $0xa0] sm:$0xff]
  %v300 = vld [vmem:[%s2 + $0xa8] sm:$0xff]
  %v301 = vld [vmem:[%s2 + $0xb0] sm:$0xff]
  %v302 = vld [vmem:[%s2 + $0xb8] sm:$0xff]
  %v303 = vld [vmem:[%s2 + $0xc0] sm:$0xff]
  %v304 = vld [vmem:[%s2 + $0xc8] sm:$0xff]
  %v305 = vld [vmem:[%s2 + $0xd0] sm:$0xff]
  %v306 = vld [vmem:[%s2 + $0xd8] sm:$0xff]
  %v307 = vld [vmem:[%s2 + $0xe0] sm:$0xff]
  %v308 = vld [vmem:[%s2 + $0xe8] sm:$0xff]
  %v309 = vld [vmem:[%s2 + $0xf0] sm:$0xff]
  %v310 = vld [vmem:[%s2 + $0xf8] sm:$0xff]
  %v311 = vld [vmem:[#allocation2] ss:$8 sm:$0xf]
  %s312 = scalar_lea.vmem [#allocation2], 32
  %v313 = vld [vmem:[%s312] ss:$8 sm:$0xf]
  %s314 = scalar_lea.vmem [#allocation2], 64
  %v315 = vld [vmem:[%s314] ss:$8 sm:$0xf]
  %s316 = scalar_lea.vmem [#allocation2], 96
  %v317 = vld [vmem:[%s316] ss:$8 sm:$0xf]
  %v350 = vunpack.c.l.b16 %v279
  %v351 = vunpack.c.h.b16 %v279
  %v352 = vunpack.c.l.b16 %v280
  %v353 = vunpack.c.h.b16 %v280
  %v354 = vunpack.c.l.b16 %v281
  %v355 = vunpack.c.h.b16 %v281
  %v356 = vunpack.c.l.b16 %v282
  %v357 = vunpack.c.h.b16 %v282
  %v358 = vunpack.c.l.b16 %v283
  %v359 = vunpack.c.h.b16 %v283
  %v360 = vunpack.c.l.b16 %v284
  %v361 = vunpack.c.h.b16 %v284
  %v362 = vunpack.c.l.b16 %v285
  %v363 = vunpack.c.h.b16 %v285
  %v364 = vunpack.c.l.b16 %v286
  %v365 = vunpack.c.h.b16 %v286
  %v366 = vunpack.c.l.b16 %v287
  %v367 = vunpack.c.h.b16 %v287
  %v368 = vunpack.c.l.b16 %v288
  %v369 = vunpack.c.h.b16 %v288
  %v370 = vunpack.c.l.b16 %v289
  %v371 = vunpack.c.h.b16 %v289
  %v372 = vunpack.c.l.b16 %v290
  %v373 = vunpack.c.h.b16 %v290
  %v374 = vunpack.c.l.b16 %v291
  %v375 = vunpack.c.h.b16 %v291
  %v376 = vunpack.c.l.b16 %v292
  %v377 = vunpack.c.h.b16 %v292
  %v378 = vunpack.c.l.b16 %v293
  %v379 = vunpack.c.h.b16 %v293
  %v380 = vunpack.c.l.b16 %v294
  %v381 = vunpack.c.h.b16 %v294
  %v382 = vunpack.c.l.b16 %v295
  %v383 = vunpack.c.h.b16 %v295
  %v384 = vunpack.c.l.b16 %v296
  %v385 = vunpack.c.h.b16 %v296
  %v386 = vunpack.c.l.b16 %v297
  %v387 = vunpack.c.h.b16 %v297
  %v388 = vunpack.c.l.b16 %v298
  %v389 = vunpack.c.h.b16 %v298
  %v390 = vunpack.c.l.b16 %v299
  %v391 = vunpack.c.h.b16 %v299
  %v392 = vunpack.c.l.b16 %v300
  %v393 = vunpack.c.h.b16 %v300
  %v394 = vunpack.c.l.b16 %v301
  %v395 = vunpack.c.h.b16 %v301
  %v396 = vunpack.c.l.b16 %v302
  %v397 = vunpack.c.h.b16 %v302
  %v398 = vunpack.c.l.b16 %v303
  %v399 = vunpack.c.h.b16 %v303
  %v400 = vunpack.c.l.b16 %v304
  %v401 = vunpack.c.h.b16 %v304
  %v402 = vunpack.c.l.b16 %v305
  %v403 = vunpack.c.h.b16 %v305
  %v404 = vunpack.c.l.b16 %v306
  %v405 = vunpack.c.h.b16 %v306
  %v406 = vunpack.c.l.b16 %v307
  %v407 = vunpack.c.h.b16 %v307
  %v408 = vunpack.c.l.b16 %v308
  %v409 = vunpack.c.h.b16 %v308
  %v410 = vunpack.c.l.b16 %v309
  %v411 = vunpack.c.h.b16 %v309
  %v412 = vunpack.c.l.b16 %v310
  %v413 = vunpack.c.h.b16 %v310
  %v414 = vpack.c.b16 %v354, %v350
  %v415 = vpack.c.b16 %v355, %v351
  %v416 = vpack.c.b16 %v356, %v352
  %v417 = vpack.c.b16 %v357, %v353
  %v418 = vpack.c.b16 %v362, %v358
  %v419 = vpack.c.b16 %v363, %v359
  %v420 = vpack.c.b16 %v364, %v360
  %v421 = vpack.c.b16 %v365, %v361
  %v422 = vpack.c.b16 %v370, %v366
  %v423 = vpack.c.b16 %v371, %v367
  %v424 = vpack.c.b16 %v372, %v368
  %v425 = vpack.c.b16 %v373, %v369
  %v426 = vpack.c.b16 %v378, %v374
  %v427 = vpack.c.b16 %v379, %v375
  %v428 = vpack.c.b16 %v380, %v376
  %v429 = vpack.c.b16 %v381, %v377
  %v430 = vpack.c.b16 %v386, %v382
  %v431 = vpack.c.b16 %v387, %v383
  %v432 = vpack.c.b16 %v388, %v384
  %v433 = vpack.c.b16 %v389, %v385
  %v434 = vpack.c.b16 %v394, %v390
  %v435 = vpack.c.b16 %v395, %v391
  %v436 = vpack.c.b16 %v396, %v392
  %v437 = vpack.c.b16 %v397, %v393
  %v438 = vpack.c.b16 %v402, %v398
  %v439 = vpack.c.b16 %v403, %v399
  %v440 = vpack.c.b16 %v404, %v400
  %v441 = vpack.c.b16 %v405, %v401
  %v442 = vpack.c.b16 %v410, %v406
  %v443 = vpack.c.b16 %v411, %v407
  %v444 = vpack.c.b16 %v412, %v408
  %v445 = vpack.c.b16 %v413, %v409
  %478 = vmatprep.subr.bf16.mxu0 %v415
  %479 = vmatpush1.bf16.msra.mxu0 %v414
  %480 = vmatprep.subr.bf16.mxu0 %v419
  %481 = vmatpush1.bf16.msra.mxu0 %v418
  %482 = vmatprep.subr.bf16.mxu0 %v423
  %483 = vmatpush1.bf16.msra.mxu0 %v422
  %484 = vmatprep.subr.bf16.mxu0 %v427
  %485 = vmatpush1.bf16.msra.mxu0 %v426
  %486 = vmatprep.subr.bf16.mxu0 %v431
  %487 = vmatpush1.bf16.msra.mxu0 %v430
  %488 = vmatprep.subr.bf16.mxu0 %v435
  %489 = vmatpush1.bf16.msra.mxu0 %v434
  %490 = vmatprep.subr.bf16.mxu0 %v439
  %491 = vmatpush1.bf16.msra.mxu0 %v438
  %492 = vmatprep.subr.bf16.mxu0 %v443
  %493 = vmatpush1.bf16.msra.mxu0 %v442
  %494 = vmatprep.subr.bf16.mxu0 0
  %495 = vmatpush1.bf16.msra.mxu0 0
  %496 = vmatprep.subr.bf16.mxu0 0
  %497 = vmatpush1.bf16.msra.mxu0 0
  %498 = vmatprep.subr.bf16.mxu0 0
  %499 = vmatpush1.bf16.msra.mxu0 0
  %500 = vmatprep.subr.bf16.mxu0 0
  %501 = vmatpush1.bf16.msra.mxu0 0
  %502 = vmatprep.subr.bf16.mxu0 0
  %503 = vmatpush1.bf16.msra.mxu0 0
  %504 = vmatprep.subr.bf16.mxu0 0
  %505 = vmatpush1.bf16.msra.mxu0 0
  %506 = vmatprep.subr.bf16.mxu0 0
  %507 = vmatpush1.bf16.msra.mxu0 0
  %508 = vmatprep.subr.bf16.mxu0 0
  %509 = vmatpush1.bf16.msra.mxu0 0
  %510 = vmatprep.mubr.bf16.mxu0 0
  %511 = vmatmul.mubr.bf16.gmra.mrb[0].mxu0 0
  %v512 = vpop.f32.mrb[0].mxu0
  %v513 = vadd.f32 0.0, %v512
  %v514 = vpop.f32.mrb[0].mxu0
  %v515 = vadd.f32 0.0, %v514
  %v516 = vpop.f32.mrb[0].mxu0
  %v517 = vpop.f32.mrb[0].mxu0
  %518 = vdwg.mxu0
  %519 = vmatprep.subr.bf16.mxu0 %v417
  %520 = vmatpush1.bf16.msra.mxu0 %v416
  %521 = vmatprep.subr.bf16.mxu0 %v421
  %522 = vmatpush1.bf16.msra.mxu0 %v420
  %523 = vmatprep.subr.bf16.mxu0 %v425
  %524 = vmatpush1.bf16.msra.mxu0 %v424
  %525 = vmatprep.subr.bf16.mxu0 %v429
  %526 = vmatpush1.bf16.msra.mxu0 %v428
  %527 = vmatprep.subr.bf16.mxu0 %v433
  %528 = vmatpush1.bf16.msra.mxu0 %v432
  %529 = vmatprep.subr.bf16.mxu0 %v437
  %530 = vmatpush1.bf16.msra.mxu0 %v436
  %531 = vmatprep.subr.bf16.mxu0 %v441
  %532 = vmatpush1.bf16.msra.mxu0 %v440
  %533 = vmatprep.subr.bf16.mxu0 %v445
  %534 = vmatpush1.bf16.msra.mxu0 %v444
  %535 = vmatprep.subr.bf16.mxu0 0
  %536 = vmatpush1.bf16.msra.mxu0 0
  %537 = vmatprep.subr.bf16.mxu0 0
  %538 = vmatpush1.bf16.msra.mxu0 0
  %539 = vmatprep.subr.bf16.mxu0 0
  %540 = vmatpush1.bf16.msra.mxu0 0
  %541 = vmatprep.subr.bf16.mxu0 0
  %542 = vmatpush1.bf16.msra.mxu0 0
  %543 = vmatprep.subr.bf16.mxu0 0
  %544 = vmatpush1.bf16.msra.mxu0 0
  %545 = vmatprep.subr.bf16.mxu0 0
  %546 = vmatpush1.bf16.msra.mxu0 0
  %547 = vmatprep.subr.bf16.mxu0 0
  %548 = vmatpush1.bf16.msra.mxu0 0
  %549 = vmatprep.subr.bf16.mxu0 0
  %550 = vmatpush1.bf16.msra.mxu0 0
  %551 = vmatprep.mubr.bf16.mxu0 0
  %552 = vmatmul.mubr.bf16.gmra.mrb[0].mxu0 0
  %v553 = vpop.f32.mrb[0].mxu0
  %v554 = vadd.f32 0.0, %v553
  %v555 = vpop.f32.mrb[0].mxu0
  %v556 = vadd.f32 0.0, %v555
  %v557 = vpop.f32.mrb[0].mxu0
  %v558 = vpop.f32.mrb[0].mxu0
  %559 = vdwg.mxu0
  %v564 = vcombine.low %v513, %v515
  %v565 = vcombine.low %v554, %v556
  %v567 = vunpack.c.l.s4 1966171168
  %v568 = vunpack.c.0.s8 %v567
  %v569 = vlaneseq
  %v570 = vshrl.u32 %v569, 7
  %v571 = vsub.s32 %v568, %v570
  %v572 = vrot.slane %v564, %v571
  %v574 = vunpack.c.l.s4 1966171168
  %v575 = vunpack.c.0.s8 %v574
  %v576 = vlaneseq
  %v577 = vshrl.u32 %v576, 7
  %v578 = vsub.s32 %v575, %v577
  %v579 = vrot.slane %v565, %v578
  %v580 = vcombine.low %v572, %v579
  %v581 = vcombine.high %v572, %v579
  %v583 = vunpack.c.l.s4 1966171168
  %v584 = vunpack.c.0.s8 %v583
  %v585 = vlaneseq
  %v586 = vshrl.u32 %v585, 7
  %v587 = vsub.s32 %v584, %v586
  %v588 = vrot.slane %v580, %v587
  %v590 = vunpack.c.l.s4 1966171168
  %v591 = vunpack.c.0.s8 %v590
  %v592 = vlaneseq
  %v593 = vshrl.u32 %v592, 7
  %v594 = vsub.s32 %v591, %v593
  %v595 = vrot.slane %v581, %v594
  %v596 = vcombine.high %v588, %v588
  %v597 = vcombine.high %v595, %v595
  %v602 = vadd.f32 %v311, %v588
  %v603 = vadd.f32 %v313, %v595
  %v604 = vadd.f32 %v315, %v596
  %v605 = vadd.f32 %v317, %v597
  %v606 = vmul.f32 %v602, 0.5
  %v607 = vmul.f32 %v603, 0.5
  %v608 = vmul.f32 %v604, 0.5
  %v609 = vmul.f32 %v605, 0.5
  %v610 = vtanh.pop %v606
  %v611 = vtanh.pop %v607
  %v612 = vtanh.pop %v608
  %v613 = vtanh.pop %v609
  %v614 = vmul.f32 %v610, 0.5
  %v615 = vmul.f32 %v611, 0.5
  %v616 = vmul.f32 %v612, 0.5
  %v617 = vmul.f32 %v613, 0.5
  %v618 = vadd.f32 %v614, 0.5
  %v619 = vadd.f32 %v615, 0.5
  %v620 = vadd.f32 %v616, 0.5
  %v621 = vadd.f32 %v617, 0.5
  %v626 = vrot.slane %v602, 1
  %v627 = vrot.slane %v603, 1
  %v628 = vrot.slane %v604, 1
  %v629 = vrot.slane %v605, 1
  %v634 = vmul.f32 %v626, 0.5
  %v635 = vmul.f32 %v627, 0.5
  %v636 = vmul.f32 %v628, 0.5
  %v637 = vmul.f32 %v629, 0.5
  %v638 = vtanh.pop %v634
  %v639 = vtanh.pop %v635
  %v640 = vtanh.pop %v636
  %v641 = vtanh.pop %v637
  %v642 = vmul.f32 %v638, 0.5
  %v643 = vmul.f32 %v639, 0.5
  %v644 = vmul.f32 %v640, 0.5
  %v645 = vmul.f32 %v641, 0.5
  %v646 = vadd.f32 %v642, 0.5
  %v647 = vadd.f32 %v643, 0.5
  %v648 = vadd.f32 %v644, 0.5
  %v649 = vadd.f32 %v645, 0.5
  %v650 = vrot.slane %v602, 2
  %v651 = vrot.slane %v603, 2
  %v652 = vrot.slane %v604, 2
  %v653 = vrot.slane %v605, 2
  %v658 = vtanh.pop %v650
  %v659 = vtanh.pop %v651
  %v660 = vtanh.pop %v652
  %v661 = vtanh.pop %v653
  %v662 = vrot.slane %v602, 3
  %v663 = vrot.slane %v603, 3
  %v664 = vrot.slane %v604, 3
  %v665 = vrot.slane %v605, 3
  %v670 = vmul.f32 %v662, 0.5
  %v671 = vmul.f32 %v663, 0.5
  %v672 = vmul.f32 %v664, 0.5
  %v673 = vmul.f32 %v665, 0.5
  %v674 = vtanh.pop %v670
  %v675 = vtanh.pop %v671
  %v676 = vtanh.pop %v672
  %v677 = vtanh.pop %v673
  %v678 = vmul.f32 %v674, 0.5
  %v679 = vmul.f32 %v675, 0.5
  %v680 = vmul.f32 %v676, 0.5
  %v681 = vmul.f32 %v677, 0.5
  %v682 = vadd.f32 %v678, 0.5
  %v683 = vadd.f32 %v679, 0.5
  %v684 = vadd.f32 %v680, 0.5
  %v685 = vadd.f32 %v681, 0.5
  %v686 = vmul.f32 %v646, 0.0
  %v687 = vmul.f32 %v647, 0.0
  %v688 = vmul.f32 %v648, 0.0
  %v689 = vmul.f32 %v649, 0.0
  %v690 = vmul.f32 %v618, %v658
  %v691 = vmul.f32 %v619, %v659
  %v692 = vmul.f32 %v620, %v660
  %v693 = vmul.f32 %v621, %v661
  %v694 = vadd.f32 %v686, %v690
  %v695 = vadd.f32 %v687, %v691
  %v696 = vadd.f32 %v688, %v692
  %v697 = vadd.f32 %v689, %v693
  %v698 = vtanh.pop %v694
  %v699 = vtanh.pop %v695
  %v700 = vtanh.pop %v696
  %v701 = vtanh.pop %v697
  %v702 = vmul.f32 %v682, %v698
  %v703 = vmul.f32 %v683, %v699
  %v704 = vmul.f32 %v684, %v700
  %v705 = vmul.f32 %v685, %v701
  %v706 = vpack.c.bf16 %v702, %v702
  %v707 = vpack.c.bf16 %v703, %v703
  %v708 = vpack.c.bf16 %v704, %v704
  %v709 = vpack.c.bf16 %v705, %v705
  %v715 = vunpack.c.l.s4 1983009808
  %v716 = vunpack.c.0.s8 %v715
  %v717 = vlaneseq
  %v718 = vshrl.u32 %v717, 7
  %v719 = vsub.s32 %v716, %v718
  %v720 = vrot.slane %v706, %v719
  %v722 = vunpack.c.l.s4 1983009808
  %v723 = vunpack.c.0.s8 %v722
  %v724 = vlaneseq
  %v725 = vshrl.u32 %v724, 7
  %v726 = vsub.s32 %v723, %v725
  %v727 = vrot.slane %v707, %v726
  %v729 = vunpack.c.l.s4 1983009808
  %v730 = vunpack.c.0.s8 %v729
  %v731 = vlaneseq
  %v732 = vshrl.u32 %v731, 7
  %v733 = vsub.s32 %v730, %v732
  %v734 = vrot.slane %v708, %v733
  %v736 = vunpack.c.l.s4 1983009808
  %v737 = vunpack.c.0.s8 %v736
  %v738 = vlaneseq
  %v739 = vshrl.u32 %v738, 7
  %v740 = vsub.s32 %v737, %v739
  %v741 = vrot.slane %v709, %v740
  %v743 = vunpack.c.l.s4 1983009808
  %v744 = vunpack.c.0.s8 %v743
  %v745 = vlaneseq
  %v746 = vshrl.u32 %v745, 7
  %v747 = vsub.s32 %v744, %v746
  %v748 = vrot.slane %v720, %v747
  %v750 = vunpack.c.l.s4 1983009808
  %v751 = vunpack.c.0.s8 %v750
  %v752 = vlaneseq
  %v753 = vshrl.u32 %v752, 7
  %v754 = vsub.s32 %v751, %v753
  %v755 = vrot.slane %v727, %v754
  %v757 = vunpack.c.l.s4 1983009808
  %v758 = vunpack.c.0.s8 %v757
  %v759 = vlaneseq
  %v760 = vshrl.u32 %v759, 7
  %v761 = vsub.s32 %v758, %v760
  %v762 = vrot.slane %v734, %v761
  %v764 = vunpack.c.l.s4 1983009808
  %v765 = vunpack.c.0.s8 %v764
  %v766 = vlaneseq
  %v767 = vshrl.u32 %v766, 7
  %v768 = vsub.s32 %v765, %v767
  %v769 = vrot.slane %v741, %v768
  %v770 = vunpack.c.l.b16 %v748
  %v771 = vunpack.c.l.b16 %v755
  %v772 = vunpack.c.l.b16 %v762
  %v773 = vunpack.c.l.b16 %v769
  %v774 = vrot.slane %v771, 7
  %vm775 = vcmask 1041409
  %v776 = vsel %vm775, %v774, %v770
  %v777 = vrot.slane %v772, 6
  %vm778 = vcmask 1042434
  %v779 = vsel %vm778, %v777, %v776
  %v780 = vrot.slane %v773, 5
  %vm781 = vcmask 1043459
  %v782 = vsel %vm781, %v780, %v779
  %v783 = vpack.c.b16 %v782, %v782
  %v785 = vunpack.c.l.s4 1983009808
  %v786 = vunpack.c.0.s8 %v785
  %v787 = vlaneseq
  %v788 = vshrl.u32 %v787, 7
  %v789 = vsub.s32 %v786, %v788
  %v790 = vrot.slane %v783, %v789
  %792 = vst [vmem:[%s4] sm:$0x3] %v790
  %s793 = scalar_lea.vmem [#allocation2], 1
  %v794 = vld [vmem:[%s793] ss:$8 sm:$0xf]
  %s795 = scalar_lea.vmem [#allocation2], 33
  %v796 = vld [vmem:[%s795] ss:$8 sm:$0xf]
  %s797 = scalar_lea.vmem [#allocation2], 65
  %v798 = vld [vmem:[%s797] ss:$8 sm:$0xf]
  %s799 = scalar_lea.vmem [#allocation2], 97
  %v800 = vld [vmem:[%s799] ss:$8 sm:$0xf]
  %v801 = vunpack.c.l.b16 %v706
  %v802 = vunpack.c.l.b16 %v707
  %v803 = vunpack.c.l.b16 %v708
  %v804 = vunpack.c.l.b16 %v709
  %v805 = vrot.slane %v802, 7
  %v806 = vsel %vm775, %v805, %v801
  %v807 = vrot.slane %v803, 6
  %v808 = vsel %vm778, %v807, %v806
  %v809 = vrot.slane %v804, 5
  %v810 = vsel %vm781, %v809, %v808
  %v811 = vpack.c.b16 %v810, %v810
  %813 = vmatprep.subr.bf16.mxu0 %v415
  %814 = vmatpush1.bf16.msra.mxu0 %v414
  %815 = vmatprep.subr.bf16.mxu0 %v419
  %816 = vmatpush1.bf16.msra.mxu0 %v418
  %817 = vmatprep.subr.bf16.mxu0 %v423
  %818 = vmatpush1.bf16.msra.mxu0 %v422
  %819 = vmatprep.subr.bf16.mxu0 %v427
  %820 = vmatpush1.bf16.msra.mxu0 %v426
  %821 = vmatprep.subr.bf16.mxu0 %v431
  %822 = vmatpush1.bf16.msra.mxu0 %v430
  %823 = vmatprep.subr.bf16.mxu0 %v435
  %824 = vmatpush1.bf16.msra.mxu0 %v434
  %825 = vmatprep.subr.bf16.mxu0 %v439
  %826 = vmatpush1.bf16.msra.mxu0 %v438
  %827 = vmatprep.subr.bf16.mxu0 %v443
  %828 = vmatpush1.bf16.msra.mxu0 %v442
  %829 = vmatprep.subr.bf16.mxu0 0
  %830 = vmatpush1.bf16.msra.mxu0 0
  %831 = vmatprep.subr.bf16.mxu0 0
  %832 = vmatpush1.bf16.msra.mxu0 0
  %833 = vmatprep.subr.bf16.mxu0 0
  %834 = vmatpush1.bf16.msra.mxu0 0
  %835 = vmatprep.subr.bf16.mxu0 0
  %836 = vmatpush1.bf16.msra.mxu0 0
  %837 = vmatprep.subr.bf16.mxu0 0
  %838 = vmatpush1.bf16.msra.mxu0 0
  %839 = vmatprep.subr.bf16.mxu0 0
  %840 = vmatpush1.bf16.msra.mxu0 0
  %841 = vmatprep.subr.bf16.mxu0 0
  %842 = vmatpush1.bf16.msra.mxu0 0
  %843 = vmatprep.subr.bf16.mxu0 0
  %844 = vmatpush1.bf16.msra.mxu0 0
  %845 = vmatprep.mubr.bf16.mxu0 0
  %846 = vmatmul.mubr.bf16.gmra.mrb[0].mxu0 %v811
  %v847 = vpop.f32.mrb[0].mxu0
  %v848 = vadd.f32 0.0, %v847
  %v849 = vpop.f32.mrb[0].mxu0
  %v850 = vadd.f32 0.0, %v849
  %v851 = vpop.f32.mrb[0].mxu0
  %v852 = vpop.f32.mrb[0].mxu0
  %853 = vdwg.mxu0
  %854 = vmatprep.subr.bf16.mxu0 %v417
  %855 = vmatpush1.bf16.msra.mxu0 %v416
  %856 = vmatprep.subr.bf16.mxu0 %v421
  %857 = vmatpush1.bf16.msra.mxu0 %v420
  %858 = vmatprep.subr.bf16.mxu0 %v425
  %859 = vmatpush1.bf16.msra.mxu0 %v424
  %860 = vmatprep.subr.bf16.mxu0 %v429
  %861 = vmatpush1.bf16.msra.mxu0 %v428
  %862 = vmatprep.subr.bf16.mxu0 %v433
  %863 = vmatpush1.bf16.msra.mxu0 %v432
  %864 = vmatprep.subr.bf16.mxu0 %v437
  %865 = vmatpush1.bf16.msra.mxu0 %v436
  %866 = vmatprep.subr.bf16.mxu0 %v441
  %867 = vmatpush1.bf16.msra.mxu0 %v440
  %868 = vmatprep.subr.bf16.mxu0 %v445
  %869 = vmatpush1.bf16.msra.mxu0 %v444
  %870 = vmatprep.subr.bf16.mxu0 0
  %871 = vmatpush1.bf16.msra.mxu0 0
  %872 = vmatprep.subr.bf16.mxu0 0
  %873 = vmatpush1.bf16.msra.mxu0 0
  %874 = vmatprep.subr.bf16.mxu0 0
  %875 = vmatpush1.bf16.msra.mxu0 0
  %876 = vmatprep.subr.bf16.mxu0 0
  %877 = vmatpush1.bf16.msra.mxu0 0
  %878 = vmatprep.subr.bf16.mxu0 0
  %879 = vmatpush1.bf16.msra.mxu0 0
  %880 = vmatprep.subr.bf16.mxu0 0
  %881 = vmatpush1.bf16.msra.mxu0 0
  %882 = vmatprep.subr.bf16.mxu0 0
  %883 = vmatpush1.bf16.msra.mxu0 0
  %884 = vmatprep.subr.bf16.mxu0 0
  %885 = vmatpush1.bf16.msra.mxu0 0
  %886 = vmatprep.mubr.bf16.mxu0 0
  %887 = vmatmul.mubr.bf16.gmra.mrb[0].mxu0 %v811
  %v888 = vpop.f32.mrb[0].mxu0
  %v889 = vadd.f32 0.0, %v888
  %v890 = vpop.f32.mrb[0].mxu0
  %v891 = vadd.f32 0.0, %v890
  %v892 = vpop.f32.mrb[0].mxu0
  %v893 = vpop.f32.mrb[0].mxu0
  %894 = vdwg.mxu0
  %v899 = vcombine.low %v848, %v850
  %v900 = vcombine.low %v889, %v891
  %v902 = vunpack.c.l.s4 1966171168
  %v903 = vunpack.c.0.s8 %v902
  %v904 = vlaneseq
  %v905 = vshrl.u32 %v904, 7
  %v906 = vsub.s32 %v903, %v905
  %v907 = vrot.slane %v899, %v906
  %v909 = vunpack.c.l.s4 1966171168
  %v910 = vunpack.c.0.s8 %v909
  %v911 = vlaneseq
  %v912 = vshrl.u32 %v911, 7
  %v913 = vsub.s32 %v910, %v912
  %v914 = vrot.slane %v900, %v913
  %v915 = vcombine.low %v907, %v914
  %v916 = vcombine.high %v907, %v914
  %v918 = vunpack.c.l.s4 1966171168
  %v919 = vunpack.c.0.s8 %v918
  %v920 = vlaneseq
  %v921 = vshrl.u32 %v920, 7
  %v922 = vsub.s32 %v919, %v921
  %v923 = vrot.slane %v915, %v922
  %v925 = vunpack.c.l.s4 1966171168
  %v926 = vunpack.c.0.s8 %v925
  %v927 = vlaneseq
  %v928 = vshrl.u32 %v927, 7
  %v929 = vsub.s32 %v926, %v928
  %v930 = vrot.slane %v916, %v929
  %v931 = vcombine.high %v923, %v923
  %v932 = vcombine.high %v930, %v930
  %v937 = vadd.f32 %v794, %v923
  %v938 = vadd.f32 %v796, %v930
  %v939 = vadd.f32 %v798, %v931
  %v940 = vadd.f32 %v800, %v932
  %v941 = vmul.f32 %v937, 0.5
  %v942 = vmul.f32 %v938, 0.5
  %v943 = vmul.f32 %v939, 0.5
  %v944 = vmul.f32 %v940, 0.5
  %v945 = vtanh.pop %v941
  %v946 = vtanh.pop %v942
  %v947 = vtanh.pop %v943
  %v948 = vtanh.pop %v944
  %v949 = vmul.f32 %v945, 0.5
  %v950 = vmul.f32 %v946, 0.5
  %v951 = vmul.f32 %v947, 0.5
  %v952 = vmul.f32 %v948, 0.5
  %v953 = vadd.f32 %v949, 0.5
  %v954 = vadd.f32 %v950, 0.5
  %v955 = vadd.f32 %v951, 0.5
  %v956 = vadd.f32 %v952, 0.5
  %v961 = vrot.slane %v937, 1
  %v962 = vrot.slane %v938, 1
  %v963 = vrot.slane %v939, 1
  %v964 = vrot.slane %v940, 1
  %v969 = vmul.f32 %v961, 0.5
  %v970 = vmul.f32 %v962, 0.5
  %v971 = vmul.f32 %v963, 0.5
  %v972 = vmul.f32 %v964, 0.5
  %v973 = vtanh.pop %v969
  %v974 = vtanh.pop %v970
  %v975 = vtanh.pop %v971
  %v976 = vtanh.pop %v972
  %v977 = vmul.f32 %v973, 0.5
  %v978 = vmul.f32 %v974, 0.5
  %v979 = vmul.f32 %v975, 0.5
  %v980 = vmul.f32 %v976, 0.5
  %v981 = vadd.f32 %v977, 0.5
  %v982 = vadd.f32 %v978, 0.5
  %v983 = vadd.f32 %v979, 0.5
  %v984 = vadd.f32 %v980, 0.5
  %v985 = vrot.slane %v937, 2
  %v986 = vrot.slane %v938, 2
  %v987 = vrot.slane %v939, 2
  %v988 = vrot.slane %v940, 2
  %v993 = vtanh.pop %v985
  %v994 = vtanh.pop %v986
  %v995 = vtanh.pop %v987
  %v996 = vtanh.pop %v988
  %v997 = vrot.slane %v937, 3
  %v998 = vrot.slane %v938, 3
  %v999 = vrot.slane %v939, 3
  %v1000 = vrot.slane %v940, 3
  %v1005 = vmul.f32 %v997, 0.5
  %v1006 = vmul.f32 %v998, 0.5
  %v1007 = vmul.f32 %v999, 0.5
  %v1008 = vmul.f32 %v1000, 0.5
  %v1009 = vtanh.pop %v1005
  %v1010 = vtanh.pop %v1006
  %v1011 = vtanh.pop %v1007
  %v1012 = vtanh.pop %v1008
  %v1013 = vmul.f32 %v1009, 0.5
  %v1014 = vmul.f32 %v1010, 0.5
  %v1015 = vmul.f32 %v1011, 0.5
  %v1016 = vmul.f32 %v1012, 0.5
  %v1017 = vadd.f32 %v1013, 0.5
  %v1018 = vadd.f32 %v1014, 0.5
  %v1019 = vadd.f32 %v1015, 0.5
  %v1020 = vadd.f32 %v1016, 0.5
  %v1021 = vmul.f32 %v981, %v694
  %v1022 = vmul.f32 %v982, %v695
  %v1023 = vmul.f32 %v983, %v696
  %v1024 = vmul.f32 %v984, %v697
  %v1025 = vmul.f32 %v953, %v993
  %v1026 = vmul.f32 %v954, %v994
  %v1027 = vmul.f32 %v955, %v995
  %v1028 = vmul.f32 %v956, %v996
  %v1029 = vadd.f32 %v1021, %v1025
  %v1030 = vadd.f32 %v1022, %v1026
  %v1031 = vadd.f32 %v1023, %v1027
  %v1032 = vadd.f32 %v1024, %v1028
  %v1033 = vtanh.pop %v1029
  %v1034 = vtanh.pop %v1030
  %v1035 = vtanh.pop %v1031
  %v1036 = vtanh.pop %v1032
  %v1037 = vmul.f32 %v1017, %v1033
  %v1038 = vmul.f32 %v1018, %v1034
  %v1039 = vmul.f32 %v1019, %v1035
  %v1040 = vmul.f32 %v1020, %v1036
  %v1041 = vpack.c.bf16 %v1037, %v1037
  %v1042 = vpack.c.bf16 %v1038, %v1038
  %v1043 = vpack.c.bf16 %v1039, %v1039
  %v1044 = vpack.c.bf16 %v1040, %v1040
  %v1050 = vunpack.c.l.s4 1983009808
  %v1051 = vunpack.c.0.s8 %v1050
  %v1052 = vlaneseq
  %v1053 = vshrl.u32 %v1052, 7
  %v1054 = vsub.s32 %v1051, %v1053
  %v1055 = vrot.slane %v1041, %v1054
  %v1057 = vunpack.c.l.s4 1983009808
  %v1058 = vunpack.c.0.s8 %v1057
  %v1059 = vlaneseq
  %v1060 = vshrl.u32 %v1059, 7
  %v1061 = vsub.s32 %v1058, %v1060
  %v1062 = vrot.slane %v1042, %v1061
  %v1064 = vunpack.c.l.s4 1983009808
  %v1065 = vunpack.c.0.s8 %v1064
  %v1066 = vlaneseq
  %v1067 = vshrl.u32 %v1066, 7
  %v1068 = vsub.s32 %v1065, %v1067
  %v1069 = vrot.slane %v1043, %v1068
  %v1071 = vunpack.c.l.s4 1983009808
  %v1072 = vunpack.c.0.s8 %v1071
  %v1073 = vlaneseq
  %v1074 = vshrl.u32 %v1073, 7
  %v1075 = vsub.s32 %v1072, %v1074
  %v1076 = vrot.slane %v1044, %v1075
  %v1078 = vunpack.c.l.s4 1983009808
  %v1079 = vunpack.c.0.s8 %v1078
  %v1080 = vlaneseq
  %v1081 = vshrl.u32 %v1080, 7
  %v1082 = vsub.s32 %v1079, %v1081
  %v1083 = vrot.slane %v1055, %v1082
  %v1085 = vunpack.c.l.s4 1983009808
  %v1086 = vunpack.c.0.s8 %v1085
  %v1087 = vlaneseq
  %v1088 = vshrl.u32 %v1087, 7
  %v1089 = vsub.s32 %v1086, %v1088
  %v1090 = vrot.slane %v1062, %v1089
  %v1092 = vunpack.c.l.s4 1983009808
  %v1093 = vunpack.c.0.s8 %v1092
  %v1094 = vlaneseq
  %v1095 = vshrl.u32 %v1094, 7
  %v1096 = vsub.s32 %v1093, %v1095
  %v1097 = vrot.slane %v1069, %v1096
  %v1099 = vunpack.c.l.s4 1983009808
  %v1100 = vunpack.c.0.s8 %v1099
  %v1101 = vlaneseq
  %v1102 = vshrl.u32 %v1101, 7
  %v1103 = vsub.s32 %v1100, %v1102
  %v1104 = vrot.slane %v1076, %v1103
  %v1105 = vunpack.c.l.b16 %v1083
  %v1106 = vunpack.c.l.b16 %v1090
  %v1107 = vunpack.c.l.b16 %v1097
  %v1108 = vunpack.c.l.b16 %v1104
  %v1109 = vrot.slane %v1106, 7
  %v1110 = vsel %vm775, %v1109, %v1105
  %v1111 = vrot.slane %v1107, 6
  %v1112 = vsel %vm778, %v1111, %v1110
  %v1113 = vrot.slane %v1108, 5
  %v1114 = vsel %vm781, %v1113, %v1112
  %v1115 = vpack.c.b16 %v1114, %v1114
  %v1117 = vunpack.c.l.s4 1983009808
  %v1118 = vunpack.c.0.s8 %v1117
  %v1119 = vlaneseq
  %v1120 = vshrl.u32 %v1119, 7
  %v1121 = vsub.s32 %v1118, %v1120
  %v1122 = vrot.slane %v1115, %v1121
  %1124 = vst [vmem:[%s4 + $0x2] sm:$0x3] %v1122
  %s1125 = scalar_lea.vmem [#allocation2], 2
  %v1126 = vld [vmem:[%s1125] ss:$8 sm:$0xf]
  %s1127 = scalar_lea.vmem [#allocation2], 34
  %v1128 = vld [vmem:[%s1127] ss:$8 sm:$0xf]
  %s1129 = scalar_lea.vmem [#allocation2], 66
  %v1130 = vld [vmem:[%s1129] ss:$8 sm:$0xf]
  %s1131 = scalar_lea.vmem [#allocation2], 98
  %v1132 = vld [vmem:[%s1131] ss:$8 sm:$0xf]
  %v1133 = vunpack.c.l.b16 %v1041
  %v1134 = vunpack.c.l.b16 %v1042
  %v1135 = vunpack.c.l.b16 %v1043
  %v1136 = vunpack.c.l.b16 %v1044
  %v1137 = vrot.slane %v1134, 7
  %v1138 = vsel %vm775, %v1137, %v1133
  %v1139 = vrot.slane %v1135, 6
  %v1140 = vsel %vm778, %v1139, %v1138
  %v1141 = vrot.slane %v1136, 5
  %v1142 = vsel %vm781, %v1141, %v1140
  %v1143 = vpack.c.b16 %v1142, %v1142
  %1145 = vmatprep.subr.bf16.mxu0 %v415
  %1146 = vmatpush1.bf16.msra.mxu0 %v414
  %1147 = vmatprep.subr.bf16.mxu0 %v419
  %1148 = vmatpush1.bf16.msra.mxu0 %v418
  %1149 = vmatprep.subr.bf16.mxu0 %v423
  %1150 = vmatpush1.bf16.msra.mxu0 %v422
  %1151 = vmatprep.subr.bf16.mxu0 %v427
  %1152 = vmatpush1.bf16.msra.mxu0 %v426
  %1153 = vmatprep.subr.bf16.mxu0 %v431
  %1154 = vmatpush1.bf16.msra.mxu0 %v430
  %1155 = vmatprep.subr.bf16.mxu0 %v435
  %1156 = vmatpush1.bf16.msra.mxu0 %v434
  %1157 = vmatprep.subr.bf16.mxu0 %v439
  %1158 = vmatpush1.bf16.msra.mxu0 %v438
  %1159 = vmatprep.subr.bf16.mxu0 %v443
  %1160 = vmatpush1.bf16.msra.mxu0 %v442
  %1161 = vmatprep.subr.bf16.mxu0 0
  %1162 = vmatpush1.bf16.msra.mxu0 0
  %1163 = vmatprep.subr.bf16.mxu0 0
  %1164 = vmatpush1.bf16.msra.mxu0 0
  %1165 = vmatprep.subr.bf16.mxu0 0
  %1166 = vmatpush1.bf16.msra.mxu0 0
  %1167 = vmatprep.subr.bf16.mxu0 0
  %1168 = vmatpush1.bf16.msra.mxu0 0
  %1169 = vmatprep.subr.bf16.mxu0 0
  %1170 = vmatpush1.bf16.msra.mxu0 0
  %1171 = vmatprep.subr.bf16.mxu0 0
  %1172 = vmatpush1.bf16.msra.mxu0 0
  %1173 = vmatprep.subr.bf16.mxu0 0
  %1174 = vmatpush1.bf16.msra.mxu0 0
  %1175 = vmatprep.subr.bf16.mxu0 0
  %1176 = vmatpush1.bf16.msra.mxu0 0
  %1177 = vmatprep.mubr.bf16.mxu0 0
  %1178 = vmatmul.mubr.bf16.gmra.mrb[0].mxu0 %v1143
  %v1179 = vpop.f32.mrb[0].mxu0
  %v1180 = vadd.f32 0.0, %v1179
  %v1181 = vpop.f32.mrb[0].mxu0
  %v1182 = vadd.f32 0.0, %v1181
  %v1183 = vpop.f32.mrb[0].mxu0
  %v1184 = vpop.f32.mrb[0].mxu0
  %1185 = vdwg.mxu0
  %1186 = vmatprep.subr.bf16.mxu0 %v417
  %1187 = vmatpush1.bf16.msra.mxu0 %v416
  %1188 = vmatprep.subr.bf16.mxu0 %v421
  %1189 = vmatpush1.bf16.msra.mxu0 %v420
  %1190 = vmatprep.subr.bf16.mxu0 %v425
  %1191 = vmatpush1.bf16.msra.mxu0 %v424
  %1192 = vmatprep.subr.bf16.mxu0 %v429
  %1193 = vmatpush1.bf16.msra.mxu0 %v428
  %1194 = vmatprep.subr.bf16.mxu0 %v433
  %1195 = vmatpush1.bf16.msra.mxu0 %v432
  %1196 = vmatprep.subr.bf16.mxu0 %v437
  %1197 = vmatpush1.bf16.msra.mxu0 %v436
  %1198 = vmatprep.subr.bf16.mxu0 %v441
  %1199 = vmatpush1.bf16.msra.mxu0 %v440
  %1200 = vmatprep.subr.bf16.mxu0 %v445
  %1201 = vmatpush1.bf16.msra.mxu0 %v444
  %1202 = vmatprep.subr.bf16.mxu0 0
  %1203 = vmatpush1.bf16.msra.mxu0 0
  %1204 = vmatprep.subr.bf16.mxu0 0
  %1205 = vmatpush1.bf16.msra.mxu0 0
  %1206 = vmatprep.subr.bf16.mxu0 0
  %1207 = vmatpush1.bf16.msra.mxu0 0
  %1208 = vmatprep.subr.bf16.mxu0 0
  %1209 = vmatpush1.bf16.msra.mxu0 0
  %1210 = vmatprep.subr.bf16.mxu0 0
  %1211 = vmatpush1.bf16.msra.mxu0 0
  %1212 = vmatprep.subr.bf16.mxu0 0
  %1213 = vmatpush1.bf16.msra.mxu0 0
  %1214 = vmatprep.subr.bf16.mxu0 0
  %1215 = vmatpush1.bf16.msra.mxu0 0
  %1216 = vmatprep.subr.bf16.mxu0 0
  %1217 = vmatpush1.bf16.msra.mxu0 0
  %1218 = vmatprep.mubr.bf16.mxu0 0
  %1219 = vmatmul.mubr.bf16.gmra.mrb[0].mxu0 %v1143
  %v1220 = vpop.f32.mrb[0].mxu0
  %v1221 = vadd.f32 0.0, %v1220
  %v1222 = vpop.f32.mrb[0].mxu0
  %v1223 = vadd.f32 0.0, %v1222
  %v1224 = vpop.f32.mrb[0].mxu0
  %v1225 = vpop.f32.mrb[0].mxu0
  %1226 = vdwg.mxu0
  %v1231 = vcombine.low %v1180, %v1182
  %v1232 = vcombine.low %v1221, %v1223
  %v1234 = vunpack.c.l.s4 1966171168
  %v1235 = vunpack.c.0.s8 %v1234
  %v1236 = vlaneseq
  %v1237 = vshrl.u32 %v1236, 7
  %v1238 = vsub.s32 %v1235, %v1237
  %v1239 = vrot.slane %v1231, %v1238
  %v1241 = vunpack.c.l.s4 1966171168
  %v1242 = vunpack.c.0.s8 %v1241
  %v1243 = vlaneseq
  %v1244 = vshrl.u32 %v1243, 7
  %v1245 = vsub.s32 %v1242, %v1244
  %v1246 = vrot.slane %v1232, %v1245
  %v1247 = vcombine.low %v1239, %v1246
  %v1248 = vcombine.high %v1239, %v1246
  %v1250 = vunpack.c.l.s4 1966171168
  %v1251 = vunpack.c.0.s8 %v1250
  %v1252 = vlaneseq
  %v1253 = vshrl.u32 %v1252, 7
  %v1254 = vsub.s32 %v1251, %v1253
  %v1255 = vrot.slane %v1247, %v1254
  %v1257 = vunpack.c.l.s4 1966171168
  %v1258 = vunpack.c.0.s8 %v1257
  %v1259 = vlaneseq
  %v1260 = vshrl.u32 %v1259, 7
  %v1261 = vsub.s32 %v1258, %v1260
  %v1262 = vrot.slane %v1248, %v1261
  %v1263 = vcombine.high %v1255, %v1255
  %v1264 = vcombine.high %v1262, %v1262
  %v1269 = vadd.f32 %v1126, %v1255
  %v1270 = vadd.f32 %v1128, %v1262
  %v1271 = vadd.f32 %v1130, %v1263
  %v1272 = vadd.f32 %v1132, %v1264
  %v1273 = vmul.f32 %v1269, 0.5
  %v1274 = vmul.f32 %v1270, 0.5
  %v1275 = vmul.f32 %v1271, 0.5
  %v1276 = vmul.f32 %v1272, 0.5
  %v1277 = vtanh.pop %v1273
  %v1278 = vtanh.pop %v1274
  %v1279 = vtanh.pop %v1275
  %v1280 = vtanh.pop %v1276
  %v1281 = vmul.f32 %v1277, 0.5
  %v1282 = vmul.f32 %v1278, 0.5
  %v1283 = vmul.f32 %v1279, 0.5
  %v1284 = vmul.f32 %v1280, 0.5
  %v1285 = vadd.f32 %v1281, 0.5
  %v1286 = vadd.f32 %v1282, 0.5
  %v1287 = vadd.f32 %v1283, 0.5
  %v1288 = vadd.f32 %v1284, 0.5
  %v1293 = vrot.slane %v1269, 1
  %v1294 = vrot.slane %v1270, 1
  %v1295 = vrot.slane %v1271, 1
  %v1296 = vrot.slane %v1272, 1
  %v1301 = vmul.f32 %v1293, 0.5
  %v1302 = vmul.f32 %v1294, 0.5
  %v1303 = vmul.f32 %v1295, 0.5
  %v1304 = vmul.f32 %v1296, 0.5
  %v1305 = vtanh.pop %v1301
  %v1306 = vtanh.pop %v1302
  %v1307 = vtanh.pop %v1303
  %v1308 = vtanh.pop %v1304
  %v1309 = vmul.f32 %v1305, 0.5
  %v1310 = vmul.f32 %v1306, 0.5
  %v1311 = vmul.f32 %v1307, 0.5
  %v1312 = vmul.f32 %v1308, 0.5
  %v1313 = vadd.f32 %v1309, 0.5
  %v1314 = vadd.f32 %v1310, 0.5
  %v1315 = vadd.f32 %v1311, 0.5
  %v1316 = vadd.f32 %v1312, 0.5
  %v1317 = vrot.slane %v1269, 2
  %v1318 = vrot.slane %v1270, 2
  %v1319 = vrot.slane %v1271, 2
  %v1320 = vrot.slane %v1272, 2
  %v1325 = vtanh.pop %v1317
  %v1326 = vtanh.pop %v1318
  %v1327 = vtanh.pop %v1319
  %v1328 = vtanh.pop %v1320
  %v1329 = vrot.slane %v1269, 3
  %v1330 = vrot.slane %v1270, 3
  %v1331 = vrot.slane %v1271, 3
  %v1332 = vrot.slane %v1272, 3
  %v1337 = vmul.f32 %v1329, 0.5
  %v1338 = vmul.f32 %v1330, 0.5
  %v1339 = vmul.f32 %v1331, 0.5
  %v1340 = vmul.f32 %v1332, 0.5
  %v1341 = vtanh.pop %v1337
  %v1342 = vtanh.pop %v1338
  %v1343 = vtanh.pop %v1339
  %v1344 = vtanh.pop %v1340
  %v1345 = vmul.f32 %v1341, 0.5
  %v1346 = vmul.f32 %v1342, 0.5
  %v1347 = vmul.f32 %v1343, 0.5
  %v1348 = vmul.f32 %v1344, 0.5
  %v1349 = vadd.f32 %v1345, 0.5
  %v1350 = vadd.f32 %v1346, 0.5
  %v1351 = vadd.f32 %v1347, 0.5
  %v1352 = vadd.f32 %v1348, 0.5
  %v1353 = vmul.f32 %v1313, %v1029
  %v1354 = vmul.f32 %v1314, %v1030
  %v1355 = vmul.f32 %v1315, %v1031
  %v1356 = vmul.f32 %v1316, %v1032
  %v1357 = vmul.f32 %v1285, %v1325
  %v1358 = vmul.f32 %v1286, %v1326
  %v1359 = vmul.f32 %v1287, %v1327
  %v1360 = vmul.f32 %v1288, %v1328
  %v1361 = vadd.f32 %v1353, %v1357
  %v1362 = vadd.f32 %v1354, %v1358
  %v1363 = vadd.f32 %v1355, %v1359
  %v1364 = vadd.f32 %v1356, %v1360
  %v1365 = vtanh.pop %v1361
  %v1366 = vtanh.pop %v1362
  %v1367 = vtanh.pop %v1363
  %v1368 = vtanh.pop %v1364
  %v1369 = vmul.f32 %v1349, %v1365
  %v1370 = vmul.f32 %v1350, %v1366
  %v1371 = vmul.f32 %v1351, %v1367
  %v1372 = vmul.f32 %v1352, %v1368
  %v1373 = vpack.c.bf16 %v1369, %v1369
  %v1374 = vpack.c.bf16 %v1370, %v1370
  %v1375 = vpack.c.bf16 %v1371, %v1371
  %v1376 = vpack.c.bf16 %v1372, %v1372
  %v1382 = vunpack.c.l.s4 1983009808
  %v1383 = vunpack.c.0.s8 %v1382
  %v1384 = vlaneseq
  %v1385 = vshrl.u32 %v1384, 7
  %v1386 = vsub.s32 %v1383, %v1385
  %v1387 = vrot.slane %v1373, %v1386
  %v1389 = vunpack.c.l.s4 1983009808
  %v1390 = vunpack.c.0.s8 %v1389
  %v1391 = vlaneseq
  %v1392 = vshrl.u32 %v1391, 7
  %v1393 = vsub.s32 %v1390, %v1392
  %v1394 = vrot.slane %v1374, %v1393
  %v1396 = vunpack.c.l.s4 1983009808
  %v1397 = vunpack.c.0.s8 %v1396
  %v1398 = vlaneseq
  %v1399 = vshrl.u32 %v1398, 7
  %v1400 = vsub.s32 %v1397, %v1399
  %v1401 = vrot.slane %v1375, %v1400
  %v1403 = vunpack.c.l.s4 1983009808
  %v1404 = vunpack.c.0.s8 %v1403
  %v1405 = vlaneseq
  %v1406 = vshrl.u32 %v1405, 7
  %v1407 = vsub.s32 %v1404, %v1406
  %v1408 = vrot.slane %v1376, %v1407
  %v1410 = vunpack.c.l.s4 1983009808
  %v1411 = vunpack.c.0.s8 %v1410
  %v1412 = vlaneseq
  %v1413 = vshrl.u32 %v1412, 7
  %v1414 = vsub.s32 %v1411, %v1413
  %v1415 = vrot.slane %v1387, %v1414
  %v1417 = vunpack.c.l.s4 1983009808
  %v1418 = vunpack.c.0.s8 %v1417
  %v1419 = vlaneseq
  %v1420 = vshrl.u32 %v1419, 7
  %v1421 = vsub.s32 %v1418, %v1420
  %v1422 = vrot.slane %v1394, %v1421
  %v1424 = vunpack.c.l.s4 1983009808
  %v1425 = vunpack.c.0.s8 %v1424
  %v1426 = vlaneseq
  %v1427 = vshrl.u32 %v1426, 7
  %v1428 = vsub.s32 %v1425, %v1427
  %v1429 = vrot.slane %v1401, %v1428
  %v1431 = vunpack.c.l.s4 1983009808
  %v1432 = vunpack.c.0.s8 %v1431
  %v1433 = vlaneseq
  %v1434 = vshrl.u32 %v1433, 7
  %v1435 = vsub.s32 %v1432, %v1434
  %v1436 = vrot.slane %v1408, %v1435
  %v1437 = vunpack.c.l.b16 %v1415
  %v1438 = vunpack.c.l.b16 %v1422
  %v1439 = vunpack.c.l.b16 %v1429
  %v1440 = vunpack.c.l.b16 %v1436
  %v1441 = vrot.slane %v1438, 7
  %v1442 = vsel %vm775, %v1441, %v1437
  %v1443 = vrot.slane %v1439, 6
  %v1444 = vsel %vm778, %v1443, %v1442
  %v1445 = vrot.slane %v1440, 5
  %v1446 = vsel %vm781, %v1445, %v1444
  %v1447 = vpack.c.b16 %v1446, %v1446
  %v1449 = vunpack.c.l.s4 1983009808
  %v1450 = vunpack.c.0.s8 %v1449
  %v1451 = vlaneseq
  %v1452 = vshrl.u32 %v1451, 7
  %v1453 = vsub.s32 %v1450, %v1452
  %v1454 = vrot.slane %v1447, %v1453
  %1456 = vst [vmem:[%s4 + $0x4] sm:$0x3] %v1454
  %s1457 = scalar_lea.vmem [#allocation2], 3
  %v1458 = vld [vmem:[%s1457] ss:$8 sm:$0xf]
  %s1459 = scalar_lea.vmem [#allocation2], 35
  %v1460 = vld [vmem:[%s1459] ss:$8 sm:$0xf]
  %s1461 = scalar_lea.vmem [#allocation2], 67
  %v1462 = vld [vmem:[%s1461] ss:$8 sm:$0xf]
  %s1463 = scalar_lea.vmem [#allocation2], 99
  %v1464 = vld [vmem:[%s1463] ss:$8 sm:$0xf]
  %v1465 = vunpack.c.l.b16 %v1373
  %v1466 = vunpack.c.l.b16 %v1374
  %v1467 = vunpack.c.l.b16 %v1375
  %v1468 = vunpack.c.l.b16 %v1376
  %v1469 = vrot.slane %v1466, 7
  %v1470 = vsel %vm775, %v1469, %v1465
  %v1471 = vrot.slane %v1467, 6
  %v1472 = vsel %vm778, %v1471, %v1470
  %v1473 = vrot.slane %v1468, 5
  %v1474 = vsel %vm781, %v1473, %v1472
  %v1475 = vpack.c.b16 %v1474, %v1474
  %1477 = vmatprep.subr.bf16.mxu0 %v415
  %1478 = vmatpush1.bf16.msra.mxu0 %v414
  %1479 = vmatprep.subr.bf16.mxu0 %v419
  %1480 = vmatpush1.bf16.msra.mxu0 %v418
  %1481 = vmatprep.subr.bf16.mxu0 %v423
  %1482 = vmatpush1.bf16.msra.mxu0 %v422
  %1483 = vmatprep.subr.bf16.mxu0 %v427
  %1484 = vmatpush1.bf16.msra.mxu0 %v426
  %1485 = vmatprep.subr.bf16.mxu0 %v431
  %1486 = vmatpush1.bf16.msra.mxu0 %v430
  %1487 = vmatprep.subr.bf16.mxu0 %v435
  %1488 = vmatpush1.bf16.msra.mxu0 %v434
  %1489 = vmatprep.subr.bf16.mxu0 %v439
  %1490 = vmatpush1.bf16.msra.mxu0 %v438
  %1491 = vmatprep.subr.bf16.mxu0 %v443
  %1492 = vmatpush1.bf16.msra.mxu0 %v442
  %1493 = vmatprep.subr.bf16.mxu0 0
  %1494 = vmatpush1.bf16.msra.mxu0 0
  %1495 = vmatprep.subr.bf16.mxu0 0
  %1496 = vmatpush1.bf16.msra.mxu0 0
  %1497 = vmatprep.subr.bf16.mxu0 0
  %1498 = vmatpush1.bf16.msra.mxu0 0
  %1499 = vmatprep.subr.bf16.mxu0 0
  %1500 = vmatpush1.bf16.msra.mxu0 0
  %1501 = vmatprep.subr.bf16.mxu0 0
  %1502 = vmatpush1.bf16.msra.mxu0 0
  %1503 = vmatprep.subr.bf16.mxu0 0
  %1504 = vmatpush1.bf16.msra.mxu0 0
  %1505 = vmatprep.subr.bf16.mxu0 0
  %1506 = vmatpush1.bf16.msra.mxu0 0
  %1507 = vmatprep.subr.bf16.mxu0 0
  %1508 = vmatpush1.bf16.msra.mxu0 0
  %1509 = vmatprep.mubr.bf16.mxu0 0
  %1510 = vmatmul.mubr.bf16.gmra.mrb[0].mxu0 %v1475
  %v1511 = vpop.f32.mrb[0].mxu0
  %v1512 = vadd.f32 0.0, %v1511
  %v1513 = vpop.f32.mrb[0].mxu0
  %v1514 = vadd.f32 0.0, %v1513
  %v1515 = vpop.f32.mrb[0].mxu0
  %v1516 = vpop.f32.mrb[0].mxu0
  %1517 = vdwg.mxu0
  %1518 = vmatprep.subr.bf16.mxu0 %v417
  %1519 = vmatpush1.bf16.msra.mxu0 %v416
  %1520 = vmatprep.subr.bf16.mxu0 %v421
  %1521 = vmatpush1.bf16.msra.mxu0 %v420
  %1522 = vmatprep.subr.bf16.mxu0 %v425
  %1523 = vmatpush1.bf16.msra.mxu0 %v424
  %1524 = vmatprep.subr.bf16.mxu0 %v429
  %1525 = vmatpush1.bf16.msra.mxu0 %v428
  %1526 = vmatprep.subr.bf16.mxu0 %v433
  %1527 = vmatpush1.bf16.msra.mxu0 %v432
  %1528 = vmatprep.subr.bf16.mxu0 %v437
  %1529 = vmatpush1.bf16.msra.mxu0 %v436
  %1530 = vmatprep.subr.bf16.mxu0 %v441
  %1531 = vmatpush1.bf16.msra.mxu0 %v440
  %1532 = vmatprep.subr.bf16.mxu0 %v445
  %1533 = vmatpush1.bf16.msra.mxu0 %v444
  %1534 = vmatprep.subr.bf16.mxu0 0
  %1535 = vmatpush1.bf16.msra.mxu0 0
  %1536 = vmatprep.subr.bf16.mxu0 0
  %1537 = vmatpush1.bf16.msra.mxu0 0
  %1538 = vmatprep.subr.bf16.mxu0 0
  %1539 = vmatpush1.bf16.msra.mxu0 0
  %1540 = vmatprep.subr.bf16.mxu0 0
  %1541 = vmatpush1.bf16.msra.mxu0 0
  %1542 = vmatprep.subr.bf16.mxu0 0
  %1543 = vmatpush1.bf16.msra.mxu0 0
  %1544 = vmatprep.subr.bf16.mxu0 0
  %1545 = vmatpush1.bf16.msra.mxu0 0
  %1546 = vmatprep.subr.bf16.mxu0 0
  %1547 = vmatpush1.bf16.msra.mxu0 0
  %1548 = vmatprep.subr.bf16.mxu0 0
  %1549 = vmatpush1.bf16.msra.mxu0 0
  %1550 = vmatprep.mubr.bf16.mxu0 0
  %1551 = vmatmul.mubr.bf16.gmra.mrb[0].mxu0 %v1475
  %v1552 = vpop.f32.mrb[0].mxu0
  %v1553 = vadd.f32 0.0, %v1552
  %v1554 = vpop.f32.mrb[0].mxu0
  %v1555 = vadd.f32 0.0, %v1554
  %v1556 = vpop.f32.mrb[0].mxu0
  %v1557 = vpop.f32.mrb[0].mxu0
  %1558 = vdwg.mxu0
  %v1563 = vcombine.low %v1512, %v1514
  %v1564 = vcombine.low %v1553, %v1555
  %v1566 = vunpack.c.l.s4 1966171168
  %v1567 = vunpack.c.0.s8 %v1566
  %v1568 = vlaneseq
  %v1569 = vshrl.u32 %v1568, 7
  %v1570 = vsub.s32 %v1567, %v1569
  %v1571 = vrot.slane %v1563, %v1570
  %v1573 = vunpack.c.l.s4 1966171168
  %v1574 = vunpack.c.0.s8 %v1573
  %v1575 = vlaneseq
  %v1576 = vshrl.u32 %v1575, 7
  %v1577 = vsub.s32 %v1574, %v1576
  %v1578 = vrot.slane %v1564, %v1577
  %v1579 = vcombine.low %v1571, %v1578
  %v1580 = vcombine.high %v1571, %v1578
  %v1582 = vunpack.c.l.s4 1966171168
  %v1583 = vunpack.c.0.s8 %v1582
  %v1584 = vlaneseq
  %v1585 = vshrl.u32 %v1584, 7
  %v1586 = vsub.s32 %v1583, %v1585
  %v1587 = vrot.slane %v1579, %v1586
  %v1589 = vunpack.c.l.s4 1966171168
  %v1590 = vunpack.c.0.s8 %v1589
  %v1591 = vlaneseq
  %v1592 = vshrl.u32 %v1591, 7
  %v1593 = vsub.s32 %v1590, %v1592
  %v1594 = vrot.slane %v1580, %v1593
  %v1595 = vcombine.high %v1587, %v1587
  %v1596 = vcombine.high %v1594, %v1594
  %v1601 = vadd.f32 %v1458, %v1587
  %v1602 = vadd.f32 %v1460, %v1594
  %v1603 = vadd.f32 %v1462, %v1595
  %v1604 = vadd.f32 %v1464, %v1596
  %v1605 = vmul.f32 %v1601, 0.5
  %v1606 = vmul.f32 %v1602, 0.5
  %v1607 = vmul.f32 %v1603, 0.5
  %v1608 = vmul.f32 %v1604, 0.5
  %v1609 = vtanh.pop %v1605
  %v1610 = vtanh.pop %v1606
  %v1611 = vtanh.pop %v1607
  %v1612 = vtanh.pop %v1608
  %v1613 = vmul.f32 %v1609, 0.5
  %v1614 = vmul.f32 %v1610, 0.5
  %v1615 = vmul.f32 %v1611, 0.5
  %v1616 = vmul.f32 %v1612, 0.5
  %v1617 = vadd.f32 %v1613, 0.5
  %v1618 = vadd.f32 %v1614, 0.5
  %v1619 = vadd.f32 %v1615, 0.5
  %v1620 = vadd.f32 %v1616, 0.5
  %v1625 = vrot.slane %v1601, 1
  %v1626 = vrot.slane %v1602, 1
  %v1627 = vrot.slane %v1603, 1
  %v1628 = vrot.slane %v1604, 1
  %v1633 = vmul.f32 %v1625, 0.5
  %v1634 = vmul.f32 %v1626, 0.5
  %v1635 = vmul.f32 %v1627, 0.5
  %v1636 = vmul.f32 %v1628, 0.5
  %v1637 = vtanh.pop %v1633
  %v1638 = vtanh.pop %v1634
  %v1639 = vtanh.pop %v1635
  %v1640 = vtanh.pop %v1636
  %v1641 = vmul.f32 %v1637, 0.5
  %v1642 = vmul.f32 %v1638, 0.5
  %v1643 = vmul.f32 %v1639, 0.5
  %v1644 = vmul.f32 %v1640, 0.5
  %v1645 = vadd.f32 %v1641, 0.5
  %v1646 = vadd.f32 %v1642, 0.5
  %v1647 = vadd.f32 %v1643, 0.5
  %v1648 = vadd.f32 %v1644, 0.5
  %v1649 = vrot.slane %v1601, 2
  %v1650 = vrot.slane %v1602, 2
  %v1651 = vrot.slane %v1603, 2
  %v1652 = vrot.slane %v1604, 2
  %v1657 = vtanh.pop %v1649
  %v1658 = vtanh.pop %v1650
  %v1659 = vtanh.pop %v1651
  %v1660 = vtanh.pop %v1652
  %v1661 = vrot.slane %v1601, 3
  %v1662 = vrot.slane %v1602, 3
  %v1663 = vrot.slane %v1603, 3
  %v1664 = vrot.slane %v1604, 3
  %v1669 = vmul.f32 %v1661, 0.5
  %v1670 = vmul.f32 %v1662, 0.5
  %v1671 = vmul.f32 %v1663, 0.5
  %v1672 = vmul.f32 %v1664, 0.5
  %v1673 = vtanh.pop %v1669
  %v1674 = vtanh.pop %v1670
  %v1675 = vtanh.pop %v1671
  %v1676 = vtanh.pop %v1672
  %v1677 = vmul.f32 %v1673, 0.5
  %v1678 = vmul.f32 %v1674, 0.5
  %v1679 = vmul.f32 %v1675, 0.5
  %v1680 = vmul.f32 %v1676, 0.5
  %v1681 = vadd.f32 %v1677, 0.5
  %v1682 = vadd.f32 %v1678, 0.5
  %v1683 = vadd.f32 %v1679, 0.5
  %v1684 = vadd.f32 %v1680, 0.5
  %v1685 = vmul.f32 %v1645, %v1361
  %v1686 = vmul.f32 %v1646, %v1362
  %v1687 = vmul.f32 %v1647, %v1363
  %v1688 = vmul.f32 %v1648, %v1364
  %v1689 = vmul.f32 %v1617, %v1657
  %v1690 = vmul.f32 %v1618, %v1658
  %v1691 = vmul.f32 %v1619, %v1659
  %v1692 = vmul.f32 %v1620, %v1660
  %v1693 = vadd.f32 %v1685, %v1689
  %v1694 = vadd.f32 %v1686, %v1690
  %v1695 = vadd.f32 %v1687, %v1691
  %v1696 = vadd.f32 %v1688, %v1692
  %v1697 = vtanh.pop %v1693
  %v1698 = vtanh.pop %v1694
  %v1699 = vtanh.pop %v1695
  %v1700 = vtanh.pop %v1696
  %v1701 = vmul.f32 %v1681, %v1697
  %v1702 = vmul.f32 %v1682, %v1698
  %v1703 = vmul.f32 %v1683, %v1699
  %v1704 = vmul.f32 %v1684, %v1700
  %v1705 = vpack.c.bf16 %v1701, %v1701
  %v1706 = vpack.c.bf16 %v1702, %v1702
  %v1707 = vpack.c.bf16 %v1703, %v1703
  %v1708 = vpack.c.bf16 %v1704, %v1704
  %v1714 = vunpack.c.l.s4 1983009808
  %v1715 = vunpack.c.0.s8 %v1714
  %v1716 = vlaneseq
  %v1717 = vshrl.u32 %v1716, 7
  %v1718 = vsub.s32 %v1715, %v1717
  %v1719 = vrot.slane %v1705, %v1718
  %v1721 = vunpack.c.l.s4 1983009808
  %v1722 = vunpack.c.0.s8 %v1721
  %v1723 = vlaneseq
  %v1724 = vshrl.u32 %v1723, 7
  %v1725 = vsub.s32 %v1722, %v1724
  %v1726 = vrot.slane %v1706, %v1725
  %v1728 = vunpack.c.l.s4 1983009808
  %v1729 = vunpack.c.0.s8 %v1728
  %v1730 = vlaneseq
  %v1731 = vshrl.u32 %v1730, 7
  %v1732 = vsub.s32 %v1729, %v1731
  %v1733 = vrot.slane %v1707, %v1732
  %v1735 = vunpack.c.l.s4 1983009808
  %v1736 = vunpack.c.0.s8 %v1735
  %v1737 = vlaneseq
  %v1738 = vshrl.u32 %v1737, 7
  %v1739 = vsub.s32 %v1736, %v1738
  %v1740 = vrot.slane %v1708, %v1739
  %v1742 = vunpack.c.l.s4 1983009808
  %v1743 = vunpack.c.0.s8 %v1742
  %v1744 = vlaneseq
  %v1745 = vshrl.u32 %v1744, 7
  %v1746 = vsub.s32 %v1743, %v1745
  %v1747 = vrot.slane %v1719, %v1746
  %v1749 = vunpack.c.l.s4 1983009808
  %v1750 = vunpack.c.0.s8 %v1749
  %v1751 = vlaneseq
  %v1752 = vshrl.u32 %v1751, 7
  %v1753 = vsub.s32 %v1750, %v1752
  %v1754 = vrot.slane %v1726, %v1753
  %v1756 = vunpack.c.l.s4 1983009808
  %v1757 = vunpack.c.0.s8 %v1756
  %v1758 = vlaneseq
  %v1759 = vshrl.u32 %v1758, 7
  %v1760 = vsub.s32 %v1757, %v1759
  %v1761 = vrot.slane %v1733, %v1760
  %v1763 = vunpack.c.l.s4 1983009808
  %v1764 = vunpack.c.0.s8 %v1763
  %v1765 = vlaneseq
  %v1766 = vshrl.u32 %v1765, 7
  %v1767 = vsub.s32 %v1764, %v1766
  %v1768 = vrot.slane %v1740, %v1767
  %v1769 = vunpack.c.l.b16 %v1747
  %v1770 = vunpack.c.l.b16 %v1754
  %v1771 = vunpack.c.l.b16 %v1761
  %v1772 = vunpack.c.l.b16 %v1768
  %v1773 = vrot.slane %v1770, 7
  %v1774 = vsel %vm775, %v1773, %v1769
  %v1775 = vrot.slane %v1771, 6
  %v1776 = vsel %vm778, %v1775, %v1774
  %v1777 = vrot.slane %v1772, 5
  %v1778 = vsel %vm781, %v1777, %v1776
  %v1779 = vpack.c.b16 %v1778, %v1778
  %v1781 = vunpack.c.l.s4 1983009808
  %v1782 = vunpack.c.0.s8 %v1781
  %v1783 = vlaneseq
  %v1784 = vshrl.u32 %v1783, 7
  %v1785 = vsub.s32 %v1782, %v1784
  %v1786 = vrot.slane %v1779, %v1785
  %1788 = vst [vmem:[%s4 + $0x6] sm:$0x3] %v1786
  %s1789 = scalar_lea.vmem [#allocation2], 4
  %v1790 = vld [vmem:[%s1789] ss:$8 sm:$0xf]
  %s1791 = scalar_lea.vmem [#allocation2], 36
  %v1792 = vld [vmem:[%s1791] ss:$8 sm:$0xf]
  %s1793 = scalar_lea.vmem [#allocation2], 68
  %v1794 = vld [vmem:[%s1793] ss:$8 sm:$0xf]
  %s1795 = scalar_lea.vmem [#allocation2], 100
  %v1796 = vld [vmem:[%s1795] ss:$8 sm:$0xf]
  %v1797 = vunpack.c.l.b16 %v1705
  %v1798 = vunpack.c.l.b16 %v1706
  %v1799 = vunpack.c.l.b16 %v1707
  %v1800 = vunpack.c.l.b16 %v1708
  %v1801 = vrot.slane %v1798, 7
  %v1802 = vsel %vm775, %v1801, %v1797
  %v1803 = vrot.slane %v1799, 6
  %v1804 = vsel %vm778, %v1803, %v1802
  %v1805 = vrot.slane %v1800, 5
  %v1806 = vsel %vm781, %v1805, %v1804
  %v1807 = vpack.c.b16 %v1806, %v1806
  %1809 = vmatprep.subr.bf16.mxu0 %v415
  %1810 = vmatpush1.bf16.msra.mxu0 %v414
  %1811 = vmatprep.subr.bf16.mxu0 %v419
  %1812 = vmatpush1.bf16.msra.mxu0 %v418
  %1813 = vmatprep.subr.bf16.mxu0 %v423
  %1814 = vmatpush1.bf16.msra.mxu0 %v422
  %1815 = vmatprep.subr.bf16.mxu0 %v427
  %1816 = vmatpush1.bf16.msra.mxu0 %v426
  %1817 = vmatprep.subr.bf16.mxu0 %v431
  %1818 = vmatpush1.bf16.msra.mxu0 %v430
  %1819 = vmatprep.subr.bf16.mxu0 %v435
  %1820 = vmatpush1.bf16.msra.mxu0 %v434
  %1821 = vmatprep.subr.bf16.mxu0 %v439
  %1822 = vmatpush1.bf16.msra.mxu0 %v438
  %1823 = vmatprep.subr.bf16.mxu0 %v443
  %1824 = vmatpush1.bf16.msra.mxu0 %v442
  %1825 = vmatprep.subr.bf16.mxu0 0
  %1826 = vmatpush1.bf16.msra.mxu0 0
  %1827 = vmatprep.subr.bf16.mxu0 0
  %1828 = vmatpush1.bf16.msra.mxu0 0
  %1829 = vmatprep.subr.bf16.mxu0 0
  %1830 = vmatpush1.bf16.msra.mxu0 0
  %1831 = vmatprep.subr.bf16.mxu0 0
  %1832 = vmatpush1.bf16.msra.mxu0 0
  %1833 = vmatprep.subr.bf16.mxu0 0
  %1834 = vmatpush1.bf16.msra.mxu0 0
  %1835 = vmatprep.subr.bf16.mxu0 0
  %1836 = vmatpush1.bf16.msra.mxu0 0
  %1837 = vmatprep.subr.bf16.mxu0 0
  %1838 = vmatpush1.bf16.msra.mxu0 0
  %1839 = vmatprep.subr.bf16.mxu0 0
  %1840 = vmatpush1.bf16.msra.mxu0 0
  %1841 = vmatprep.mubr.bf16.mxu0 0
  %1842 = vmatmul.mubr.bf16.gmra.mrb[0].mxu0 %v1807
  %v1843 = vpop.f32.mrb[0].mxu0
  %v1844 = vadd.f32 0.0, %v1843
  %v1845 = vpop.f32.mrb[0].mxu0
  %v1846 = vadd.f32 0.0, %v1845
  %v1847 = vpop.f32.mrb[0].mxu0
  %v1848 = vpop.f32.mrb[0].mxu0
  %1849 = vdwg.mxu0
  %1850 = vmatprep.subr.bf16.mxu0 %v417
  %1851 = vmatpush1.bf16.msra.mxu0 %v416
  %1852 = vmatprep.subr.bf16.mxu0 %v421
  %1853 = vmatpush1.bf16.msra.mxu0 %v420
  %1854 = vmatprep.subr.bf16.mxu0 %v425
  %1855 = vmatpush1.bf16.msra.mxu0 %v424
  %1856 = vmatprep.subr.bf16.mxu0 %v429
  %1857 = vmatpush1.bf16.msra.mxu0 %v428
  %1858 = vmatprep.subr.bf16.mxu0 %v433
  %1859 = vmatpush1.bf16.msra.mxu0 %v432
  %1860 = vmatprep.subr.bf16.mxu0 %v437
  %1861 = vmatpush1.bf16.msra.mxu0 %v436
  %1862 = vmatprep.subr.bf16.mxu0 %v441
  %1863 = vmatpush1.bf16.msra.mxu0 %v440
  %1864 = vmatprep.subr.bf16.mxu0 %v445
  %1865 = vmatpush1.bf16.msra.mxu0 %v444
  %1866 = vmatprep.subr.bf16.mxu0 0
  %1867 = vmatpush1.bf16.msra.mxu0 0
  %1868 = vmatprep.subr.bf16.mxu0 0
  %1869 = vmatpush1.bf16.msra.mxu0 0
  %1870 = vmatprep.subr.bf16.mxu0 0
  %1871 = vmatpush1.bf16.msra.mxu0 0
  %1872 = vmatprep.subr.bf16.mxu0 0
  %1873 = vmatpush1.bf16.msra.mxu0 0
  %1874 = vmatprep.subr.bf16.mxu0 0
  %1875 = vmatpush1.bf16.msra.mxu0 0
  %1876 = vmatprep.subr.bf16.mxu0 0
  %1877 = vmatpush1.bf16.msra.mxu0 0
  %1878 = vmatprep.subr.bf16.mxu0 0
  %1879 = vmatpush1.bf16.msra.mxu0 0
  %1880 = vmatprep.subr.bf16.mxu0 0
  %1881 = vmatpush1.bf16.msra.mxu0 0
  %1882 = vmatprep.mubr.bf16.mxu0 0
  %1883 = vmatmul.mubr.bf16.gmra.mrb[0].mxu0 %v1807
  %v1884 = vpop.f32.mrb[0].mxu0
  %v1885 = vadd.f32 0.0, %v1884
  %v1886 = vpop.f32.mrb[0].mxu0
  %v1887 = vadd.f32 0.0, %v1886
  %v1888 = vpop.f32.mrb[0].mxu0
  %v1889 = vpop.f32.mrb[0].mxu0
  %1890 = vdwg.mxu0
  %v1895 = vcombine.low %v1844, %v1846
  %v1896 = vcombine.low %v1885, %v1887
  %v1898 = vunpack.c.l.s4 1966171168
  %v1899 = vunpack.c.0.s8 %v1898
  %v1900 = vlaneseq
  %v1901 = vshrl.u32 %v1900, 7
  %v1902 = vsub.s32 %v1899, %v1901
  %v1903 = vrot.slane %v1895, %v1902
  %v1905 = vunpack.c.l.s4 1966171168
  %v1906 = vunpack.c.0.s8 %v1905
  %v1907 = vlaneseq
  %v1908 = vshrl.u32 %v1907, 7
  %v1909 = vsub.s32 %v1906, %v1908
  %v1910 = vrot.slane %v1896, %v1909
  %v1911 = vcombine.low %v1903, %v1910
  %v1912 = vcombine.high %v1903, %v1910
  %v1914 = vunpack.c.l.s4 1966171168
  %v1915 = vunpack.c.0.s8 %v1914
  %v1916 = vlaneseq
  %v1917 = vshrl.u32 %v1916, 7
  %v1918 = vsub.s32 %v1915, %v1917
  %v1919 = vrot.slane %v1911, %v1918
  %v1921 = vunpack.c.l.s4 1966171168
  %v1922 = vunpack.c.0.s8 %v1921
  %v1923 = vlaneseq
  %v1924 = vshrl.u32 %v1923, 7
  %v1925 = vsub.s32 %v1922, %v1924
  %v1926 = vrot.slane %v1912, %v1925
  %v1927 = vcombine.high %v1919, %v1919
  %v1928 = vcombine.high %v1926, %v1926
  %v1933 = vadd.f32 %v1790, %v1919
  %v1934 = vadd.f32 %v1792, %v1926
  %v1935 = vadd.f32 %v1794, %v1927
  %v1936 = vadd.f32 %v1796, %v1928
  %v1937 = vmul.f32 %v1933, 0.5
  %v1938 = vmul.f32 %v1934, 0.5
  %v1939 = vmul.f32 %v1935, 0.5
  %v1940 = vmul.f32 %v1936, 0.5
  %v1941 = vtanh.pop %v1937
  %v1942 = vtanh.pop %v1938
  %v1943 = vtanh.pop %v1939
  %v1944 = vtanh.pop %v1940
  %v1945 = vmul.f32 %v1941, 0.5
  %v1946 = vmul.f32 %v1942, 0.5
  %v1947 = vmul.f32 %v1943, 0.5
  %v1948 = vmul.f32 %v1944, 0.5
  %v1949 = vadd.f32 %v1945, 0.5
  %v1950 = vadd.f32 %v1946, 0.5
  %v1951 = vadd.f32 %v1947, 0.5
  %v1952 = vadd.f32 %v1948, 0.5
  %v1957 = vrot.slane %v1933, 1
  %v1958 = vrot.slane %v1934, 1
  %v1959 = vrot.slane %v1935, 1
  %v1960 = vrot.slane %v1936, 1
  %v1965 = vmul.f32 %v1957, 0.5
  %v1966 = vmul.f32 %v1958, 0.5
  %v1967 = vmul.f32 %v1959, 0.5
  %v1968 = vmul.f32 %v1960, 0.5
  %v1969 = vtanh.pop %v1965
  %v1970 = vtanh.pop %v1966
  %v1971 = vtanh.pop %v1967
  %v1972 = vtanh.pop %v1968
  %v1973 = vmul.f32 %v1969, 0.5
  %v1974 = vmul.f32 %v1970, 0.5
  %v1975 = vmul.f32 %v1971, 0.5
  %v1976 = vmul.f32 %v1972, 0.5
  %v1977 = vadd.f32 %v1973, 0.5
  %v1978 = vadd.f32 %v1974, 0.5
  %v1979 = vadd.f32 %v1975, 0.5
  %v1980 = vadd.f32 %v1976, 0.5
  %v1981 = vrot.slane %v1933, 2
  %v1982 = vrot.slane %v1934, 2
  %v1983 = vrot.slane %v1935, 2
  %v1984 = vrot.slane %v1936, 2
  %v1989 = vtanh.pop %v1981
  %v1990 = vtanh.pop %v1982
  %v1991 = vtanh.pop %v1983
  %v1992 = vtanh.pop %v1984
  %v1993 = vrot.slane %v1933, 3
  %v1994 = vrot.slane %v1934, 3
  %v1995 = vrot.slane %v1935, 3
  %v1996 = vrot.slane %v1936, 3
  %v2001 = vmul.f32 %v1993, 0.5
  %v2002 = vmul.f32 %v1994, 0.5
  %v2003 = vmul.f32 %v1995, 0.5
  %v2004 = vmul.f32 %v1996, 0.5
  %v2005 = vtanh.pop %v2001
  %v2006 = vtanh.pop %v2002
  %v2007 = vtanh.pop %v2003
  %v2008 = vtanh.pop %v2004
  %v2009 = vmul.f32 %v2005, 0.5
  %v2010 = vmul.f32 %v2006, 0.5
  %v2011 = vmul.f32 %v2007, 0.5
  %v2012 = vmul.f32 %v2008, 0.5
  %v2013 = vadd.f32 %v2009, 0.5
  %v2014 = vadd.f32 %v2010, 0.5
  %v2015 = vadd.f32 %v2011, 0.5
  %v2016 = vadd.f32 %v2012, 0.5
  %v2017 = vmul.f32 %v1977, %v1693
  %v2018 = vmul.f32 %v1978, %v1694
  %v2019 = vmul.f32 %v1979, %v1695
  %v2020 = vmul.f32 %v1980, %v1696
  %v2021 = vmul.f32 %v1949, %v1989
  %v2022 = vmul.f32 %v1950, %v1990
  %v2023 = vmul.f32 %v1951, %v1991
  %v2024 = vmul.f32 %v1952, %v1992
  %v2025 = vadd.f32 %v2017, %v2021
  %v2026 = vadd.f32 %v2018, %v2022
  %v2027 = vadd.f32 %v2019, %v2023
  %v2028 = vadd.f32 %v2020, %v2024
  %v2029 = vtanh.pop %v2025
  %v2030 = vtanh.pop %v2026
  %v2031 = vtanh.pop %v2027
  %v2032 = vtanh.pop %v2028
  %v2033 = vmul.f32 %v2013, %v2029
  %v2034 = vmul.f32 %v2014, %v2030
  %v2035 = vmul.f32 %v2015, %v2031
  %v2036 = vmul.f32 %v2016, %v2032
  %v2037 = vpack.c.bf16 %v2033, %v2033
  %v2038 = vpack.c.bf16 %v2034, %v2034
  %v2039 = vpack.c.bf16 %v2035, %v2035
  %v2040 = vpack.c.bf16 %v2036, %v2036
  %v2046 = vunpack.c.l.s4 1983009808
  %v2047 = vunpack.c.0.s8 %v2046
  %v2048 = vlaneseq
  %v2049 = vshrl.u32 %v2048, 7
  %v2050 = vsub.s32 %v2047, %v2049
  %v2051 = vrot.slane %v2037, %v2050
  %v2053 = vunpack.c.l.s4 1983009808
  %v2054 = vunpack.c.0.s8 %v2053
  %v2055 = vlaneseq
  %v2056 = vshrl.u32 %v2055, 7
  %v2057 = vsub.s32 %v2054, %v2056
  %v2058 = vrot.slane %v2038, %v2057
  %v2060 = vunpack.c.l.s4 1983009808
  %v2061 = vunpack.c.0.s8 %v2060
  %v2062 = vlaneseq
  %v2063 = vshrl.u32 %v2062, 7
  %v2064 = vsub.s32 %v2061, %v2063
  %v2065 = vrot.slane %v2039, %v2064
  %v2067 = vunpack.c.l.s4 1983009808
  %v2068 = vunpack.c.0.s8 %v2067
  %v2069 = vlaneseq
  %v2070 = vshrl.u32 %v2069, 7
  %v2071 = vsub.s32 %v2068, %v2070
  %v2072 = vrot.slane %v2040, %v2071
  %v2074 = vunpack.c.l.s4 1983009808
  %v2075 = vunpack.c.0.s8 %v2074
  %v2076 = vlaneseq
  %v2077 = vshrl.u32 %v2076, 7
  %v2078 = vsub.s32 %v2075, %v2077
  %v2079 = vrot.slane %v2051, %v2078
  %v2081 = vunpack.c.l.s4 1983009808
  %v2082 = vunpack.c.0.s8 %v2081
  %v2083 = vlaneseq
  %v2084 = vshrl.u32 %v2083, 7
  %v2085 = vsub.s32 %v2082, %v2084
  %v2086 = vrot.slane %v2058, %v2085
  %v2088 = vunpack.c.l.s4 1983009808
  %v2089 = vunpack.c.0.s8 %v2088
  %v2090 = vlaneseq
  %v2091 = vshrl.u32 %v2090, 7
  %v2092 = vsub.s32 %v2089, %v2091
  %v2093 = vrot.slane %v2065, %v2092
  %v2095 = vunpack.c.l.s4 1983009808
  %v2096 = vunpack.c.0.s8 %v2095
  %v2097 = vlaneseq
  %v2098 = vshrl.u32 %v2097, 7
  %v2099 = vsub.s32 %v2096, %v2098
  %v2100 = vrot.slane %v2072, %v2099
  %v2101 = vunpack.c.l.b16 %v2079
  %v2102 = vunpack.c.l.b16 %v2086
  %v2103 = vunpack.c.l.b16 %v2093
  %v2104 = vunpack.c.l.b16 %v2100
  %v2105 = vrot.slane %v2102, 7
  %v2106 = vsel %vm775, %v2105, %v2101
  %v2107 = vrot.slane %v2103, 6
  %v2108 = vsel %vm778, %v2107, %v2106
  %v2109 = vrot.slane %v2104, 5
  %v2110 = vsel %vm781, %v2109, %v2108
  %v2111 = vpack.c.b16 %v2110, %v2110
  %v2113 = vunpack.c.l.s4 1983009808
  %v2114 = vunpack.c.0.s8 %v2113
  %v2115 = vlaneseq
  %v2116 = vshrl.u32 %v2115, 7
  %v2117 = vsub.s32 %v2114, %v2116
  %v2118 = vrot.slane %v2111, %v2117
  %2120 = vst [vmem:[%s4 + $0x8] sm:$0x3] %v2118
  %s2121 = scalar_lea.vmem [#allocation2], 5
  %v2122 = vld [vmem:[%s2121] ss:$8 sm:$0xf]
  %s2123 = scalar_lea.vmem [#allocation2], 37
  %v2124 = vld [vmem:[%s2123] ss:$8 sm:$0xf]
  %s2125 = scalar_lea.vmem [#allocation2], 69
  %v2126 = vld [vmem:[%s2125] ss:$8 sm:$0xf]
  %s2127 = scalar_lea.vmem [#allocation2], 101
  %v2128 = vld [vmem:[%s2127] ss:$8 sm:$0xf]
  %v2129 = vunpack.c.l.b16 %v2037
  %v2130 = vunpack.c.l.b16 %v2038
  %v2131 = vunpack.c.l.b16 %v2039
  %v2132 = vunpack.c.l.b16 %v2040
  %v2133 = vrot.slane %v2130, 7
  %v2134 = vsel %vm775, %v2133, %v2129
  %v2135 = vrot.slane %v2131, 6
  %v2136 = vsel %vm778, %v2135, %v2134
  %v2137 = vrot.slane %v2132, 5
  %v2138 = vsel %vm781, %v2137, %v2136
  %v2139 = vpack.c.b16 %v2138, %v2138
  %2141 = vmatprep.subr.bf16.mxu0 %v415
  %2142 = vmatpush1.bf16.msra.mxu0 %v414
  %2143 = vmatprep.subr.bf16.mxu0 %v419
  %2144 = vmatpush1.bf16.msra.mxu0 %v418
  %2145 = vmatprep.subr.bf16.mxu0 %v423
  %2146 = vmatpush1.bf16.msra.mxu0 %v422
  %2147 = vmatprep.subr.bf16.mxu0 %v427
  %2148 = vmatpush1.bf16.msra.mxu0 %v426
  %2149 = vmatprep.subr.bf16.mxu0 %v431
  %2150 = vmatpush1.bf16.msra.mxu0 %v430
  %2151 = vmatprep.subr.bf16.mxu0 %v435
  %2152 = vmatpush1.bf16.msra.mxu0 %v434
  %2153 = vmatprep.subr.bf16.mxu0 %v439
  %2154 = vmatpush1.bf16.msra.mxu0 %v438
  %2155 = vmatprep.subr.bf16.mxu0 %v443
  %2156 = vmatpush1.bf16.msra.mxu0 %v442
  %2157 = vmatprep.subr.bf16.mxu0 0
  %2158 = vmatpush1.bf16.msra.mxu0 0
  %2159 = vmatprep.subr.bf16.mxu0 0
  %2160 = vmatpush1.bf16.msra.mxu0 0
  %2161 = vmatprep.subr.bf16.mxu0 0
  %2162 = vmatpush1.bf16.msra.mxu0 0
  %2163 = vmatprep.subr.bf16.mxu0 0
  %2164 = vmatpush1.bf16.msra.mxu0 0
  %2165 = vmatprep.subr.bf16.mxu0 0
  %2166 = vmatpush1.bf16.msra.mxu0 0
  %2167 = vmatprep.subr.bf16.mxu0 0
  %2168 = vmatpush1.bf16.msra.mxu0 0
  %2169 = vmatprep.subr.bf16.mxu0 0
  %2170 = vmatpush1.bf16.msra.mxu0 0
  %2171 = vmatprep.subr.bf16.mxu0 0
  %2172 = vmatpush1.bf16.msra.mxu0 0
  %2173 = vmatprep.mubr.bf16.mxu0 0
  %2174 = vmatmul.mubr.bf16.gmra.mrb[0].mxu0 %v2139
  %v2175 = vpop.f32.mrb[0].mxu0
  %v2176 = vadd.f32 0.0, %v2175
  %v2177 = vpop.f32.mrb[0].mxu0
  %v2178 = vadd.f32 0.0, %v2177
  %v2179 = vpop.f32.mrb[0].mxu0
  %v2180 = vpop.f32.mrb[0].mxu0
  %2181 = vdwg.mxu0
  %2182 = vmatprep.subr.bf16.mxu0 %v417
  %2183 = vmatpush1.bf16.msra.mxu0 %v416
  %2184 = vmatprep.subr.bf16.mxu0 %v421
  %2185 = vmatpush1.bf16.msra.mxu0 %v420
  %2186 = vmatprep.subr.bf16.mxu0 %v425
  %2187 = vmatpush1.bf16.msra.mxu0 %v424
  %2188 = vmatprep.subr.bf16.mxu0 %v429
  %2189 = vmatpush1.bf16.msra.mxu0 %v428
  %2190 = vmatprep.subr.bf16.mxu0 %v433
  %2191 = vmatpush1.bf16.msra.mxu0 %v432
  %2192 = vmatprep.subr.bf16.mxu0 %v437
  %2193 = vmatpush1.bf16.msra.mxu0 %v436
  %2194 = vmatprep.subr.bf16.mxu0 %v441
  %2195 = vmatpush1.bf16.msra.mxu0 %v440
  %2196 = vmatprep.subr.bf16.mxu0 %v445
  %2197 = vmatpush1.bf16.msra.mxu0 %v444
  %2198 = vmatprep.subr.bf16.mxu0 0
  %2199 = vmatpush1.bf16.msra.mxu0 0
  %2200 = vmatprep.subr.bf16.mxu0 0
  %2201 = vmatpush1.bf16.msra.mxu0 0
  %2202 = vmatprep.subr.bf16.mxu0 0
  %2203 = vmatpush1.bf16.msra.mxu0 0
  %2204 = vmatprep.subr.bf16.mxu0 0
  %2205 = vmatpush1.bf16.msra.mxu0 0
  %2206 = vmatprep.subr.bf16.mxu0 0
  %2207 = vmatpush1.bf16.msra.mxu0 0
  %2208 = vmatprep.subr.bf16.mxu0 0
  %2209 = vmatpush1.bf16.msra.mxu0 0
  %2210 = vmatprep.subr.bf16.mxu0 0
  %2211 = vmatpush1.bf16.msra.mxu0 0
  %2212 = vmatprep.subr.bf16.mxu0 0
  %2213 = vmatpush1.bf16.msra.mxu0 0
  %2214 = vmatprep.mubr.bf16.mxu0 0
  %2215 = vmatmul.mubr.bf16.gmra.mrb[0].mxu0 %v2139
  %v2216 = vpop.f32.mrb[0].mxu0
  %v2217 = vadd.f32 0.0, %v2216
  %v2218 = vpop.f32.mrb[0].mxu0
  %v2219 = vadd.f32 0.0, %v2218
  %v2220 = vpop.f32.mrb[0].mxu0
  %v2221 = vpop.f32.mrb[0].mxu0
  %2222 = vdwg.mxu0
  %v2227 = vcombine.low %v2176, %v2178
  %v2228 = vcombine.low %v2217, %v2219
  %v2230 = vunpack.c.l.s4 1966171168
  %v2231 = vunpack.c.0.s8 %v2230
  %v2232 = vlaneseq
  %v2233 = vshrl.u32 %v2232, 7
  %v2234 = vsub.s32 %v2231, %v2233
  %v2235 = vrot.slane %v2227, %v2234
  %v2237 = vunpack.c.l.s4 1966171168
  %v2238 = vunpack.c.0.s8 %v2237
  %v2239 = vlaneseq
  %v2240 = vshrl.u32 %v2239, 7
  %v2241 = vsub.s32 %v2238, %v2240
  %v2242 = vrot.slane %v2228, %v2241
  %v2243 = vcombine.low %v2235, %v2242
  %v2244 = vcombine.high %v2235, %v2242
  %v2246 = vunpack.c.l.s4 1966171168
  %v2247 = vunpack.c.0.s8 %v2246
  %v2248 = vlaneseq
  %v2249 = vshrl.u32 %v2248, 7
  %v2250 = vsub.s32 %v2247, %v2249
  %v2251 = vrot.slane %v2243, %v2250
  %v2253 = vunpack.c.l.s4 1966171168
  %v2254 = vunpack.c.0.s8 %v2253
  %v2255 = vlaneseq
  %v2256 = vshrl.u32 %v2255, 7
  %v2257 = vsub.s32 %v2254, %v2256
  %v2258 = vrot.slane %v2244, %v2257
  %v2259 = vcombine.high %v2251, %v2251
  %v2260 = vcombine.high %v2258, %v2258
  %v2265 = vadd.f32 %v2122, %v2251
  %v2266 = vadd.f32 %v2124, %v2258
  %v2267 = vadd.f32 %v2126, %v2259
  %v2268 = vadd.f32 %v2128, %v2260
  %v2269 = vmul.f32 %v2265, 0.5
  %v2270 = vmul.f32 %v2266, 0.5
  %v2271 = vmul.f32 %v2267, 0.5
  %v2272 = vmul.f32 %v2268, 0.5
  %v2273 = vtanh.pop %v2269
  %v2274 = vtanh.pop %v2270
  %v2275 = vtanh.pop %v2271
  %v2276 = vtanh.pop %v2272
  %v2277 = vmul.f32 %v2273, 0.5
  %v2278 = vmul.f32 %v2274, 0.5
  %v2279 = vmul.f32 %v2275, 0.5
  %v2280 = vmul.f32 %v2276, 0.5
  %v2281 = vadd.f32 %v2277, 0.5
  %v2282 = vadd.f32 %v2278, 0.5
  %v2283 = vadd.f32 %v2279, 0.5
  %v2284 = vadd.f32 %v2280, 0.5
  %v2289 = vrot.slane %v2265, 1
  %v2290 = vrot.slane %v2266, 1
  %v2291 = vrot.slane %v2267, 1
  %v2292 = vrot.slane %v2268, 1
  %v2297 = vmul.f32 %v2289, 0.5
  %v2298 = vmul.f32 %v2290, 0.5
  %v2299 = vmul.f32 %v2291, 0.5
  %v2300 = vmul.f32 %v2292, 0.5
  %v2301 = vtanh.pop %v2297
  %v2302 = vtanh.pop %v2298
  %v2303 = vtanh.pop %v2299
  %v2304 = vtanh.pop %v2300
  %v2305 = vmul.f32 %v2301, 0.5
  %v2306 = vmul.f32 %v2302, 0.5
  %v2307 = vmul.f32 %v2303, 0.5
  %v2308 = vmul.f32 %v2304, 0.5
  %v2309 = vadd.f32 %v2305, 0.5
  %v2310 = vadd.f32 %v2306, 0.5
  %v2311 = vadd.f32 %v2307, 0.5
  %v2312 = vadd.f32 %v2308, 0.5
  %v2313 = vrot.slane %v2265, 2
  %v2314 = vrot.slane %v2266, 2
  %v2315 = vrot.slane %v2267, 2
  %v2316 = vrot.slane %v2268, 2
  %v2321 = vtanh.pop %v2313
  %v2322 = vtanh.pop %v2314
  %v2323 = vtanh.pop %v2315
  %v2324 = vtanh.pop %v2316
  %v2325 = vrot.slane %v2265, 3
  %v2326 = vrot.slane %v2266, 3
  %v2327 = vrot.slane %v2267, 3
  %v2328 = vrot.slane %v2268, 3
  %v2333 = vmul.f32 %v2325, 0.5
  %v2334 = vmul.f32 %v2326, 0.5
  %v2335 = vmul.f32 %v2327, 0.5
  %v2336 = vmul.f32 %v2328, 0.5
  %v2337 = vtanh.pop %v2333
  %v2338 = vtanh.pop %v2334
  %v2339 = vtanh.pop %v2335
  %v2340 = vtanh.pop %v2336
  %v2341 = vmul.f32 %v2337, 0.5
  %v2342 = vmul.f32 %v2338, 0.5
  %v2343 = vmul.f32 %v2339, 0.5
  %v2344 = vmul.f32 %v2340, 0.5
  %v2345 = vadd.f32 %v2341, 0.5
  %v2346 = vadd.f32 %v2342, 0.5
  %v2347 = vadd.f32 %v2343, 0.5
  %v2348 = vadd.f32 %v2344, 0.5
  %v2349 = vmul.f32 %v2309, %v2025
  %v2350 = vmul.f32 %v2310, %v2026
  %v2351 = vmul.f32 %v2311, %v2027
  %v2352 = vmul.f32 %v2312, %v2028
  %v2353 = vmul.f32 %v2281, %v2321
  %v2354 = vmul.f32 %v2282, %v2322
  %v2355 = vmul.f32 %v2283, %v2323
  %v2356 = vmul.f32 %v2284, %v2324
  %v2357 = vadd.f32 %v2349, %v2353
  %v2358 = vadd.f32 %v2350, %v2354
  %v2359 = vadd.f32 %v2351, %v2355
  %v2360 = vadd.f32 %v2352, %v2356
  %v2361 = vtanh.pop %v2357
  %v2362 = vtanh.pop %v2358
  %v2363 = vtanh.pop %v2359
  %v2364 = vtanh.pop %v2360
  %v2365 = vmul.f32 %v2345, %v2361
  %v2366 = vmul.f32 %v2346, %v2362
  %v2367 = vmul.f32 %v2347, %v2363
  %v2368 = vmul.f32 %v2348, %v2364
  %v2369 = vpack.c.bf16 %v2365, %v2365
  %v2370 = vpack.c.bf16 %v2366, %v2366
  %v2371 = vpack.c.bf16 %v2367, %v2367
  %v2372 = vpack.c.bf16 %v2368, %v2368
  %v2378 = vunpack.c.l.s4 1983009808
  %v2379 = vunpack.c.0.s8 %v2378
  %v2380 = vlaneseq
  %v2381 = vshrl.u32 %v2380, 7
  %v2382 = vsub.s32 %v2379, %v2381
  %v2383 = vrot.slane %v2369, %v2382
  %v2385 = vunpack.c.l.s4 1983009808
  %v2386 = vunpack.c.0.s8 %v2385
  %v2387 = vlaneseq
  %v2388 = vshrl.u32 %v2387, 7
  %v2389 = vsub.s32 %v2386, %v2388
  %v2390 = vrot.slane %v2370, %v2389
  %v2392 = vunpack.c.l.s4 1983009808
  %v2393 = vunpack.c.0.s8 %v2392
  %v2394 = vlaneseq
  %v2395 = vshrl.u32 %v2394, 7
  %v2396 = vsub.s32 %v2393, %v2395
  %v2397 = vrot.slane %v2371, %v2396
  %v2399 = vunpack.c.l.s4 1983009808
  %v2400 = vunpack.c.0.s8 %v2399
  %v2401 = vlaneseq
  %v2402 = vshrl.u32 %v2401, 7
  %v2403 = vsub.s32 %v2400, %v2402
  %v2404 = vrot.slane %v2372, %v2403
  %v2406 = vunpack.c.l.s4 1983009808
  %v2407 = vunpack.c.0.s8 %v2406
  %v2408 = vlaneseq
  %v2409 = vshrl.u32 %v2408, 7
  %v2410 = vsub.s32 %v2407, %v2409
  %v2411 = vrot.slane %v2383, %v2410
  %v2413 = vunpack.c.l.s4 1983009808
  %v2414 = vunpack.c.0.s8 %v2413
  %v2415 = vlaneseq
  %v2416 = vshrl.u32 %v2415, 7
  %v2417 = vsub.s32 %v2414, %v2416
  %v2418 = vrot.slane %v2390, %v2417
  %v2420 = vunpack.c.l.s4 1983009808
  %v2421 = vunpack.c.0.s8 %v2420
  %v2422 = vlaneseq
  %v2423 = vshrl.u32 %v2422, 7
  %v2424 = vsub.s32 %v2421, %v2423
  %v2425 = vrot.slane %v2397, %v2424
  %v2427 = vunpack.c.l.s4 1983009808
  %v2428 = vunpack.c.0.s8 %v2427
  %v2429 = vlaneseq
  %v2430 = vshrl.u32 %v2429, 7
  %v2431 = vsub.s32 %v2428, %v2430
  %v2432 = vrot.slane %v2404, %v2431
  %v2433 = vunpack.c.l.b16 %v2411
  %v2434 = vunpack.c.l.b16 %v2418
  %v2435 = vunpack.c.l.b16 %v2425
  %v2436 = vunpack.c.l.b16 %v2432
  %v2437 = vrot.slane %v2434, 7
  %v2438 = vsel %vm775, %v2437, %v2433
  %v2439 = vrot.slane %v2435, 6
  %v2440 = vsel %vm778, %v2439, %v2438
  %v2441 = vrot.slane %v2436, 5
  %v2442 = vsel %vm781, %v2441, %v2440
  %v2443 = vpack.c.b16 %v2442, %v2442
  %v2445 = vunpack.c.l.s4 1983009808
  %v2446 = vunpack.c.0.s8 %v2445
  %v2447 = vlaneseq
  %v2448 = vshrl.u32 %v2447, 7
  %v2449 = vsub.s32 %v2446, %v2448
  %v2450 = vrot.slane %v2443, %v2449
  %2452 = vst [vmem:[%s4 + $0xa] sm:$0x3] %v2450
  %s2453 = scalar_lea.vmem [#allocation2], 6
  %v2454 = vld [vmem:[%s2453] ss:$8 sm:$0xf]
  %s2455 = scalar_lea.vmem [#allocation2], 38
  %v2456 = vld [vmem:[%s2455] ss:$8 sm:$0xf]
  %s2457 = scalar_lea.vmem [#allocation2], 70
  %v2458 = vld [vmem:[%s2457] ss:$8 sm:$0xf]
  %s2459 = scalar_lea.vmem [#allocation2], 102
  %v2460 = vld [vmem:[%s2459] ss:$8 sm:$0xf]
  %v2461 = vunpack.c.l.b16 %v2369
  %v2462 = vunpack.c.l.b16 %v2370
  %v2463 = vunpack.c.l.b16 %v2371
  %v2464 = vunpack.c.l.b16 %v2372
  %v2465 = vrot.slane %v2462, 7
  %v2466 = vsel %vm775, %v2465, %v2461
  %v2467 = vrot.slane %v2463, 6
  %v2468 = vsel %vm778, %v2467, %v2466
  %v2469 = vrot.slane %v2464, 5
  %v2470 = vsel %vm781, %v2469, %v2468
  %v2471 = vpack.c.b16 %v2470, %v2470
  %2473 = vmatprep.subr.bf16.mxu0 %v415
  %2474 = vmatpush1.bf16.msra.mxu0 %v414
  %2475 = vmatprep.subr.bf16.mxu0 %v419
  %2476 = vmatpush1.bf16.msra.mxu0 %v418
  %2477 = vmatprep.subr.bf16.mxu0 %v423
  %2478 = vmatpush1.bf16.msra.mxu0 %v422
  %2479 = vmatprep.subr.bf16.mxu0 %v427
  %2480 = vmatpush1.bf16.msra.mxu0 %v426
  %2481 = vmatprep.subr.bf16.mxu0 %v431
  %2482 = vmatpush1.bf16.msra.mxu0 %v430
  %2483 = vmatprep.subr.bf16.mxu0 %v435
  %2484 = vmatpush1.bf16.msra.mxu0 %v434
  %2485 = vmatprep.subr.bf16.mxu0 %v439
  %2486 = vmatpush1.bf16.msra.mxu0 %v438
  %2487 = vmatprep.subr.bf16.mxu0 %v443
  %2488 = vmatpush1.bf16.msra.mxu0 %v442
  %2489 = vmatprep.subr.bf16.mxu0 0
  %2490 = vmatpush1.bf16.msra.mxu0 0
  %2491 = vmatprep.subr.bf16.mxu0 0
  %2492 = vmatpush1.bf16.msra.mxu0 0
  %2493 = vmatprep.subr.bf16.mxu0 0
  %2494 = vmatpush1.bf16.msra.mxu0 0
  %2495 = vmatprep.subr.bf16.mxu0 0
  %2496 = vmatpush1.bf16.msra.mxu0 0
  %2497 = vmatprep.subr.bf16.mxu0 0
  %2498 = vmatpush1.bf16.msra.mxu0 0
  %2499 = vmatprep.subr.bf16.mxu0 0
  %2500 = vmatpush1.bf16.msra.mxu0 0
  %2501 = vmatprep.subr.bf16.mxu0 0
  %2502 = vmatpush1.bf16.msra.mxu0 0
  %2503 = vmatprep.subr.bf16.mxu0 0
  %2504 = vmatpush1.bf16.msra.mxu0 0
  %2505 = vmatprep.mubr.bf16.mxu0 0
  %2506 = vmatmul.mubr.bf16.gmra.mrb[0].mxu0 %v2471
  %v2507 = vpop.f32.mrb[0].mxu0
  %v2508 = vadd.f32 0.0, %v2507
  %v2509 = vpop.f32.mrb[0].mxu0
  %v2510 = vadd.f32 0.0, %v2509
  %v2511 = vpop.f32.mrb[0].mxu0
  %v2512 = vpop.f32.mrb[0].mxu0
  %2513 = vdwg.mxu0
  %2514 = vmatprep.subr.bf16.mxu0 %v417
  %2515 = vmatpush1.bf16.msra.mxu0 %v416
  %2516 = vmatprep.subr.bf16.mxu0 %v421
  %2517 = vmatpush1.bf16.msra.mxu0 %v420
  %2518 = vmatprep.subr.bf16.mxu0 %v425
  %2519 = vmatpush1.bf16.msra.mxu0 %v424
  %2520 = vmatprep.subr.bf16.mxu0 %v429
  %2521 = vmatpush1.bf16.msra.mxu0 %v428
  %2522 = vmatprep.subr.bf16.mxu0 %v433
  %2523 = vmatpush1.bf16.msra.mxu0 %v432
  %2524 = vmatprep.subr.bf16.mxu0 %v437
  %2525 = vmatpush1.bf16.msra.mxu0 %v436
  %2526 = vmatprep.subr.bf16.mxu0 %v441
  %2527 = vmatpush1.bf16.msra.mxu0 %v440
  %2528 = vmatprep.subr.bf16.mxu0 %v445
  %2529 = vmatpush1.bf16.msra.mxu0 %v444
  %2530 = vmatprep.subr.bf16.mxu0 0
  %2531 = vmatpush1.bf16.msra.mxu0 0
  %2532 = vmatprep.subr.bf16.mxu0 0
  %2533 = vmatpush1.bf16.msra.mxu0 0
  %2534 = vmatprep.subr.bf16.mxu0 0
  %2535 = vmatpush1.bf16.msra.mxu0 0
  %2536 = vmatprep.subr.bf16.mxu0 0
  %2537 = vmatpush1.bf16.msra.mxu0 0
  %2538 = vmatprep.subr.bf16.mxu0 0
  %2539 = vmatpush1.bf16.msra.mxu0 0
  %2540 = vmatprep.subr.bf16.mxu0 0
  %2541 = vmatpush1.bf16.msra.mxu0 0
  %2542 = vmatprep.subr.bf16.mxu0 0
  %2543 = vmatpush1.bf16.msra.mxu0 0
  %2544 = vmatprep.subr.bf16.mxu0 0
  %2545 = vmatpush1.bf16.msra.mxu0 0
  %2546 = vmatprep.mubr.bf16.mxu0 0
  %2547 = vmatmul.mubr.bf16.gmra.mrb[0].mxu0 %v2471
  %v2548 = vpop.f32.mrb[0].mxu0
  %v2549 = vadd.f32 0.0, %v2548
  %v2550 = vpop.f32.mrb[0].mxu0
  %v2551 = vadd.f32 0.0, %v2550
  %v2552 = vpop.f32.mrb[0].mxu0
  %v2553 = vpop.f32.mrb[0].mxu0
  %2554 = vdwg.mxu0
  %v2559 = vcombine.low %v2508, %v2510
  %v2560 = vcombine.low %v2549, %v2551
  %v2562 = vunpack.c.l.s4 1966171168
  %v2563 = vunpack.c.0.s8 %v2562
  %v2564 = vlaneseq
  %v2565 = vshrl.u32 %v2564, 7
  %v2566 = vsub.s32 %v2563, %v2565
  %v2567 = vrot.slane %v2559, %v2566
  %v2569 = vunpack.c.l.s4 1966171168
  %v2570 = vunpack.c.0.s8 %v2569
  %v2571 = vlaneseq
  %v2572 = vshrl.u32 %v2571, 7
  %v2573 = vsub.s32 %v2570, %v2572
  %v2574 = vrot.slane %v2560, %v2573
  %v2575 = vcombine.low %v2567, %v2574
  %v2576 = vcombine.high %v2567, %v2574
  %v2578 = vunpack.c.l.s4 1966171168
  %v2579 = vunpack.c.0.s8 %v2578
  %v2580 = vlaneseq
  %v2581 = vshrl.u32 %v2580, 7
  %v2582 = vsub.s32 %v2579, %v2581
  %v2583 = vrot.slane %v2575, %v2582
  %v2585 = vunpack.c.l.s4 1966171168
  %v2586 = vunpack.c.0.s8 %v2585
  %v2587 = vlaneseq
  %v2588 = vshrl.u32 %v2587, 7
  %v2589 = vsub.s32 %v2586, %v2588
  %v2590 = vrot.slane %v2576, %v2589
  %v2591 = vcombine.high %v2583, %v2583
  %v2592 = vcombine.high %v2590, %v2590
  %v2597 = vadd.f32 %v2454, %v2583
  %v2598 = vadd.f32 %v2456, %v2590
  %v2599 = vadd.f32 %v2458, %v2591
  %v2600 = vadd.f32 %v2460, %v2592
  %v2601 = vmul.f32 %v2597, 0.5
  %v2602 = vmul.f32 %v2598, 0.5
  %v2603 = vmul.f32 %v2599, 0.5
  %v2604 = vmul.f32 %v2600, 0.5
  %v2605 = vtanh.pop %v2601
  %v2606 = vtanh.pop %v2602
  %v2607 = vtanh.pop %v2603
  %v2608 = vtanh.pop %v2604
  %v2609 = vmul.f32 %v2605, 0.5
  %v2610 = vmul.f32 %v2606, 0.5
  %v2611 = vmul.f32 %v2607, 0.5
  %v2612 = vmul.f32 %v2608, 0.5
  %v2613 = vadd.f32 %v2609, 0.5
  %v2614 = vadd.f32 %v2610, 0.5
  %v2615 = vadd.f32 %v2611, 0.5
  %v2616 = vadd.f32 %v2612, 0.5
  %v2621 = vrot.slane %v2597, 1
  %v2622 = vrot.slane %v2598, 1
  %v2623 = vrot.slane %v2599, 1
  %v2624 = vrot.slane %v2600, 1
  %v2629 = vmul.f32 %v2621, 0.5
  %v2630 = vmul.f32 %v2622, 0.5
  %v2631 = vmul.f32 %v2623, 0.5
  %v2632 = vmul.f32 %v2624, 0.5
  %v2633 = vtanh.pop %v2629
  %v2634 = vtanh.pop %v2630
  %v2635 = vtanh.pop %v2631
  %v2636 = vtanh.pop %v2632
  %v2637 = vmul.f32 %v2633, 0.5
  %v2638 = vmul.f32 %v2634, 0.5
  %v2639 = vmul.f32 %v2635, 0.5
  %v2640 = vmul.f32 %v2636, 0.5
  %v2641 = vadd.f32 %v2637, 0.5
  %v2642 = vadd.f32 %v2638, 0.5
  %v2643 = vadd.f32 %v2639, 0.5
  %v2644 = vadd.f32 %v2640, 0.5
  %v2645 = vrot.slane %v2597, 2
  %v2646 = vrot.slane %v2598, 2
  %v2647 = vrot.slane %v2599, 2
  %v2648 = vrot.slane %v2600, 2
  %v2653 = vtanh.pop %v2645
  %v2654 = vtanh.pop %v2646
  %v2655 = vtanh.pop %v2647
  %v2656 = vtanh.pop %v2648
  %v2657 = vrot.slane %v2597, 3
  %v2658 = vrot.slane %v2598, 3
  %v2659 = vrot.slane %v2599, 3
  %v2660 = vrot.slane %v2600, 3
  %v2665 = vmul.f32 %v2657, 0.5
  %v2666 = vmul.f32 %v2658, 0.5
  %v2667 = vmul.f32 %v2659, 0.5
  %v2668 = vmul.f32 %v2660, 0.5
  %v2669 = vtanh.pop %v2665
  %v2670 = vtanh.pop %v2666
  %v2671 = vtanh.pop %v2667
  %v2672 = vtanh.pop %v2668
  %v2673 = vmul.f32 %v2669, 0.5
  %v2674 = vmul.f32 %v2670, 0.5
  %v2675 = vmul.f32 %v2671, 0.5
  %v2676 = vmul.f32 %v2672, 0.5
  %v2677 = vadd.f32 %v2673, 0.5
  %v2678 = vadd.f32 %v2674, 0.5
  %v2679 = vadd.f32 %v2675, 0.5
  %v2680 = vadd.f32 %v2676, 0.5
  %v2681 = vmul.f32 %v2641, %v2357
  %v2682 = vmul.f32 %v2642, %v2358
  %v2683 = vmul.f32 %v2643, %v2359
  %v2684 = vmul.f32 %v2644, %v2360
  %v2685 = vmul.f32 %v2613, %v2653
  %v2686 = vmul.f32 %v2614, %v2654
  %v2687 = vmul.f32 %v2615, %v2655
  %v2688 = vmul.f32 %v2616, %v2656
  %v2689 = vadd.f32 %v2681, %v2685
  %v2690 = vadd.f32 %v2682, %v2686
  %v2691 = vadd.f32 %v2683, %v2687
  %v2692 = vadd.f32 %v2684, %v2688
  %v2693 = vtanh.pop %v2689
  %v2694 = vtanh.pop %v2690
  %v2695 = vtanh.pop %v2691
  %v2696 = vtanh.pop %v2692
  %v2697 = vmul.f32 %v2677, %v2693
  %v2698 = vmul.f32 %v2678, %v2694
  %v2699 = vmul.f32 %v2679, %v2695
  %v2700 = vmul.f32 %v2680, %v2696
  %v2701 = vpack.c.bf16 %v2697, %v2697
  %v2702 = vpack.c.bf16 %v2698, %v2698
  %v2703 = vpack.c.bf16 %v2699, %v2699
  %v2704 = vpack.c.bf16 %v2700, %v2700
  %v2710 = vunpack.c.l.s4 1983009808
  %v2711 = vunpack.c.0.s8 %v2710
  %v2712 = vlaneseq
  %v2713 = vshrl.u32 %v2712, 7
  %v2714 = vsub.s32 %v2711, %v2713
  %v2715 = vrot.slane %v2701, %v2714
  %v2717 = vunpack.c.l.s4 1983009808
  %v2718 = vunpack.c.0.s8 %v2717
  %v2719 = vlaneseq
  %v2720 = vshrl.u32 %v2719, 7
  %v2721 = vsub.s32 %v2718, %v2720
  %v2722 = vrot.slane %v2702, %v2721
  %v2724 = vunpack.c.l.s4 1983009808
  %v2725 = vunpack.c.0.s8 %v2724
  %v2726 = vlaneseq
  %v2727 = vshrl.u32 %v2726, 7
  %v2728 = vsub.s32 %v2725, %v2727
  %v2729 = vrot.slane %v2703, %v2728
  %v2731 = vunpack.c.l.s4 1983009808
  %v2732 = vunpack.c.0.s8 %v2731
  %v2733 = vlaneseq
  %v2734 = vshrl.u32 %v2733, 7
  %v2735 = vsub.s32 %v2732, %v2734
  %v2736 = vrot.slane %v2704, %v2735
  %v2738 = vunpack.c.l.s4 1983009808
  %v2739 = vunpack.c.0.s8 %v2738
  %v2740 = vlaneseq
  %v2741 = vshrl.u32 %v2740, 7
  %v2742 = vsub.s32 %v2739, %v2741
  %v2743 = vrot.slane %v2715, %v2742
  %v2745 = vunpack.c.l.s4 1983009808
  %v2746 = vunpack.c.0.s8 %v2745
  %v2747 = vlaneseq
  %v2748 = vshrl.u32 %v2747, 7
  %v2749 = vsub.s32 %v2746, %v2748
  %v2750 = vrot.slane %v2722, %v2749
  %v2752 = vunpack.c.l.s4 1983009808
  %v2753 = vunpack.c.0.s8 %v2752
  %v2754 = vlaneseq
  %v2755 = vshrl.u32 %v2754, 7
  %v2756 = vsub.s32 %v2753, %v2755
  %v2757 = vrot.slane %v2729, %v2756
  %v2759 = vunpack.c.l.s4 1983009808
  %v2760 = vunpack.c.0.s8 %v2759
  %v2761 = vlaneseq
  %v2762 = vshrl.u32 %v2761, 7
  %v2763 = vsub.s32 %v2760, %v2762
  %v2764 = vrot.slane %v2736, %v2763
  %v2765 = vunpack.c.l.b16 %v2743
  %v2766 = vunpack.c.l.b16 %v2750
  %v2767 = vunpack.c.l.b16 %v2757
  %v2768 = vunpack.c.l.b16 %v2764
  %v2769 = vrot.slane %v2766, 7
  %v2770 = vsel %vm775, %v2769, %v2765
  %v2771 = vrot.slane %v2767, 6
  %v2772 = vsel %vm778, %v2771, %v2770
  %v2773 = vrot.slane %v2768, 5
  %v2774 = vsel %vm781, %v2773, %v2772
  %v2775 = vpack.c.b16 %v2774, %v2774
  %v2777 = vunpack.c.l.s4 1983009808
  %v2778 = vunpack.c.0.s8 %v2777
  %v2779 = vlaneseq
  %v2780 = vshrl.u32 %v2779, 7
  %v2781 = vsub.s32 %v2778, %v2780
  %v2782 = vrot.slane %v2775, %v2781
  %2784 = vst [vmem:[%s4 + $0xc] sm:$0x3] %v2782
  %s2785 = scalar_lea.vmem [#allocation2], 7
  %v2786 = vld [vmem:[%s2785] ss:$8 sm:$0xf]
  %s2787 = scalar_lea.vmem [#allocation2], 39
  %v2788 = vld [vmem:[%s2787] ss:$8 sm:$0xf]
  %s2789 = scalar_lea.vmem [#allocation2], 71
  %v2790 = vld [vmem:[%s2789] ss:$8 sm:$0xf]
  %s2791 = scalar_lea.vmem [#allocation2], 103
  %v2792 = vld [vmem:[%s2791] ss:$8 sm:$0xf]
  %v2793 = vunpack.c.l.b16 %v2701
  %v2794 = vunpack.c.l.b16 %v2702
  %v2795 = vunpack.c.l.b16 %v2703
  %v2796 = vunpack.c.l.b16 %v2704
  %v2797 = vrot.slane %v2794, 7
  %v2798 = vsel %vm775, %v2797, %v2793
  %v2799 = vrot.slane %v2795, 6
  %v2800 = vsel %vm778, %v2799, %v2798
  %v2801 = vrot.slane %v2796, 5
  %v2802 = vsel %vm781, %v2801, %v2800
  %v2803 = vpack.c.b16 %v2802, %v2802
  %2805 = vmatprep.subr.bf16.mxu0 %v415
  %2806 = vmatpush1.bf16.msra.mxu0 %v414
  %2807 = vmatprep.subr.bf16.mxu0 %v419
  %2808 = vmatpush1.bf16.msra.mxu0 %v418
  %2809 = vmatprep.subr.bf16.mxu0 %v423
  %2810 = vmatpush1.bf16.msra.mxu0 %v422
  %2811 = vmatprep.subr.bf16.mxu0 %v427
  %2812 = vmatpush1.bf16.msra.mxu0 %v426
  %2813 = vmatprep.subr.bf16.mxu0 %v431
  %2814 = vmatpush1.bf16.msra.mxu0 %v430
  %2815 = vmatprep.subr.bf16.mxu0 %v435
  %2816 = vmatpush1.bf16.msra.mxu0 %v434
  %2817 = vmatprep.subr.bf16.mxu0 %v439
  %2818 = vmatpush1.bf16.msra.mxu0 %v438
  %2819 = vmatprep.subr.bf16.mxu0 %v443
  %2820 = vmatpush1.bf16.msra.mxu0 %v442
  %2821 = vmatprep.subr.bf16.mxu0 0
  %2822 = vmatpush1.bf16.msra.mxu0 0
  %2823 = vmatprep.subr.bf16.mxu0 0
  %2824 = vmatpush1.bf16.msra.mxu0 0
  %2825 = vmatprep.subr.bf16.mxu0 0
  %2826 = vmatpush1.bf16.msra.mxu0 0
  %2827 = vmatprep.subr.bf16.mxu0 0
  %2828 = vmatpush1.bf16.msra.mxu0 0
  %2829 = vmatprep.subr.bf16.mxu0 0
  %2830 = vmatpush1.bf16.msra.mxu0 0
  %2831 = vmatprep.subr.bf16.mxu0 0
  %2832 = vmatpush1.bf16.msra.mxu0 0
  %2833 = vmatprep.subr.bf16.mxu0 0
  %2834 = vmatpush1.bf16.msra.mxu0 0
  %2835 = vmatprep.subr.bf16.mxu0 0
  %2836 = vmatpush1.bf16.msra.mxu0 0
  %2837 = vmatprep.mubr.bf16.mxu0 0
  %2838 = vmatmul.mubr.bf16.gmra.mrb[0].mxu0 %v2803
  %v2839 = vpop.f32.mrb[0].mxu0
  %v2840 = vadd.f32 0.0, %v2839
  %v2841 = vpop.f32.mrb[0].mxu0
  %v2842 = vadd.f32 0.0, %v2841
  %v2843 = vpop.f32.mrb[0].mxu0
  %v2844 = vpop.f32.mrb[0].mxu0
  %2845 = vdwg.mxu0
  %2846 = vmatprep.subr.bf16.mxu0 %v417
  %2847 = vmatpush1.bf16.msra.mxu0 %v416
  %2848 = vmatprep.subr.bf16.mxu0 %v421
  %2849 = vmatpush1.bf16.msra.mxu0 %v420
  %2850 = vmatprep.subr.bf16.mxu0 %v425
  %2851 = vmatpush1.bf16.msra.mxu0 %v424
  %2852 = vmatprep.subr.bf16.mxu0 %v429
  %2853 = vmatpush1.bf16.msra.mxu0 %v428
  %2854 = vmatprep.subr.bf16.mxu0 %v433
  %2855 = vmatpush1.bf16.msra.mxu0 %v432
  %2856 = vmatprep.subr.bf16.mxu0 %v437
  %2857 = vmatpush1.bf16.msra.mxu0 %v436
  %2858 = vmatprep.subr.bf16.mxu0 %v441
  %2859 = vmatpush1.bf16.msra.mxu0 %v440
  %2860 = vmatprep.subr.bf16.mxu0 %v445
  %2861 = vmatpush1.bf16.msra.mxu0 %v444
  %2862 = vmatprep.subr.bf16.mxu0 0
  %2863 = vmatpush1.bf16.msra.mxu0 0
  %2864 = vmatprep.subr.bf16.mxu0 0
  %2865 = vmatpush1.bf16.msra.mxu0 0
  %2866 = vmatprep.subr.bf16.mxu0 0
  %2867 = vmatpush1.bf16.msra.mxu0 0
  %2868 = vmatprep.subr.bf16.mxu0 0
  %2869 = vmatpush1.bf16.msra.mxu0 0
  %2870 = vmatprep.subr.bf16.mxu0 0
  %2871 = vmatpush1.bf16.msra.mxu0 0
  %2872 = vmatprep.subr.bf16.mxu0 0
  %2873 = vmatpush1.bf16.msra.mxu0 0
  %2874 = vmatprep.subr.bf16.mxu0 0
  %2875 = vmatpush1.bf16.msra.mxu0 0
  %2876 = vmatprep.subr.bf16.mxu0 0
  %2877 = vmatpush1.bf16.msra.mxu0 0
  %2878 = vmatprep.mubr.bf16.mxu0 0
  %2879 = vmatmul.mubr.bf16.gmra.mrb[0].mxu0 %v2803
  %v2880 = vpop.f32.mrb[0].mxu0
  %v2881 = vadd.f32 0.0, %v2880
  %v2882 = vpop.f32.mrb[0].mxu0
  %v2883 = vadd.f32 0.0, %v2882
  %v2884 = vpop.f32.mrb[0].mxu0
  %v2885 = vpop.f32.mrb[0].mxu0
  %2886 = vdwg.mxu0
  %v2891 = vcombine.low %v2840, %v2842
  %v2892 = vcombine.low %v2881, %v2883
  %v2894 = vunpack.c.l.s4 1966171168
  %v2895 = vunpack.c.0.s8 %v2894
  %v2896 = vlaneseq
  %v2897 = vshrl.u32 %v2896, 7
  %v2898 = vsub.s32 %v2895, %v2897
  %v2899 = vrot.slane %v2891, %v2898
  %v2901 = vunpack.c.l.s4 1966171168
  %v2902 = vunpack.c.0.s8 %v2901
  %v2903 = vlaneseq
  %v2904 = vshrl.u32 %v2903, 7
  %v2905 = vsub.s32 %v2902, %v2904
  %v2906 = vrot.slane %v2892, %v2905
  %v2907 = vcombine.low %v2899, %v2906
  %v2908 = vcombine.high %v2899, %v2906
  %v2910 = vunpack.c.l.s4 1966171168
  %v2911 = vunpack.c.0.s8 %v2910
  %v2912 = vlaneseq
  %v2913 = vshrl.u32 %v2912, 7
  %v2914 = vsub.s32 %v2911, %v2913
  %v2915 = vrot.slane %v2907, %v2914
  %v2917 = vunpack.c.l.s4 1966171168
  %v2918 = vunpack.c.0.s8 %v2917
  %v2919 = vlaneseq
  %v2920 = vshrl.u32 %v2919, 7
  %v2921 = vsub.s32 %v2918, %v2920
  %v2922 = vrot.slane %v2908, %v2921
  %v2923 = vcombine.high %v2915, %v2915
  %v2924 = vcombine.high %v2922, %v2922
  %v2929 = vadd.f32 %v2786, %v2915
  %v2930 = vadd.f32 %v2788, %v2922
  %v2931 = vadd.f32 %v2790, %v2923
  %v2932 = vadd.f32 %v2792, %v2924
  %v2933 = vmul.f32 %v2929, 0.5
  %v2934 = vmul.f32 %v2930, 0.5
  %v2935 = vmul.f32 %v2931, 0.5
  %v2936 = vmul.f32 %v2932, 0.5
  %v2937 = vtanh.pop %v2933
  %v2938 = vtanh.pop %v2934
  %v2939 = vtanh.pop %v2935
  %v2940 = vtanh.pop %v2936
  %v2941 = vmul.f32 %v2937, 0.5
  %v2942 = vmul.f32 %v2938, 0.5
  %v2943 = vmul.f32 %v2939, 0.5
  %v2944 = vmul.f32 %v2940, 0.5
  %v2945 = vadd.f32 %v2941, 0.5
  %v2946 = vadd.f32 %v2942, 0.5
  %v2947 = vadd.f32 %v2943, 0.5
  %v2948 = vadd.f32 %v2944, 0.5
  %v2953 = vrot.slane %v2929, 1
  %v2954 = vrot.slane %v2930, 1
  %v2955 = vrot.slane %v2931, 1
  %v2956 = vrot.slane %v2932, 1
  %v2961 = vmul.f32 %v2953, 0.5
  %v2962 = vmul.f32 %v2954, 0.5
  %v2963 = vmul.f32 %v2955, 0.5
  %v2964 = vmul.f32 %v2956, 0.5
  %v2965 = vtanh.pop %v2961
  %v2966 = vtanh.pop %v2962
  %v2967 = vtanh.pop %v2963
  %v2968 = vtanh.pop %v2964
  %v2969 = vmul.f32 %v2965, 0.5
  %v2970 = vmul.f32 %v2966, 0.5
  %v2971 = vmul.f32 %v2967, 0.5
  %v2972 = vmul.f32 %v2968, 0.5
  %v2973 = vadd.f32 %v2969, 0.5
  %v2974 = vadd.f32 %v2970, 0.5
  %v2975 = vadd.f32 %v2971, 0.5
  %v2976 = vadd.f32 %v2972, 0.5
  %v2977 = vrot.slane %v2929, 2
  %v2978 = vrot.slane %v2930, 2
  %v2979 = vrot.slane %v2931, 2
  %v2980 = vrot.slane %v2932, 2
  %v2985 = vtanh.pop %v2977
  %v2986 = vtanh.pop %v2978
  %v2987 = vtanh.pop %v2979
  %v2988 = vtanh.pop %v2980
  %v2989 = vrot.slane %v2929, 3
  %v2990 = vrot.slane %v2930, 3
  %v2991 = vrot.slane %v2931, 3
  %v2992 = vrot.slane %v2932, 3
  %v2997 = vmul.f32 %v2989, 0.5
  %v2998 = vmul.f32 %v2990, 0.5
  %v2999 = vmul.f32 %v2991, 0.5
  %v3000 = vmul.f32 %v2992, 0.5
  %v3001 = vtanh.pop %v2997
  %v3002 = vtanh.pop %v2998
  %v3003 = vtanh.pop %v2999
  %v3004 = vtanh.pop %v3000
  %v3005 = vmul.f32 %v3001, 0.5
  %v3006 = vmul.f32 %v3002, 0.5
  %v3007 = vmul.f32 %v3003, 0.5
  %v3008 = vmul.f32 %v3004, 0.5
  %v3009 = vadd.f32 %v3005, 0.5
  %v3010 = vadd.f32 %v3006, 0.5
  %v3011 = vadd.f32 %v3007, 0.5
  %v3012 = vadd.f32 %v3008, 0.5
  %v3013 = vmul.f32 %v2973, %v2689
  %v3014 = vmul.f32 %v2974, %v2690
  %v3015 = vmul.f32 %v2975, %v2691
  %v3016 = vmul.f32 %v2976, %v2692
  %v3017 = vmul.f32 %v2945, %v2985
  %v3018 = vmul.f32 %v2946, %v2986
  %v3019 = vmul.f32 %v2947, %v2987
  %v3020 = vmul.f32 %v2948, %v2988
  %v3021 = vadd.f32 %v3013, %v3017
  %v3022 = vadd.f32 %v3014, %v3018
  %v3023 = vadd.f32 %v3015, %v3019
  %v3024 = vadd.f32 %v3016, %v3020
  %v3025 = vtanh.pop %v3021
  %v3026 = vtanh.pop %v3022
  %v3027 = vtanh.pop %v3023
  %v3028 = vtanh.pop %v3024
  %v3029 = vmul.f32 %v3009, %v3025
  %v3030 = vmul.f32 %v3010, %v3026
  %v3031 = vmul.f32 %v3011, %v3027
  %v3032 = vmul.f32 %v3012, %v3028
  %v3033 = vpack.c.bf16 %v3029, %v3029
  %v3034 = vpack.c.bf16 %v3030, %v3030
  %v3035 = vpack.c.bf16 %v3031, %v3031
  %v3036 = vpack.c.bf16 %v3032, %v3032
  %v3042 = vunpack.c.l.s4 1983009808
  %v3043 = vunpack.c.0.s8 %v3042
  %v3044 = vlaneseq
  %v3045 = vshrl.u32 %v3044, 7
  %v3046 = vsub.s32 %v3043, %v3045
  %v3047 = vrot.slane %v3033, %v3046
  %v3049 = vunpack.c.l.s4 1983009808
  %v3050 = vunpack.c.0.s8 %v3049
  %v3051 = vlaneseq
  %v3052 = vshrl.u32 %v3051, 7
  %v3053 = vsub.s32 %v3050, %v3052
  %v3054 = vrot.slane %v3034, %v3053
  %v3056 = vunpack.c.l.s4 1983009808
  %v3057 = vunpack.c.0.s8 %v3056
  %v3058 = vlaneseq
  %v3059 = vshrl.u32 %v3058, 7
  %v3060 = vsub.s32 %v3057, %v3059
  %v3061 = vrot.slane %v3035, %v3060
  %v3063 = vunpack.c.l.s4 1983009808
  %v3064 = vunpack.c.0.s8 %v3063
  %v3065 = vlaneseq
  %v3066 = vshrl.u32 %v3065, 7
  %v3067 = vsub.s32 %v3064, %v3066
  %v3068 = vrot.slane %v3036, %v3067
  %v3070 = vunpack.c.l.s4 1983009808
  %v3071 = vunpack.c.0.s8 %v3070
  %v3072 = vlaneseq
  %v3073 = vshrl.u32 %v3072, 7
  %v3074 = vsub.s32 %v3071, %v3073
  %v3075 = vrot.slane %v3047, %v3074
  %v3077 = vunpack.c.l.s4 1983009808
  %v3078 = vunpack.c.0.s8 %v3077
  %v3079 = vlaneseq
  %v3080 = vshrl.u32 %v3079, 7
  %v3081 = vsub.s32 %v3078, %v3080
  %v3082 = vrot.slane %v3054, %v3081
  %v3084 = vunpack.c.l.s4 1983009808
  %v3085 = vunpack.c.0.s8 %v3084
  %v3086 = vlaneseq
  %v3087 = vshrl.u32 %v3086, 7
  %v3088 = vsub.s32 %v3085, %v3087
  %v3089 = vrot.slane %v3061, %v3088
  %v3091 = vunpack.c.l.s4 1983009808
  %v3092 = vunpack.c.0.s8 %v3091
  %v3093 = vlaneseq
  %v3094 = vshrl.u32 %v3093, 7
  %v3095 = vsub.s32 %v3092, %v3094
  %v3096 = vrot.slane %v3068, %v3095
  %v3097 = vunpack.c.l.b16 %v3075
  %v3098 = vunpack.c.l.b16 %v3082
  %v3099 = vunpack.c.l.b16 %v3089
  %v3100 = vunpack.c.l.b16 %v3096
  %v3101 = vrot.slane %v3098, 7
  %v3102 = vsel %vm775, %v3101, %v3097
  %v3103 = vrot.slane %v3099, 6
  %v3104 = vsel %vm778, %v3103, %v3102
  %v3105 = vrot.slane %v3100, 5
  %v3106 = vsel %vm781, %v3105, %v3104
  %v3107 = vpack.c.b16 %v3106, %v3106
  %v3109 = vunpack.c.l.s4 1983009808
  %v3110 = vunpack.c.0.s8 %v3109
  %v3111 = vlaneseq
  %v3112 = vshrl.u32 %v3111, 7
  %v3113 = vsub.s32 %v3110, %v3112
  %v3114 = vrot.slane %v3107, %v3113
  %3116 = vst [vmem:[%s4 + $0xe] sm:$0x3] %v3114
  // Predicated region
  $region18: #{decoder_rnn_forward.2} parent=0 // pred_check
    _
  $region19: #{decoder_rnn_forward.2} parent=0 // pred_check_branch
    %3118 = sbr.rel (0) target = $region21
  $region20: #{decoder_rnn_forward.2} parent=0 // pred_region
    _
  $region21: #{decoder_rnn_forward.2} parent=0 // pred_fallthru
    _
  // Predicated region
  $region22: #{decoder_rnn_forward.2} parent=0 // pred_check
    _
  $region23: #{decoder_rnn_forward.2} parent=0 // pred_check_branch
    %3120 = sbr.rel (0) target = $region25
  $region24: #{decoder_rnn_forward.2} parent=0 // pred_region
    _
  $region25: #{decoder_rnn_forward.2} parent=0 // pred_fallthru
    _

</llo_original>
